<compile_context>
chip_gen: v7x
topology: tpu7x:2x2x1
jax: 0.10.0
libtpu: 0.0.40
codegen_flags: <defaults>
</compile_context>

<pallas_src>
import math
import functools

import jax
import jax.numpy as jnp
from jax.experimental import pallas as pl
from jax.experimental.pallas import tpu as pltpu


LOG2E = math.log2(math.e)
MASK_VALUE = -1e30  # large finite negative: NaN-safe vs. -inf for fully-masked rows


def lambda_init_fn(depth):
    return 0.8 - 0.6 * math.exp(-0.3 * depth)


def _diff_flash_kernel(lam_ref, q_ref, k_ref, v_ref, w_ref,
                       o_ref,
                       m1, l1, acc1, m2, l2, acc2,
                       *, qscale, eps, causal, block_q, block_k):
    # Block shapes:
    #   q : (1, 2, TQ, D) bf16   (even/odd heads of the pair)
    #   k : (1, 2, TK, D) bf16
    #   v : (1, 1, TK, 2D) bf16  (host-concatenated [v1|v2], lane-dense)
    #   w : (1, 2D) f32          (RMSNorm weight, pre-scaled by (1 - lambda_init))
    #   o : (1, 1, TQ, 2D) out_dtype
    # Scratch per branch: m (TQ,1), l (TQ,1), acc (TQ,2D), all f32.
    qi = pl.program_id(2)
    kv = pl.program_id(3)

    @pl.when(kv == 0)
    def _init():
        m1[...] = jnp.full_like(m1, MASK_VALUE)
        l1[...] = jnp.zeros_like(l1)
        acc1[...] = jnp.zeros_like(acc1)
        m2[...] = jnp.full_like(m2, MASK_VALUE)
        l2[...] = jnp.zeros_like(l2)
        acc2[...] = jnp.zeros_like(acc2)

    def compute(masked):
        # softmax_scale * log2(e) folded into q (TQxD, much smaller than the TQxTK scores);
        # all exponentials below are exp2 in the log2 domain.
        qs = jnp.asarray(qscale, dtype=q_ref.dtype)
        q1 = q_ref[0, 0] * qs                            # (TQ, D) bf16
        q2 = q_ref[0, 1] * qs
        k1 = k_ref[0, 0]                                 # (TK, D) bf16
        k2 = k_ref[0, 1]
        vcat = v_ref[0, 0]                               # (TK, 2D) bf16, lane-dense

        if masked:
            # Only built for tiles that straddle the causal diagonal.
            offset = qi * block_q - kv * block_k
            row = jax.lax.broadcasted_iota(jnp.int32, (block_q, block_k), 0)
            col = jax.lax.broadcasted_iota(jnp.int32, (block_q, block_k), 1)
            mask = col <= row + offset
        else:
            mask = None

        dn = (((1,), (1,)), ((), ()))   # contract last dims of q and k (no explicit k.T)

        def branch(q, k, m_sc, l_sc, acc_sc):
            s = jax.lax.dot_general(q, k, dn, preferred_element_type=jnp.float32)
            if mask is not None:
                s = jnp.where(mask, s, MASK_VALUE)
            m_new = jnp.maximum(m_sc[...], jnp.max(s, axis=-1, keepdims=True))
            alpha = jnp.exp2(m_sc[...] - m_new)
            p = jnp.exp2(s - m_new)                      # f32 (TQ, TK)
            l_sc[...] = alpha * l_sc[...] + jnp.sum(p, axis=-1, keepdims=True)
            acc_sc[...] = alpha * acc_sc[...] + jnp.dot(
                p.astype(vcat.dtype), vcat, preferred_element_type=jnp.float32)
            m_sc[...] = m_new

        branch(q1, k1, m1, l1, acc1)
        branch(q2, k2, m2, l2, acc2)

    if causal:
        row0 = qi * block_q
        col0 = kv * block_k
        is_full = col0 + (block_k - 1) <= row0           # tile fully below diagonal
        needed = col0 <= row0 + (block_q - 1)            # tile not entirely above diagonal

        @pl.when(is_full)
        def _():
            compute(masked=False)

        @pl.when(jnp.logical_and(needed, jnp.logical_not(is_full)))
        def _():
            compute(masked=True)
    else:
        compute(masked=False)

    # NOTE: finalize must stay OUTSIDE the causal compute-skip conditions.
    @pl.when(kv == pl.num_programs(3) - 1)
    def _finalize():
        inv1 = pl.reciprocal(l1[...], approx=True)
        inv1 = inv1 * (2.0 - l1[...] * inv1)             # one Newton step on (TQ,1) - cheap
        inv2 = pl.reciprocal(l2[...], approx=True)
        inv2 = inv2 * (2.0 - l2[...] * inv2)
        a1 = acc1[...] * inv1                            # (TQ, 2D) f32
        a2 = acc2[...] * inv2
        # flash_attn outputs and lambda_full are bf16 in the reference; mimic that rounding.
        lam_bf = lam_ref[0].astype(jnp.bfloat16)
        x = a1.astype(jnp.bfloat16) - lam_bf * a2.astype(jnp.bfloat16)
        # SambaRMSNorm(2D): f32 variance, rsqrt, cast back to bf16, then f32 weight.
        xf = x.astype(jnp.float32)
        var = jnp.mean(xf * xf, axis=-1, keepdims=True)
        xn = xf * jax.lax.rsqrt(var + eps)
        # w_ref already carries the (1 - lambda_init) factor (folded on the host).
        y = w_ref[0] * xn.astype(jnp.bfloat16).astype(jnp.float32)
        o_ref[0, 0] = y.astype(o_ref.dtype)


def flash_diff_attention(q, k, v, params, *, causal=False, softmax_scale=None,
                         block_q=256, block_k=256, out_dtype=jnp.float32):
    """q, k, v: (B, S, 2H, D) bf16.  Returns (B, S, 2H, D) out_dtype (f32 default, matching
    torch's f32-weight * bf16-activation promotion in SambaRMSNorm)."""
    B, S, Ht, D = q.shape
    assert Ht % 2 == 0
    H = Ht // 2
    block_q = min(block_q, S)
    block_k = min(block_k, S)
    assert S % block_q == 0 and S % block_k == 0, "S must be divisible by the tile sizes"
    # TODO(synk): varlen (cu_seqlens) path, dropout_p and window_size are not implemented.

    # One layout pass per tensor.  For V the reshape also performs the [v1|v2] concat
    # (heads 2h / 2h+1 are adjacent), giving a lane-dense last dim of 2D = 128.
    qt = jnp.transpose(q, (0, 2, 1, 3))                              # (B, 2H, S, D)
    kt = jnp.transpose(k, (0, 2, 1, 3))                              # (B, 2H, S, D)
    vt = jnp.transpose(v.reshape(B, S, H, 2 * D), (0, 2, 1, 3))      # (B, H, S, 2D)

    lambda_init = float(params["lambda_init"])
    # lambda_1/2 computed in f32 then cast to q.dtype (bf16) before combining (torch semantics).
    lam1 = jnp.exp(jnp.sum(params["lambda_q1"] * params["lambda_k1"])).astype(q.dtype)
    lam2 = jnp.exp(jnp.sum(params["lambda_q2"] * params["lambda_k2"])).astype(q.dtype)
    lam_full = (lam1 - lam2 + jnp.asarray(lambda_init, q.dtype)).astype(jnp.float32).reshape(1)

    # Fold (1 - lambda_init) into the tiny RMSNorm weight once, on the host.
    w = (params["subln_weight"].astype(jnp.float32) * (1.0 - lambda_init)).reshape(1, 2 * D)

    scale = softmax_scale if softmax_scale is not None else 1.0 / math.sqrt(D)
    qscale = scale * LOG2E   # folded into q; exponentials use exp2

    grid = (B, H, S // block_q, S // block_k)

    def kv_block_index(qi, ki):
        if causal:
            # Clamp so tiles above the causal diagonal re-use the previous block index:
            # Pallas elides the (useless) K/V copies for the skipped steps.
            last = (qi * block_q + block_q - 1) // block_k
            ki = jnp.minimum(ki, last)
        return ki

    q_spec = pl.BlockSpec((1, 2, block_q, D), lambda b, h, qi, ki: (b, h, qi, 0))
    k_spec = pl.BlockSpec((1, 2, block_k, D),
                          lambda b, h, qi, ki: (b, h, kv_block_index(qi, ki), 0))
    v_spec = pl.BlockSpec((1, 1, block_k, 2 * D),
                          lambda b, h, qi, ki: (b, h, kv_block_index(qi, ki), 0))
    w_spec = pl.BlockSpec((1, 2 * D), lambda b, h, qi, ki: (0, 0))

    kernel = functools.partial(
        _diff_flash_kernel,
        qscale=qscale, eps=1e-5, causal=causal, block_q=block_q, block_k=block_k)

    out = pl.pallas_call(
        kernel,
        out_shape=jax.ShapeDtypeStruct((B, H, S, 2 * D), out_dtype),
        grid=grid,
        in_specs=[
            pl.BlockSpec(memory_space=pltpu.MemorySpace.SMEM),       # lambda_full scalar
            q_spec,                                                  # (1,2,TQ,D) head pair
            k_spec,                                                  # (1,2,TK,D) head pair
            v_spec,                                                  # (1,1,TK,2D) [v1|v2]
            w_spec,                                                  # scaled RMSNorm weight
        ],
        out_specs=pl.BlockSpec((1, 1, block_q, 2 * D),
                               lambda b, h, qi, ki: (b, h, qi, 0)),
        scratch_shapes=[
            pltpu.VMEM((block_q, 1), jnp.float32),       # m1
            pltpu.VMEM((block_q, 1), jnp.float32),       # l1
            pltpu.VMEM((block_q, 2 * D), jnp.float32),   # acc1
            pltpu.VMEM((block_q, 1), jnp.float32),       # m2
            pltpu.VMEM((block_q, 1), jnp.float32),       # l2
            pltpu.VMEM((block_q, 2 * D), jnp.float32),   # acc2
        ],
        compiler_params=pltpu.CompilerParams(
            dimension_semantics=("parallel", "parallel", "parallel", "arbitrary")),
    )(lam_full, qt, kt, vt, w)

    # '... H (two D) -> ... (H two) D' : (B, H, S, 2D) -> (B, S, 2H, D)
    out = out.reshape(B, H, S, 2, D)
    out = jnp.transpose(out, (0, 2, 1, 3, 4)).reshape(B, S, 2 * H, D)
    return out


def init_params(head_dim, depth, key):
    k1, k2, k3, k4 = jax.random.split(key, 4)
    return {
        "lambda_q1": 0.1 * jax.random.normal(k1, (head_dim,), jnp.float32),
        "lambda_k1": 0.1 * jax.random.normal(k2, (head_dim,), jnp.float32),
        "lambda_q2": 0.1 * jax.random.normal(k3, (head_dim,), jnp.float32),
        "lambda_k2": 0.1 * jax.random.normal(k4, (head_dim,), jnp.float32),
        "subln_weight": jnp.ones((2 * head_dim,), jnp.float32),
        "lambda_init": lambda_init_fn(depth),
    }


def _reference(q, k, v, params, *, causal=False, softmax_scale=None):
    """Pure-JAX reference mirroring the torch module's numerics (sanity check)."""
    B, S, Ht, D = q.shape
    H = Ht // 2
    scale = softmax_scale if softmax_scale is not None else 1.0 / math.sqrt(D)

    def split(x):
        x = x.reshape(B, S, H, 2, D)
        return x[..., 0, :], x[..., 1, :]

    q1, q2 = split(q); k1, k2 = split(k); v1, v2 = split(v)
    vcat = jnp.concatenate([v1, v2], axis=-1).astype(jnp.float32)       # (B, S, H, 2D)

    def attn(qh, kh):
        s = jnp.einsum("bqhd,bkhd->bhqk", qh.astype(jnp.float32),
                       kh.astype(jnp.float32)) * scale
        if causal:
            mask = jnp.tril(jnp.ones((S, S), bool))
            s = jnp.where(mask[None, None], s, -jnp.inf)
        m = jnp.max(s, axis=-1, keepdims=True)
        p = jnp.exp(s - m)
        l = jnp.sum(p, axis=-1, keepdims=True)
        o = jnp.einsum("bhqk,bkhe->bhqe",
                       p.astype(jnp.bfloat16).astype(jnp.float32), vcat)
        return o / l                                                    # (B, H, S, 2D) f32

    a1 = attn(q1, k1)
    a2 = attn(q2, k2)
    lam1 = jnp.exp(jnp.sum(params["lambda_q1"] * params["lambda_k1"])).astype(q.dtype)
    lam2 = jnp.exp(jnp.sum(params["lambda_q2"] * params["lambda_k2"])).astype(q.dtype)
    lam_full = lam1 - lam2 + jnp.asarray(params["lambda_init"], q.dtype)
    x = a1.astype(jnp.bfloat16) - lam_full * a2.astype(jnp.bfloat16)
    xf = x.astype(jnp.float32)
    var = jnp.mean(xf * xf, axis=-1, keepdims=True)
    xn = xf * jax.lax.rsqrt(var + 1e-5)
    y = params["subln_weight"].astype(jnp.float32) * xn.astype(jnp.bfloat16).astype(jnp.float32)
    y = y * (1.0 - float(params["lambda_init"]))
    y = jnp.transpose(y.reshape(B, H, S, 2, D), (0, 2, 1, 3, 4)).reshape(B, S, 2 * H, D)
    return y


if __name__ == "__main__":
    B, S, H_pairs, D = 2, 128, 2, 64        # total heads = 2 * H_pairs = 4, head_dim = 64
    depth = 2

    root = jax.random.PRNGKey(0)
    kp, kq, kk, kvk = jax.random.split(root, 4)

    params = init_params(D, depth, kp)
    q = jax.random.normal(kq, (B, S, 2 * H_pairs, D), jnp.float32).astype(jnp.bfloat16)
    k = jax.random.normal(kk, (B, S, 2 * H_pairs, D), jnp.float32).astype(jnp.bfloat16)
    v = jax.random.normal(kvk, (B, S, 2 * H_pairs, D), jnp.float32).astype(jnp.bfloat16)

    # Non-causal; default (clamped) tiles -> single KV tile per (b, h, qi).
    out = flash_diff_attention(q, k, v, params, causal=False)
    jax.block_until_ready(out)
    assert out.shape == (B, S, 2 * H_pairs, D) and out.dtype == jnp.float32
    ref = _reference(q, k, v, params, causal=False)
    assert float(jnp.max(jnp.abs(out - ref))) < 5e-2

    # Causal, square tiles -> exercises online-softmax accumulation, full/diagonal tile split,
    # KV-tile skipping and the clamped K/V index_map.
    out_c = flash_diff_attention(q, k, v, params, causal=True, block_q=64, block_k=64)
    jax.block_until_ready(out_c)
    ref_c = _reference(q, k, v, params, causal=True)
    assert float(jnp.max(jnp.abs(out_c - ref_c))) < 5e-2

    # Causal with block_q > block_k -> rows fully masked within later tiles (finite mask value).
    out_c2 = flash_diff_attention(q, k, v, params, causal=True, block_q=128, block_k=32)
    jax.block_until_ready(out_c2)
    assert float(jnp.max(jnp.abs(out_c2 - ref_c))) < 5e-2

    print("KERNEL_OK")
</pallas_src>

<mosaic_0001>
module attributes {stable_mosaic.version = 11 : i64} {
  func.func @_diff_flash_kernel(%arg0: i32, %arg1: i32, %arg2: i32, %arg3: i32, %arg4: memref<1xf32, #tpu.memory_space<smem>>, %arg5: memref<1x2x128x64xbf16, #tpu.memory_space<vmem>>, %arg6: memref<1x2x128x64xbf16, #tpu.memory_space<vmem>>, %arg7: memref<1x1x128x128xbf16, #tpu.memory_space<vmem>>, %arg8: memref<1x128xf32, #tpu.memory_space<vmem>>, %arg9: memref<1x1x128x128xf32, #tpu.memory_space<vmem>>, %arg10: memref<128x1xf32, #tpu.memory_space<vmem>>, %arg11: memref<128x1xf32, #tpu.memory_space<vmem>>, %arg12: memref<128x128xf32, #tpu.memory_space<vmem>>, %arg13: memref<128x1xf32, #tpu.memory_space<vmem>>, %arg14: memref<128x1xf32, #tpu.memory_space<vmem>>, %arg15: memref<128x128xf32, #tpu.memory_space<vmem>>) attributes {dimension_semantics = [#tpu.dimension_semantics<parallel>, #tpu.dimension_semantics<parallel>, #tpu.dimension_semantics<parallel>, #tpu.dimension_semantics<arbitrary>], iteration_bounds = array<i64: 2, 2, 1, 1>, scalar_prefetch = 0 : i64, scratch_operands = 6 : i64, tpu.core_type = #tpu.core_type<tc>, window_params = [{transform_indices = @transform_0, window_bounds = array<i64: 1>}, {transform_indices = @transform_1, window_bounds = array<i64: 1, 2, 128, 64>}, {transform_indices = @transform_2, window_bounds = array<i64: 1, 2, 128, 64>}, {transform_indices = @transform_3, window_bounds = array<i64: 1, 1, 128, 128>}, {pipeline_mode = #tpu.pipeline_mode<synchronous>, transform_indices = @transform_4, window_bounds = array<i64: 1, 128>}, {transform_indices = @transform_5, window_bounds = array<i64: 1, 1, 128, 128>}]} {
    %c0_i32 = arith.constant 0 : i32
    %0 = arith.cmpi eq, %arg3, %c0_i32 : i32
    %1 = arith.extui %0 : i1 to i32
    %c0_i32_0 = arith.constant 0 : i32
    %2 = arith.cmpi ne, %1, %c0_i32_0 : i32
    scf.if %2 {
      %cst_58 = arith.constant -1.000000e+30 : f32
      %70 = vector.broadcast %cst_58 : f32 to vector<128x1xf32>
      %c0_59 = arith.constant 0 : index
      %c0_60 = arith.constant 0 : index
      %71 = vector.load %arg10[%c0_59, %c0_60] : memref<128x1xf32, #tpu.memory_space<vmem>>, vector<128x1xf32>
      tpu.vector_store %arg10[%c0_59, %c0_60], %70 {strides = array<i32>} : memref<128x1xf32, #tpu.memory_space<vmem>>, vector<128x1xf32>,
      %cst_61 = arith.constant 0.000000e+00 : f32
      %72 = vector.broadcast %cst_61 : f32 to vector<128x1xf32>
      %c0_62 = arith.constant 0 : index
      %c0_63 = arith.constant 0 : index
      %73 = vector.load %arg11[%c0_62, %c0_63] : memref<128x1xf32, #tpu.memory_space<vmem>>, vector<128x1xf32>
      tpu.vector_store %arg11[%c0_62, %c0_63], %72 {strides = array<i32>} : memref<128x1xf32, #tpu.memory_space<vmem>>, vector<128x1xf32>,
      %cst_64 = arith.constant 0.000000e+00 : f32
      %74 = vector.broadcast %cst_64 : f32 to vector<128x128xf32>
      %c0_65 = arith.constant 0 : index
      %c0_66 = arith.constant 0 : index
      %75 = vector.load %arg12[%c0_65, %c0_66] : memref<128x128xf32, #tpu.memory_space<vmem>>, vector<128x128xf32>
      tpu.vector_store %arg12[%c0_65, %c0_66], %74 {strides = array<i32>} : memref<128x128xf32, #tpu.memory_space<vmem>>, vector<128x128xf32>,
      %cst_67 = arith.constant -1.000000e+30 : f32
      %76 = vector.broadcast %cst_67 : f32 to vector<128x1xf32>
      %c0_68 = arith.constant 0 : index
      %c0_69 = arith.constant 0 : index
      %77 = vector.load %arg13[%c0_68, %c0_69] : memref<128x1xf32, #tpu.memory_space<vmem>>, vector<128x1xf32>
      tpu.vector_store %arg13[%c0_68, %c0_69], %76 {strides = array<i32>} : memref<128x1xf32, #tpu.memory_space<vmem>>, vector<128x1xf32>,
      %cst_70 = arith.constant 0.000000e+00 : f32
      %78 = vector.broadcast %cst_70 : f32 to vector<128x1xf32>
      %c0_71 = arith.constant 0 : index
      %c0_72 = arith.constant 0 : index
      %79 = vector.load %arg14[%c0_71, %c0_72] : memref<128x1xf32, #tpu.memory_space<vmem>>, vector<128x1xf32>
      tpu.vector_store %arg14[%c0_71, %c0_72], %78 {strides = array<i32>} : memref<128x1xf32, #tpu.memory_space<vmem>>, vector<128x1xf32>,
      %cst_73 = arith.constant 0.000000e+00 : f32
      %80 = vector.broadcast %cst_73 : f32 to vector<128x128xf32>
      %c0_74 = arith.constant 0 : index
      %c0_75 = arith.constant 0 : index
      %81 = vector.load %arg15[%c0_74, %c0_75] : memref<128x128xf32, #tpu.memory_space<vmem>>, vector<128x128xf32>
      tpu.vector_store %arg15[%c0_74, %c0_75], %80 {strides = array<i32>} : memref<128x128xf32, #tpu.memory_space<vmem>>, vector<128x128xf32>,
    } else {
    }
    %c0 = arith.constant 0 : index
    %c0_1 = arith.constant 0 : index
    %c0_2 = arith.constant 0 : index
    %c0_3 = arith.constant 0 : index
    %3 = vector.load %arg5[%c0, %c0_1, %c0_2, %c0_3] : memref<1x2x128x64xbf16, #tpu.memory_space<vmem>>, vector<1x1x128x64xbf16>
    %4 = vector.shape_cast %3 : vector<1x1x128x64xbf16> to vector<128x64xbf16>
    %cst = arith.constant 1.806640e-01 : bf16
    %5 = vector.broadcast %cst : bf16 to vector<128x64xbf16>
    %6 = arith.mulf %4, %5 : vector<128x64xbf16>
    %c0_4 = arith.constant 0 : index
    %c1 = arith.constant 1 : index
    %c0_5 = arith.constant 0 : index
    %c0_6 = arith.constant 0 : index
    %7 = vector.load %arg5[%c0_4, %c1, %c0_5, %c0_6] : memref<1x2x128x64xbf16, #tpu.memory_space<vmem>>, vector<1x1x128x64xbf16>
    %8 = vector.shape_cast %7 : vector<1x1x128x64xbf16> to vector<128x64xbf16>
    %cst_7 = arith.constant 1.806640e-01 : bf16
    %9 = vector.broadcast %cst_7 : bf16 to vector<128x64xbf16>
    %10 = arith.mulf %8, %9 : vector<128x64xbf16>
    %c0_8 = arith.constant 0 : index
    %c0_9 = arith.constant 0 : index
    %c0_10 = arith.constant 0 : index
    %c0_11 = arith.constant 0 : index
    %11 = vector.load %arg6[%c0_8, %c0_9, %c0_10, %c0_11] : memref<1x2x128x64xbf16, #tpu.memory_space<vmem>>, vector<1x1x128x64xbf16>
    %12 = vector.shape_cast %11 : vector<1x1x128x64xbf16> to vector<128x64xbf16>
    %c0_12 = arith.constant 0 : index
    %c1_13 = arith.constant 1 : index
    %c0_14 = arith.constant 0 : index
    %c0_15 = arith.constant 0 : index
    %13 = vector.load %arg6[%c0_12, %c1_13, %c0_14, %c0_15] : memref<1x2x128x64xbf16, #tpu.memory_space<vmem>>, vector<1x1x128x64xbf16>
    %14 = vector.shape_cast %13 : vector<1x1x128x64xbf16> to vector<128x64xbf16>
    %c0_16 = arith.constant 0 : index
    %c0_17 = arith.constant 0 : index
    %c0_18 = arith.constant 0 : index
    %c0_19 = arith.constant 0 : index
    %15 = vector.load %arg7[%c0_16, %c0_17, %c0_18, %c0_19] : memref<1x1x128x128xbf16, #tpu.memory_space<vmem>>, vector<1x1x128x128xbf16>
    %16 = vector.shape_cast %15 : vector<1x1x128x128xbf16> to vector<128x128xbf16>
    %cst_20 = arith.constant dense<0.000000e+00> : vector<128x128xf32>
    %17 = tpu.matmul %6, %12, %cst_20 {dimension_numbers = #tpu.dot_dimension_numbers<[1], [1], [0], [0], [0, 0, 1, 0], [], []>} : vector<128x64xbf16>, vector<128x64xbf16>, vector<128x128xf32> -> vector<128x128xf32>
    %c0_21 = arith.constant 0 : index
    %c0_22 = arith.constant 0 : index
    %18 = vector.load %arg10[%c0_21, %c0_22] : memref<128x1xf32, #tpu.memory_space<vmem>>, vector<128x1xf32>
    %cst_23 = arith.constant dense<0xFF800000> : vector<128xf32>
    %19 = vector.multi_reduction <maximumf>, %17, %cst_23 [1] : vector<128x128xf32> to vector<128xf32>
    %20 = vector.shape_cast %19 : vector<128xf32> to vector<128x1xf32>
    %21 = arith.maximumf %18, %20 : vector<128x1xf32>
    %c0_24 = arith.constant 0 : index
    %c0_25 = arith.constant 0 : index
    %22 = vector.load %arg10[%c0_24, %c0_25] : memref<128x1xf32, #tpu.memory_space<vmem>>, vector<128x1xf32>
    %23 = arith.subf %22, %21 : vector<128x1xf32>
    %24 = math.exp2 %23 : vector<128x1xf32>
    %25 = vector.broadcast %21 : vector<128x1xf32> to vector<128x128xf32>
    %26 = arith.subf %17, %25 : vector<128x128xf32>
    %27 = math.exp2 %26 : vector<128x128xf32>
    %c0_26 = arith.constant 0 : index
    %c0_27 = arith.constant 0 : index
    %28 = vector.load %arg11[%c0_26, %c0_27] : memref<128x1xf32, #tpu.memory_space<vmem>>, vector<128x1xf32>
    %29 = arith.mulf %24, %28 : vector<128x1xf32>
    %cst_28 = arith.constant dense<0.000000e+00> : vector<128xf32>
    %30 = vector.multi_reduction <add>, %27, %cst_28 [1] : vector<128x128xf32> to vector<128xf32>
    %31 = vector.shape_cast %30 : vector<128xf32> to vector<128x1xf32>
    %32 = arith.addf %29, %31 : vector<128x1xf32>
    %c0_29 = arith.constant 0 : index
    %c0_30 = arith.constant 0 : index
    %33 = vector.load %arg11[%c0_29, %c0_30] : memref<128x1xf32, #tpu.memory_space<vmem>>, vector<128x1xf32>
    tpu.vector_store %arg11[%c0_29, %c0_30], %32 {strides = array<i32>} : memref<128x1xf32, #tpu.memory_space<vmem>>, vector<128x1xf32>,
    %c0_31 = arith.constant 0 : index
    %c0_32 = arith.constant 0 : index
    %34 = vector.load %arg12[%c0_31, %c0_32] : memref<128x128xf32, #tpu.memory_space<vmem>>, vector<128x128xf32>
    %35 = vector.broadcast %24 : vector<128x1xf32> to vector<128x128xf32>
    %36 = arith.mulf %35, %34 : vector<128x128xf32>
    %37 = arith.truncf %27 : vector<128x128xf32> to vector<128x128xbf16>
    %cst_33 = arith.constant dense<0.000000e+00> : vector<128x128xf32>
    %38 = tpu.matmul %37, %16, %cst_33 {dimension_numbers = #tpu.dot_dimension_numbers<[1], [0], [0], [1], [0, 0, 1, 1], [], []>} : vector<128x128xbf16>, vector<128x128xbf16>, vector<128x128xf32> -> vector<128x128xf32>
    %39 = arith.addf %36, %38 : vector<128x128xf32>
    %c0_34 = arith.constant 0 : index
    %c0_35 = arith.constant 0 : index
    %40 = vector.load %arg12[%c0_34, %c0_35] : memref<128x128xf32, #tpu.memory_space<vmem>>, vector<128x128xf32>
    tpu.vector_store %arg12[%c0_34, %c0_35], %39 {strides = array<i32>} : memref<128x128xf32, #tpu.memory_space<vmem>>, vector<128x128xf32>,
    %c0_36 = arith.constant 0 : index
    %c0_37 = arith.constant 0 : index
    %41 = vector.load %arg10[%c0_36, %c0_37] : memref<128x1xf32, #tpu.memory_space<vmem>>, vector<128x1xf32>
    tpu.vector_store %arg10[%c0_36, %c0_37], %21 {strides = array<i32>} : memref<128x1xf32, #tpu.memory_space<vmem>>, vector<128x1xf32>,
    %cst_38 = arith.constant dense<0.000000e+00> : vector<128x128xf32>
    %42 = tpu.matmul %10, %14, %cst_38 {dimension_numbers = #tpu.dot_dimension_numbers<[1], [1], [0], [0], [0, 0, 1, 0], [], []>} : vector<128x64xbf16>, vector<128x64xbf16>, vector<128x128xf32> -> vector<128x128xf32>
    %c0_39 = arith.constant 0 : index
    %c0_40 = arith.constant 0 : index
    %43 = vector.load %arg13[%c0_39, %c0_40] : memref<128x1xf32, #tpu.memory_space<vmem>>, vector<128x1xf32>
    %cst_41 = arith.constant dense<0xFF800000> : vector<128xf32>
    %44 = vector.multi_reduction <maximumf>, %42, %cst_41 [1] : vector<128x128xf32> to vector<128xf32>
    %45 = vector.shape_cast %44 : vector<128xf32> to vector<128x1xf32>
    %46 = arith.maximumf %43, %45 : vector<128x1xf32>
    %c0_42 = arith.constant 0 : index
    %c0_43 = arith.constant 0 : index
    %47 = vector.load %arg13[%c0_42, %c0_43] : memref<128x1xf32, #tpu.memory_space<vmem>>, vector<128x1xf32>
    %48 = arith.subf %47, %46 : vector<128x1xf32>
    %49 = math.exp2 %48 : vector<128x1xf32>
    %50 = vector.broadcast %46 : vector<128x1xf32> to vector<128x128xf32>
    %51 = arith.subf %42, %50 : vector<128x128xf32>
    %52 = math.exp2 %51 : vector<128x128xf32>
    %c0_44 = arith.constant 0 : index
    %c0_45 = arith.constant 0 : index
    %53 = vector.load %arg14[%c0_44, %c0_45] : memref<128x1xf32, #tpu.memory_space<vmem>>, vector<128x1xf32>
    %54 = arith.mulf %49, %53 : vector<128x1xf32>
    %cst_46 = arith.constant dense<0.000000e+00> : vector<128xf32>
    %55 = vector.multi_reduction <add>, %52, %cst_46 [1] : vector<128x128xf32> to vector<128xf32>
    %56 = vector.shape_cast %55 : vector<128xf32> to vector<128x1xf32>
    %57 = arith.addf %54, %56 : vector<128x1xf32>
    %c0_47 = arith.constant 0 : index
    %c0_48 = arith.constant 0 : index
    %58 = vector.load %arg14[%c0_47, %c0_48] : memref<128x1xf32, #tpu.memory_space<vmem>>, vector<128x1xf32>
    tpu.vector_store %arg14[%c0_47, %c0_48], %57 {strides = array<i32>} : memref<128x1xf32, #tpu.memory_space<vmem>>, vector<128x1xf32>,
    %c0_49 = arith.constant 0 : index
    %c0_50 = arith.constant 0 : index
    %59 = vector.load %arg15[%c0_49, %c0_50] : memref<128x128xf32, #tpu.memory_space<vmem>>, vector<128x128xf32>
    %60 = vector.broadcast %49 : vector<128x1xf32> to vector<128x128xf32>
    %61 = arith.mulf %60, %59 : vector<128x128xf32>
    %62 = arith.truncf %52 : vector<128x128xf32> to vector<128x128xbf16>
    %cst_51 = arith.constant dense<0.000000e+00> : vector<128x128xf32>
    %63 = tpu.matmul %62, %16, %cst_51 {dimension_numbers = #tpu.dot_dimension_numbers<[1], [0], [0], [1], [0, 0, 1, 1], [], []>} : vector<128x128xbf16>, vector<128x128xbf16>, vector<128x128xf32> -> vector<128x128xf32>
    %64 = arith.addf %61, %63 : vector<128x128xf32>
    %c0_52 = arith.constant 0 : index
    %c0_53 = arith.constant 0 : index
    %65 = vector.load %arg15[%c0_52, %c0_53] : memref<128x128xf32, #tpu.memory_space<vmem>>, vector<128x128xf32>
    tpu.vector_store %arg15[%c0_52, %c0_53], %64 {strides = array<i32>} : memref<128x128xf32, #tpu.memory_space<vmem>>, vector<128x128xf32>,
    %c0_54 = arith.constant 0 : index
    %c0_55 = arith.constant 0 : index
    %66 = vector.load %arg13[%c0_54, %c0_55] : memref<128x1xf32, #tpu.memory_space<vmem>>, vector<128x1xf32>
    tpu.vector_store %arg13[%c0_54, %c0_55], %46 {strides = array<i32>} : memref<128x1xf32, #tpu.memory_space<vmem>>, vector<128x1xf32>,
    %c0_i32_56 = arith.constant 0 : i32
    %67 = arith.cmpi eq, %arg3, %c0_i32_56 : i32
    %68 = arith.extui %67 : i1 to i32
    %c0_i32_57 = arith.constant 0 : i32
    %69 = arith.cmpi ne, %68, %c0_i32_57 : i32
    scf.if %69 {
      %c0_58 = arith.constant 0 : index
      %c0_59 = arith.constant 0 : index
      %70 = vector.load %arg11[%c0_58, %c0_59] : memref<128x1xf32, #tpu.memory_space<vmem>>, vector<128x1xf32>
      %71 = tpu.reciprocal %70 {approx = true} : vector<128x1xf32> -> vector<128x1xf32>
      %c0_60 = arith.constant 0 : index
      %c0_61 = arith.constant 0 : index
      %72 = vector.load %arg11[%c0_60, %c0_61] : memref<128x1xf32, #tpu.memory_space<vmem>>, vector<128x1xf32>
      %73 = arith.mulf %72, %71 : vector<128x1xf32>
      %cst_62 = arith.constant 2.000000e+00 : f32
      %74 = vector.broadcast %cst_62 : f32 to vector<128x1xf32>
      %75 = arith.subf %74, %73 : vector<128x1xf32>
      %76 = arith.mulf %71, %75 : vector<128x1xf32>
      %c0_63 = arith.constant 0 : index
      %c0_64 = arith.constant 0 : index
      %77 = vector.load %arg14[%c0_63, %c0_64] : memref<128x1xf32, #tpu.memory_space<vmem>>, vector<128x1xf32>
      %78 = tpu.reciprocal %77 {approx = true} : vector<128x1xf32> -> vector<128x1xf32>
      %c0_65 = arith.constant 0 : index
      %c0_66 = arith.constant 0 : index
      %79 = vector.load %arg14[%c0_65, %c0_66] : memref<128x1xf32, #tpu.memory_space<vmem>>, vector<128x1xf32>
      %80 = arith.mulf %79, %78 : vector<128x1xf32>
      %cst_67 = arith.constant 2.000000e+00 : f32
      %81 = vector.broadcast %cst_67 : f32 to vector<128x1xf32>
      %82 = arith.subf %81, %80 : vector<128x1xf32>
      %83 = arith.mulf %78, %82 : vector<128x1xf32>
      %c0_68 = arith.constant 0 : index
      %c0_69 = arith.constant 0 : index
      %84 = vector.load %arg12[%c0_68, %c0_69] : memref<128x128xf32, #tpu.memory_space<vmem>>, vector<128x128xf32>
      %85 = vector.broadcast %76 : vector<128x1xf32> to vector<128x128xf32>
      %86 = arith.mulf %84, %85 : vector<128x128xf32>
      %c0_70 = arith.constant 0 : index
      %c0_71 = arith.constant 0 : index
      %87 = vector.load %arg15[%c0_70, %c0_71] : memref<128x128xf32, #tpu.memory_space<vmem>>, vector<128x128xf32>
      %88 = vector.broadcast %83 : vector<128x1xf32> to vector<128x128xf32>
      %89 = arith.mulf %87, %88 : vector<128x128xf32>
      %c0_72 = arith.constant 0 : index
      %90 = memref.load %arg4[%c0_72] : memref<1xf32, #tpu.memory_space<smem>>
      %91 = arith.truncf %90 : f32 to bf16
      %92 = arith.truncf %86 : vector<128x128xf32> to vector<128x128xbf16>
      %93 = arith.truncf %89 : vector<128x128xf32> to vector<128x128xbf16>
      %94 = vector.broadcast %91 : bf16 to vector<128x128xbf16>
      %95 = arith.mulf %94, %93 : vector<128x128xbf16>
      %96 = arith.subf %92, %95 : vector<128x128xbf16>
      %97 = arith.extf %96 : vector<128x128xbf16> to vector<128x128xf32>
      %98 = arith.mulf %97, %97 : vector<128x128xf32>
      %cst_73 = arith.constant dense<0.000000e+00> : vector<128xf32>
      %99 = vector.multi_reduction <add>, %98, %cst_73 [1] : vector<128x128xf32> to vector<128xf32>
      %100 = vector.shape_cast %99 : vector<128xf32> to vector<128x1xf32>
      %cst_74 = arith.constant 1.280000e+02 : f32
      %101 = vector.broadcast %cst_74 : f32 to vector<128x1xf32>
      %102 = arith.divf %100, %101 : vector<128x1xf32>
      %cst_75 = arith.constant 9.99999974E-6 : f32
      %103 = vector.broadcast %cst_75 : f32 to vector<128x1xf32>
      %104 = arith.addf %102, %103 : vector<128x1xf32>
      %105 = math.rsqrt %104 : vector<128x1xf32>
      %106 = vector.broadcast %105 : vector<128x1xf32> to vector<128x128xf32>
      %107 = arith.mulf %97, %106 : vector<128x128xf32>
      %c0_76 = arith.constant 0 : index
      %c0_77 = arith.constant 0 : index
      %108 = vector.load %arg8[%c0_76, %c0_77] : memref<1x128xf32, #tpu.memory_space<vmem>>, vector<1x128xf32>
      %109 = vector.shape_cast %108 : vector<1x128xf32> to vector<128xf32>
      %110 = arith.truncf %107 : vector<128x128xf32> to vector<128x128xbf16>
      %111 = arith.extf %110 : vector<128x128xbf16> to vector<128x128xf32>
      %112 = vector.shape_cast %109 : vector<128xf32> to vector<1x128xf32>
      %113 = vector.broadcast %112 : vector<1x128xf32> to vector<128x128xf32>
      %114 = arith.mulf %113, %111 : vector<128x128xf32>
      %c0_78 = arith.constant 0 : index
      %c0_79 = arith.constant 0 : index
      %c0_80 = arith.constant 0 : index
      %c0_81 = arith.constant 0 : index
      %115 = vector.load %arg9[%c0_78, %c0_79, %c0_80, %c0_81] : memref<1x1x128x128xf32, #tpu.memory_space<vmem>>, vector<1x1x128x128xf32>
      %116 = vector.shape_cast %115 : vector<1x1x128x128xf32> to vector<128x128xf32>
      %117 = vector.shape_cast %114 : vector<128x128xf32> to vector<1x1x128x128xf32>
      tpu.vector_store %arg9[%c0_78, %c0_79, %c0_80, %c0_81], %117 {strides = array<i32>} : memref<1x1x128x128xf32, #tpu.memory_space<vmem>>, vector<1x1x128x128xf32>,
    } else {
    }
    return
  }
  func.func @transform_0(%arg0: i32, %arg1: i32, %arg2: i32, %arg3: i32) -> i32 {
    %c0_i32 = arith.constant 0 : i32
    %c0_i32_0 = arith.constant 0 : i32
    return %c0_i32 : i32
  }
  func.func @transform_1(%arg0: i32, %arg1: i32, %arg2: i32, %arg3: i32) -> (i32, i32, i32, i32) {
    %c0_i32 = arith.constant 0 : i32
    %c0_i32_0 = arith.constant 0 : i32
    return %arg0, %arg1, %arg2, %c0_i32 : i32, i32, i32, i32
  }
  func.func @transform_2(%arg0: i32, %arg1: i32, %arg2: i32, %arg3: i32) -> (i32, i32, i32, i32) {
    %c0_i32 = arith.constant 0 : i32
    %c0_i32_0 = arith.constant 0 : i32
    return %arg0, %arg1, %arg3, %c0_i32 : i32, i32, i32, i32
  }
  func.func @transform_3(%arg0: i32, %arg1: i32, %arg2: i32, %arg3: i32) -> (i32, i32, i32, i32) {
    %c0_i32 = arith.constant 0 : i32
    %c0_i32_0 = arith.constant 0 : i32
    return %arg0, %arg1, %arg3, %c0_i32 : i32, i32, i32, i32
  }
  func.func @transform_4(%arg0: i32, %arg1: i32, %arg2: i32, %arg3: i32) -> (i32, i32) {
    %c0_i32 = arith.constant 0 : i32
    %c0_i32_0 = arith.constant 0 : i32
    %c0_i32_1 = arith.constant 0 : i32
    return %c0_i32, %c0_i32_0 : i32, i32
  }
  func.func @transform_5(%arg0: i32, %arg1: i32, %arg2: i32, %arg3: i32) -> (i32, i32, i32, i32) {
    %c0_i32 = arith.constant 0 : i32
    %c0_i32_0 = arith.constant 0 : i32
    return %arg0, %arg1, %arg2, %c0_i32 : i32, i32, i32, i32
  }
}

</mosaic_0001>

<llo_original>
// kernel: tpu_custom_call.1
$region0: #{tpu_custom_call.1}
  #allocation0 [shape = 'u32[]', space=smem, size = 0x4, offset = 0x4, fixed_abs, tag = 'smem constant byte address 0x4 - core index']
  #allocation1 [shape = 'u32[144,128]{1,0:T(1,128)}', space=vmem, size = 0x12000, scoped, tag = 'internal scratch']
  #allocation2 [shape = 'f32[128,1]{1,0:T(8,128)}', space=vmem, size = 0x10000, scoped, tag = 'scratch operand']
  #allocation3 [shape = 'f32[128,1]{1,0:T(8,128)}', space=vmem, size = 0x10000, scoped, tag = 'scratch operand']
  #allocation4 [shape = 'f32[128,128]{1,0:T(8,128)}', space=vmem, size = 0x10000, scoped, tag = 'scratch operand']
  #allocation5 [shape = 'f32[128,1]{1,0:T(8,128)}', space=vmem, size = 0x10000, scoped, tag = 'scratch operand']
  #allocation6 [shape = 'f32[128,1]{1,0:T(8,128)}', space=vmem, size = 0x10000, scoped, tag = 'scratch operand']
  #allocation7 [shape = 'f32[128,128]{1,0:T(8,128)}', space=vmem, size = 0x10000, scoped, tag = 'scratch operand']
  #allocation8 [shape = 'f32[1]{0:T(128)S(6)}', space=smem, size = 0x200, scoped, tag = 'scoped memory for tpu_custom_call.1']
  %s0 = inlined_call_operand.<no memory space> [shape: f32[1], index: 0, kind: input, shape index: {}]
  %s1 = inlined_call_operand.vmem [shape: bf16[2,4,128,64], index: 1, kind: input, shape index: {}]
  %s2 = inlined_call_operand.vmem [shape: bf16[2,4,128,64], index: 2, kind: input, shape index: {}]
  %s3 = inlined_call_operand.vmem [shape: bf16[2,2,128,128], index: 3, kind: input, shape index: {}]
  %s4 = inlined_call_operand.vmem [shape: f32[1,128], index: 4, kind: input, shape index: {}]
  %s5 = inlined_call_operand.hbm [shape: f32[2,2,128,128], index: 5, kind: output, shape index: {}]
  %s6 = sld [smem:[#allocation0]]
  $region61: #{tpu_custom_call.1} parent=0
    _
  %s8 = ssub.s32 1, %s6
  %s9 = scalar_select 0, %s8, %s6
  %10 = sst [smem:[#allocation8]] %s0
  $region1: #{tpu_custom_call.1} parent=0
    #allocation9 [shape = 'u8[131072]{0}', space=vmem, size = 0x20000, scoped, tag = 'output window, operand 0']
    #allocation10 [shape = 's32[2]{0}', space=sflag, size = 0x8, scoped, tag = 'scoped memory for tpu_custom_call.1']
    %11 = vsyncpa [#allocation10], 0
    %s12 = scalar_lea.sflag [#allocation10], 1
    %13 = vsyncpa %s12, 0
    loop: start=0, step=1, limit=6
    $region2: #{tpu_custom_call.1} parent=1 // loop_pre_header
      _
    $region3: #{tpu_custom_call.1} parent=1 // loop_header
      %s15 = sphi 0, %s19
      %p16 = scmp.ge.s32.totalorder %s15, 6
      %s22 = sphi 0, %s48
      %s23 = sphi 0, %s44
      %s24 = sphi 0, %s40
      %s25 = sphi 0, %s36
      %s26 = sphi 0, %s22
      %s27 = sphi 0, %s23
      %s28 = sphi 0, %s24
      %s29 = sphi 0, %s25
      %s30 = sphi 0, %s26
      %s31 = sphi 0, %s27
      %s32 = sphi 0, %s28
      %s33 = sphi 0, %s29
      %s49 = sphi 0, %s49
      %s51 = sphi 0, %s49
      %s52 = sphi 0, %s51
      %s66 = sphi 0, %s52
      %s76 = sphi 0, %s78
      %s79 = sphi 0, %s76
      %s80 = sphi 0, %s79
      %s96 = sphi 0, %s80
      %s106 = sphi 0, %s108
      %s109 = sphi 0, %s106
      %s110 = sphi 0, %s109
      %s126 = sphi 0, %s110
      %s136 = sphi 0, %s138
      %s139 = sphi 0, %s136
      %s140 = sphi 0, %s139
      %s156 = sphi 0, %s140
      %s160 = sphi 0, %s160
      %s162 = sphi 0, %s160
      %s163 = sphi 0, %s162
      %s177 = sphi 0, %s163
      %s187 = sphi 0, %s189
      %s190 = sphi 0, %s187
      %s191 = sphi 0, %s190
      %s207 = sphi 0, %s191
    $region4: #{tpu_custom_call.1} parent=1 // loop_header_branch
      %18 = sbr.rel (%p16) target = $region8
    $region5: #{tpu_custom_call.1} parent=1 // loop_body
      %s20 = ssub.s32 %s15, 1
      %s21 = ssub.s32 %s15, 2
      %s34 = sadd.s32 1, %s25
      %p35 = scmp.ge.s32.totalorder %s34, 1
      %s36 = scalar_select %p35, 0, %s34
      %s37 = sadd.s32 1, %s24
      %s38 = scalar_select %p35, %s37, %s24
      %p39 = scmp.ge.s32.totalorder %s38, 1
      %s40 = scalar_select %p39, 0, %s38
      %s41 = sadd.s32 1, %s23
      %s42 = scalar_select %p39, %s41, %s23
      %p43 = scmp.ge.s32.totalorder %s42, 2
      %s44 = scalar_select %p43, 0, %s42
      %s45 = sadd.s32 1, %s22
      %s46 = scalar_select %p43, %s45, %s22
      %p47 = scmp.ge.s32.totalorder %s46, 2
      %s48 = scalar_select %p47, 0, %s46
      %s50 = sadd.s32 %s49, 1
      %p53 = scmp.eq.s32.totalorder %s15, 3
      %p54 = scmp.ne.s32.totalorder %s49, %s51
      %p55 = scmp.eq.s32.totalorder %s15, 0
      %p56 = por %p54, %p55
      %p57 = scmp.ne.s32.totalorder %s49, %s51
      %p58 = scmp.eq.s32.totalorder %s20, 3
      %p59 = por %p57, %p58
      %p60 = scmp.ne.s32.totalorder %s51, %s52
      %p61 = scmp.eq.s32.totalorder %s20, 0
      %p62 = por %p60, %p61
      %p63 = scmp.ne.s32.totalorder %s51, %s52
      %p64 = scmp.eq.s32.totalorder %s21, 3
      %p65 = por %p63, %p64
      %p67 = scmp.ne.s32.totalorder %s52, %s66
      %p68 = scmp.eq.s32.totalorder %s21, 0
      %p69 = por %p67, %p68
      %s70 = ssub.s32 %s22, %s48
      %s71 = ssub.s32 %s23, %s44
      %s72 = sor.u32 %s70, %s71
      %s73 = ssub.s32 %s24, %s40
      %s74 = sor.u32 %s72, %s73
      %p75 = scmp.eq.s32.totalorder %s74, 0
      %s77 = sadd.s32 %s76, 1
      %s78 = scalar_select %p75, %s76, %s77
      %p81 = pneg %p75
      %p82 = scmp.eq.s32.totalorder %s15, 3
      %p83 = por %p81, %p82
      %p84 = scmp.ne.s32.totalorder %s76, %s79
      %p85 = scmp.eq.s32.totalorder %s15, 0
      %p86 = por %p84, %p85
      %p87 = scmp.ne.s32.totalorder %s76, %s79
      %p88 = scmp.eq.s32.totalorder %s20, 3
      %p89 = por %p87, %p88
      %p90 = scmp.ne.s32.totalorder %s79, %s80
      %p91 = scmp.eq.s32.totalorder %s20, 0
      %p92 = por %p90, %p91
      %p93 = scmp.ne.s32.totalorder %s79, %s80
      %p94 = scmp.eq.s32.totalorder %s21, 3
      %p95 = por %p93, %p94
      %p97 = scmp.ne.s32.totalorder %s80, %s96
      %p98 = scmp.eq.s32.totalorder %s21, 0
      %p99 = por %p97, %p98
      %s100 = ssub.s32 %s22, %s48
      %s101 = ssub.s32 %s23, %s44
      %s102 = sor.u32 %s100, %s101
      %s103 = ssub.s32 %s25, %s36
      %s104 = sor.u32 %s102, %s103
      %p105 = scmp.eq.s32.totalorder %s104, 0
      %s107 = sadd.s32 %s106, 1
      %s108 = scalar_select %p105, %s106, %s107
      %p111 = pneg %p105
      %p112 = scmp.eq.s32.totalorder %s15, 3
      %p113 = por %p111, %p112
      %p114 = scmp.ne.s32.totalorder %s106, %s109
      %p115 = scmp.eq.s32.totalorder %s15, 0
      %p116 = por %p114, %p115
      %p117 = scmp.ne.s32.totalorder %s106, %s109
      %p118 = scmp.eq.s32.totalorder %s20, 3
      %p119 = por %p117, %p118
      %p120 = scmp.ne.s32.totalorder %s109, %s110
      %p121 = scmp.eq.s32.totalorder %s20, 0
      %p122 = por %p120, %p121
      %p123 = scmp.ne.s32.totalorder %s109, %s110
      %p124 = scmp.eq.s32.totalorder %s21, 3
      %p125 = por %p123, %p124
      %p127 = scmp.ne.s32.totalorder %s110, %s126
      %p128 = scmp.eq.s32.totalorder %s21, 0
      %p129 = por %p127, %p128
      %s130 = ssub.s32 %s22, %s48
      %s131 = ssub.s32 %s23, %s44
      %s132 = sor.u32 %s130, %s131
      %s133 = ssub.s32 %s25, %s36
      %s134 = sor.u32 %s132, %s133
      %p135 = scmp.eq.s32.totalorder %s134, 0
      %s137 = sadd.s32 %s136, 1
      %s138 = scalar_select %p135, %s136, %s137
      %p141 = pneg %p135
      %p142 = scmp.eq.s32.totalorder %s15, 3
      %p143 = por %p141, %p142
      %p144 = scmp.ne.s32.totalorder %s136, %s139
      %p145 = scmp.eq.s32.totalorder %s15, 0
      %p146 = por %p144, %p145
      %p147 = scmp.ne.s32.totalorder %s136, %s139
      %p148 = scmp.eq.s32.totalorder %s20, 3
      %p149 = por %p147, %p148
      %p150 = scmp.ne.s32.totalorder %s139, %s140
      %p151 = scmp.eq.s32.totalorder %s20, 0
      %p152 = por %p150, %p151
      %p153 = scmp.ne.s32.totalorder %s139, %s140
      %p154 = scmp.eq.s32.totalorder %s21, 3
      %p155 = por %p153, %p154
      %p157 = scmp.ne.s32.totalorder %s140, %s156
      %p158 = scmp.eq.s32.totalorder %s21, 0
      %p159 = por %p157, %p158
      %s161 = sadd.s32 %s160, 1
      %p164 = scmp.eq.s32.totalorder %s15, 3
      %p165 = scmp.ne.s32.totalorder %s160, %s162
      %p166 = scmp.eq.s32.totalorder %s15, 0
      %p167 = por %p165, %p166
      %p168 = scmp.ne.s32.totalorder %s160, %s162
      %p169 = scmp.eq.s32.totalorder %s20, 3
      %p170 = por %p168, %p169
      %p171 = scmp.ne.s32.totalorder %s162, %s163
      %p172 = scmp.eq.s32.totalorder %s20, 0
      %p173 = por %p171, %p172
      %p174 = scmp.ne.s32.totalorder %s162, %s163
      %p175 = scmp.eq.s32.totalorder %s21, 3
      %p176 = por %p174, %p175
      %p178 = scmp.ne.s32.totalorder %s163, %s177
      %p179 = scmp.eq.s32.totalorder %s21, 0
      %p180 = por %p178, %p179
      %s181 = ssub.s32 %s22, %s48
      %s182 = ssub.s32 %s23, %s44
      %s183 = sor.u32 %s181, %s182
      %s184 = ssub.s32 %s24, %s40
      %s185 = sor.u32 %s183, %s184
      %p186 = scmp.eq.s32.totalorder %s185, 0
      %s188 = sadd.s32 %s187, 1
      %s189 = scalar_select %p186, %s187, %s188
      %p192 = pneg %p186
      %p193 = scmp.eq.s32.totalorder %s15, 3
      %p194 = por %p192, %p193
      %p195 = scmp.ne.s32.totalorder %s187, %s190
      %p196 = scmp.eq.s32.totalorder %s15, 0
      %p197 = por %p195, %p196
      %p198 = scmp.ne.s32.totalorder %s187, %s190
      %p199 = scmp.eq.s32.totalorder %s20, 3
      %p200 = por %p198, %p199
      %p201 = scmp.ne.s32.totalorder %s190, %s191
      %p202 = scmp.eq.s32.totalorder %s20, 0
      %p203 = por %p201, %p202
      %p204 = scmp.ne.s32.totalorder %s190, %s191
      %p205 = scmp.eq.s32.totalorder %s21, 3
      %p206 = por %p204, %p205
      %p208 = scmp.ne.s32.totalorder %s191, %s207
      %p209 = scmp.eq.s32.totalorder %s21, 0
      %p210 = por %p208, %p209
      %p211 = scmp.le.s32.totalorder 1, %s15
      %p212 = scmp.lt.s32.totalorder %s15, 5
      %p213 = pnand %p211, %p212
      %p214 = pneg %p213
      // Predicated region
      $region9: #{tpu_custom_call.1} parent=5 // pred_check
        _
      $region10: #{tpu_custom_call.1} parent=5 // pred_check_branch
        %216 = sbr.rel (%p213) target = $region12
      $region11: #{tpu_custom_call.1} parent=5 // pred_region
        %s217 = ssub.s32 %s15, 1
        // Predicated region
        $region13: #{tpu_custom_call.1} parent=11 // pred_check
          %p218 = pneg %p62
        $region14: #{tpu_custom_call.1} parent=11 // pred_check_branch
          %220 = sbr.rel (%p218) target = $region16
        $region15: #{tpu_custom_call.1} parent=11 // pred_region
          _
        $region16: #{tpu_custom_call.1} parent=11 // pred_fallthru
          _
        // Predicated region
        $region17: #{tpu_custom_call.1} parent=11 // pred_check
          %p221 = pneg %p173
        $region18: #{tpu_custom_call.1} parent=11 // pred_check_branch
          %223 = sbr.rel (%p221) target = $region20
        $region19: #{tpu_custom_call.1} parent=11 // pred_region
          _
        $region20: #{tpu_custom_call.1} parent=11 // pred_fallthru
          _
      $region12: #{tpu_custom_call.1} parent=5 // pred_fallthru
        _
      %p224 = scmp.lt.s32.totalorder %s15, 4
      // Predicated region
      $region21: #{tpu_custom_call.1} parent=5 // pred_check
        %p225 = pneg %p224
      $region22: #{tpu_custom_call.1} parent=5 // pred_check_branch
        %227 = sbr.rel (%p225) target = $region24
      $region23: #{tpu_custom_call.1} parent=5 // pred_region
        // Predicated region
        $region25: #{tpu_custom_call.1} parent=23 // pred_check
          %p228 = pneg %p86
        $region26: #{tpu_custom_call.1} parent=23 // pred_check_branch
          %230 = sbr.rel (%p228) target = $region28
        $region27: #{tpu_custom_call.1} parent=23 // pred_region
          %s231 = smul.u32 2, %s23
          %s232 = smul.u32 16, %s24
          %p233 = scmp.lt.s32.totalorder %s22, 1
          %s234 = scalar_select %p233, %s22, 1
          %p235 = scmp.lt.s32.totalorder %s231, 3
          %s236 = scalar_select %p235, %s231, 3
          %p237 = scmp.lt.s32.totalorder %s232, 15
          %s238 = scalar_select %p237, %s232, 15
          %s239 = smul.addr %s236, 16
          %s240 = sadd.s32 %s238, %s239
          %s241 = smul.addr %s234, 64
          %s242 = sadd.s32 %s240, %s241
          %s243 = smul.addr %s242, 4
          %s244 = scalar_lea.vmem %s1, %s243
          %s245 = smul.u32 2, %s23
          %s246 = smul.u32 16, %s24
        $region28: #{tpu_custom_call.1} parent=23 // pred_fallthru
          _
        // Predicated region
        $region29: #{tpu_custom_call.1} parent=23 // pred_check
          %p247 = pneg %p116
        $region30: #{tpu_custom_call.1} parent=23 // pred_check_branch
          %249 = sbr.rel (%p247) target = $region32
        $region31: #{tpu_custom_call.1} parent=23 // pred_region
          %s250 = smul.u32 2, %s23
          %s251 = smul.u32 16, %s25
          %p252 = scmp.lt.s32.totalorder %s22, 1
          %s253 = scalar_select %p252, %s22, 1
          %p254 = scmp.lt.s32.totalorder %s250, 3
          %s255 = scalar_select %p254, %s250, 3
          %p256 = scmp.lt.s32.totalorder %s251, 15
          %s257 = scalar_select %p256, %s251, 15
          %s258 = smul.addr %s255, 16
          %s259 = sadd.s32 %s257, %s258
          %s260 = smul.addr %s253, 64
          %s261 = sadd.s32 %s259, %s260
          %s262 = smul.addr %s261, 4
          %s263 = scalar_lea.vmem %s2, %s262
          %s264 = smul.u32 2, %s23
          %s265 = smul.u32 16, %s25
        $region32: #{tpu_custom_call.1} parent=23 // pred_fallthru
          _
        // Predicated region
        $region33: #{tpu_custom_call.1} parent=23 // pred_check
          %p266 = pneg %p146
        $region34: #{tpu_custom_call.1} parent=23 // pred_check_branch
          %268 = sbr.rel (%p266) target = $region36
        $region35: #{tpu_custom_call.1} parent=23 // pred_region
          %s269 = smul.u32 16, %s25
          %p270 = scmp.lt.s32.totalorder %s22, 1
          %s271 = scalar_select %p270, %s22, 1
          %p272 = scmp.lt.s32.totalorder %s23, 1
          %s273 = scalar_select %p272, %s23, 1
          %p274 = scmp.lt.s32.totalorder %s269, 15
          %s275 = scalar_select %p274, %s269, 15
          %s276 = smul.addr %s273, 16
          %s277 = sadd.s32 %s275, %s276
          %s278 = smul.addr %s271, 32
          %s279 = sadd.s32 %s277, %s278
          %s280 = smul.addr %s279, 4
          %s281 = scalar_lea.vmem %s3, %s280
          %s282 = smul.u32 16, %s25
        $region36: #{tpu_custom_call.1} parent=23 // pred_fallthru
          _
      $region24: #{tpu_custom_call.1} parent=5 // pred_fallthru
        _
      %p283 = scmp.le.s32.totalorder 1, %s15
      %p284 = scmp.lt.s32.totalorder %s15, 5
      %p285 = pnand %p283, %p284
      %p286 = pneg %p285
      // Predicated region
      $region37: #{tpu_custom_call.1} parent=5 // pred_check
        _
      $region38: #{tpu_custom_call.1} parent=5 // pred_check_branch
        %288 = sbr.rel (%p285) target = $region40
      $region39: #{tpu_custom_call.1} parent=5 // pred_region
        %s289 = ssub.s32 %s15, 1
        %p290 = pneg %p62
        %p291 = pneg %p59
        %s292 = smul.u32 2, %s27
        %s293 = smul.u32 16, %s28
        %p294 = scmp.lt.s32.totalorder %s26, 1
        %s295 = scalar_select %p294, %s26, 1
        %p296 = scmp.lt.s32.totalorder %s292, 3
        %s297 = scalar_select %p296, %s292, 3
        %p298 = scmp.lt.s32.totalorder %s293, 15
        %s299 = scalar_select %p298, %s293, 15
        %s300 = smul.addr %s297, 16
        %s301 = sadd.s32 %s299, %s300
        %s302 = smul.addr %s295, 64
        %s303 = sadd.s32 %s301, %s302
        %s304 = smul.addr %s303, 4
        %s305 = scalar_lea.vmem %s1, %s304
        %p306 = pneg %p92
        %p307 = pneg %p89
        %s308 = smul.u32 2, %s27
        %s309 = smul.u32 16, %s29
        %p310 = scmp.lt.s32.totalorder %s26, 1
        %s311 = scalar_select %p310, %s26, 1
        %p312 = scmp.lt.s32.totalorder %s308, 3
        %s313 = scalar_select %p312, %s308, 3
        %p314 = scmp.lt.s32.totalorder %s309, 15
        %s315 = scalar_select %p314, %s309, 15
        %s316 = smul.addr %s313, 16
        %s317 = sadd.s32 %s315, %s316
        %s318 = smul.addr %s311, 64
        %s319 = sadd.s32 %s317, %s318
        %s320 = smul.addr %s319, 4
        %s321 = scalar_lea.vmem %s2, %s320
        %p322 = pneg %p122
        %p323 = pneg %p119
        %s324 = smul.u32 16, %s29
        %p325 = scmp.lt.s32.totalorder %s26, 1
        %s326 = scalar_select %p325, %s26, 1
        %p327 = scmp.lt.s32.totalorder %s27, 1
        %s328 = scalar_select %p327, %s27, 1
        %p329 = scmp.lt.s32.totalorder %s324, 15
        %s330 = scalar_select %p329, %s324, 15
        %s331 = smul.addr %s328, 16
        %s332 = sadd.s32 %s330, %s331
        %s333 = smul.addr %s326, 32
        %s334 = sadd.s32 %s332, %s333
        %s335 = smul.addr %s334, 4
        %s336 = scalar_lea.vmem %s3, %s335
        %p337 = pneg %p152
        %p338 = pneg %p149
        %p339 = pneg %p173
        %p340 = pneg %p170
        %p341 = pneg %p203
        %p342 = pneg %p200
        %s343 = sand.u32 %s190, 1
        %s344 = scalar_lea.sflag [#allocation10], %s343
        %s345 = sand.u32 %s190, 1
        %s346 = smul.addr %s345, 128
        %s347 = scalar_lea.vmem [#allocation9], %s346
        %s348 = smul.u32 2, %s27
        %s349 = smul.u32 16, %s28
        %p350 = scmp.lt.s32.totalorder %s26, 1
        %s351 = scalar_select %p350, %s26, 1
        %p352 = scmp.lt.s32.totalorder %s348, 3
        %s353 = scalar_select %p352, %s348, 3
        %p354 = scmp.lt.s32.totalorder %s349, 15
        %s355 = scalar_select %p354, %s349, 15
        %s356 = smul.addr %s353, 16
        %s357 = sadd.s32 %s355, %s356
        %s358 = smul.addr %s351, 64
        %s359 = sadd.s32 %s357, %s358
        %s360 = smul.addr %s359, 4
        %s361 = scalar_lea.vmem %s1, %s360
        %s362 = smul.u32 2, %s27
        %s363 = smul.u32 16, %s28
        %s364 = smul.u32 2, %s27
        %s365 = smul.u32 16, %s29
        %p366 = scmp.lt.s32.totalorder %s26, 1
        %s367 = scalar_select %p366, %s26, 1
        %p368 = scmp.lt.s32.totalorder %s364, 3
        %s369 = scalar_select %p368, %s364, 3
        %p370 = scmp.lt.s32.totalorder %s365, 15
        %s371 = scalar_select %p370, %s365, 15
        %s372 = smul.addr %s369, 16
        %s373 = sadd.s32 %s371, %s372
        %s374 = smul.addr %s367, 64
        %s375 = sadd.s32 %s373, %s374
        %s376 = smul.addr %s375, 4
        %s377 = scalar_lea.vmem %s2, %s376
        %s378 = smul.u32 2, %s27
        %s379 = smul.u32 16, %s29
        %s380 = smul.u32 16, %s29
        %p381 = scmp.lt.s32.totalorder %s26, 1
        %s382 = scalar_select %p381, %s26, 1
        %p383 = scmp.lt.s32.totalorder %s27, 1
        %s384 = scalar_select %p383, %s27, 1
        %p385 = scmp.lt.s32.totalorder %s380, 15
        %s386 = scalar_select %p385, %s380, 15
        %s387 = smul.addr %s384, 16
        %s388 = sadd.s32 %s386, %s387
        %s389 = smul.addr %s382, 32
        %s390 = sadd.s32 %s388, %s389
        %s391 = smul.addr %s390, 4
        %s392 = scalar_lea.vmem %s3, %s391
        %s393 = smul.u32 16, %s29
        %s394 = smul.u32 16, %s28
        %p397 = scmp.eq.s32.totalorder %s29, 0
        // Predicated region
        $region41: #{tpu_custom_call.1} parent=39 // pred_check
          %p398 = pneg %p397
        $region42: #{tpu_custom_call.1} parent=39 // pred_check_branch
          %400 = sbr.rel (%p398) target = $region44
        $region43: #{tpu_custom_call.1} parent=39 // pred_region
          %vm401 = vcmask 7168
          %402 = vst.msk [vmem:[#allocation2] sm:$0xff] %vm401, -1e+30
          %403 = vst.msk [vmem:[#allocation2 + $0x8] sm:$0xff] %vm401, -1e+30
          %404 = vst.msk [vmem:[#allocation2 + $0x10] sm:$0xff] %vm401, -1e+30
          %405 = vst.msk [vmem:[#allocation2 + $0x18] sm:$0xff] %vm401, -1e+30
          %406 = vst.msk [vmem:[#allocation2 + $0x20] sm:$0xff] %vm401, -1e+30
          %407 = vst.msk [vmem:[#allocation2 + $0x28] sm:$0xff] %vm401, -1e+30
          %408 = vst.msk [vmem:[#allocation2 + $0x30] sm:$0xff] %vm401, -1e+30
          %409 = vst.msk [vmem:[#allocation2 + $0x38] sm:$0xff] %vm401, -1e+30
          %410 = vst.msk [vmem:[#allocation2 + $0x40] sm:$0xff] %vm401, -1e+30
          %411 = vst.msk [vmem:[#allocation2 + $0x48] sm:$0xff] %vm401, -1e+30
          %412 = vst.msk [vmem:[#allocation2 + $0x50] sm:$0xff] %vm401, -1e+30
          %413 = vst.msk [vmem:[#allocation2 + $0x58] sm:$0xff] %vm401, -1e+30
          %414 = vst.msk [vmem:[#allocation2 + $0x60] sm:$0xff] %vm401, -1e+30
          %415 = vst.msk [vmem:[#allocation2 + $0x68] sm:$0xff] %vm401, -1e+30
          %416 = vst.msk [vmem:[#allocation2 + $0x70] sm:$0xff] %vm401, -1e+30
          %417 = vst.msk [vmem:[#allocation2 + $0x78] sm:$0xff] %vm401, -1e+30
          %418 = vst.msk [vmem:[#allocation3] sm:$0xff] %vm401, 0.0
          %419 = vst.msk [vmem:[#allocation3 + $0x8] sm:$0xff] %vm401, 0.0
          %420 = vst.msk [vmem:[#allocation3 + $0x10] sm:$0xff] %vm401, 0.0
          %421 = vst.msk [vmem:[#allocation3 + $0x18] sm:$0xff] %vm401, 0.0
          %422 = vst.msk [vmem:[#allocation3 + $0x20] sm:$0xff] %vm401, 0.0
          %423 = vst.msk [vmem:[#allocation3 + $0x28] sm:$0xff] %vm401, 0.0
          %424 = vst.msk [vmem:[#allocation3 + $0x30] sm:$0xff] %vm401, 0.0
          %425 = vst.msk [vmem:[#allocation3 + $0x38] sm:$0xff] %vm401, 0.0
          %426 = vst.msk [vmem:[#allocation3 + $0x40] sm:$0xff] %vm401, 0.0
          %427 = vst.msk [vmem:[#allocation3 + $0x48] sm:$0xff] %vm401, 0.0
          %428 = vst.msk [vmem:[#allocation3 + $0x50] sm:$0xff] %vm401, 0.0
          %429 = vst.msk [vmem:[#allocation3 + $0x58] sm:$0xff] %vm401, 0.0
          %430 = vst.msk [vmem:[#allocation3 + $0x60] sm:$0xff] %vm401, 0.0
          %431 = vst.msk [vmem:[#allocation3 + $0x68] sm:$0xff] %vm401, 0.0
          %432 = vst.msk [vmem:[#allocation3 + $0x70] sm:$0xff] %vm401, 0.0
          %433 = vst.msk [vmem:[#allocation3 + $0x78] sm:$0xff] %vm401, 0.0
          %434 = vst [vmem:[#allocation4] sm:$0xff] 0.0
          %435 = vst [vmem:[#allocation4 + $0x8] sm:$0xff] 0.0
          %436 = vst [vmem:[#allocation4 + $0x10] sm:$0xff] 0.0
          %437 = vst [vmem:[#allocation4 + $0x18] sm:$0xff] 0.0
          %438 = vst [vmem:[#allocation4 + $0x20] sm:$0xff] 0.0
          %439 = vst [vmem:[#allocation4 + $0x28] sm:$0xff] 0.0
          %440 = vst [vmem:[#allocation4 + $0x30] sm:$0xff] 0.0
          %441 = vst [vmem:[#allocation4 + $0x38] sm:$0xff] 0.0
          %442 = vst [vmem:[#allocation4 + $0x40] sm:$0xff] 0.0
          %443 = vst [vmem:[#allocation4 + $0x48] sm:$0xff] 0.0
          %444 = vst [vmem:[#allocation4 + $0x50] sm:$0xff] 0.0
          %445 = vst [vmem:[#allocation4 + $0x58] sm:$0xff] 0.0
          %446 = vst [vmem:[#allocation4 + $0x60] sm:$0xff] 0.0
          %447 = vst [vmem:[#allocation4 + $0x68] sm:$0xff] 0.0
          %448 = vst [vmem:[#allocation4 + $0x70] sm:$0xff] 0.0
          %449 = vst [vmem:[#allocation4 + $0x78] sm:$0xff] 0.0
          %450 = vst.msk [vmem:[#allocation5] sm:$0xff] %vm401, -1e+30
          %451 = vst.msk [vmem:[#allocation5 + $0x8] sm:$0xff] %vm401, -1e+30
          %452 = vst.msk [vmem:[#allocation5 + $0x10] sm:$0xff] %vm401, -1e+30
          %453 = vst.msk [vmem:[#allocation5 + $0x18] sm:$0xff] %vm401, -1e+30
          %454 = vst.msk [vmem:[#allocation5 + $0x20] sm:$0xff] %vm401, -1e+30
          %455 = vst.msk [vmem:[#allocation5 + $0x28] sm:$0xff] %vm401, -1e+30
          %456 = vst.msk [vmem:[#allocation5 + $0x30] sm:$0xff] %vm401, -1e+30
          %457 = vst.msk [vmem:[#allocation5 + $0x38] sm:$0xff] %vm401, -1e+30
          %458 = vst.msk [vmem:[#allocation5 + $0x40] sm:$0xff] %vm401, -1e+30
          %459 = vst.msk [vmem:[#allocation5 + $0x48] sm:$0xff] %vm401, -1e+30
          %460 = vst.msk [vmem:[#allocation5 + $0x50] sm:$0xff] %vm401, -1e+30
          %461 = vst.msk [vmem:[#allocation5 + $0x58] sm:$0xff] %vm401, -1e+30
          %462 = vst.msk [vmem:[#allocation5 + $0x60] sm:$0xff] %vm401, -1e+30
          %463 = vst.msk [vmem:[#allocation5 + $0x68] sm:$0xff] %vm401, -1e+30
          %464 = vst.msk [vmem:[#allocation5 + $0x70] sm:$0xff] %vm401, -1e+30
          %465 = vst.msk [vmem:[#allocation5 + $0x78] sm:$0xff] %vm401, -1e+30
          %466 = vst.msk [vmem:[#allocation6] sm:$0xff] %vm401, 0.0
          %467 = vst.msk [vmem:[#allocation6 + $0x8] sm:$0xff] %vm401, 0.0
          %468 = vst.msk [vmem:[#allocation6 + $0x10] sm:$0xff] %vm401, 0.0
          %469 = vst.msk [vmem:[#allocation6 + $0x18] sm:$0xff] %vm401, 0.0
          %470 = vst.msk [vmem:[#allocation6 + $0x20] sm:$0xff] %vm401, 0.0
          %471 = vst.msk [vmem:[#allocation6 + $0x28] sm:$0xff] %vm401, 0.0
          %472 = vst.msk [vmem:[#allocation6 + $0x30] sm:$0xff] %vm401, 0.0
          %473 = vst.msk [vmem:[#allocation6 + $0x38] sm:$0xff] %vm401, 0.0
          %474 = vst.msk [vmem:[#allocation6 + $0x40] sm:$0xff] %vm401, 0.0
          %475 = vst.msk [vmem:[#allocation6 + $0x48] sm:$0xff] %vm401, 0.0
          %476 = vst.msk [vmem:[#allocation6 + $0x50] sm:$0xff] %vm401, 0.0
          %477 = vst.msk [vmem:[#allocation6 + $0x58] sm:$0xff] %vm401, 0.0
          %478 = vst.msk [vmem:[#allocation6 + $0x60] sm:$0xff] %vm401, 0.0
          %479 = vst.msk [vmem:[#allocation6 + $0x68] sm:$0xff] %vm401, 0.0
          %480 = vst.msk [vmem:[#allocation6 + $0x70] sm:$0xff] %vm401, 0.0
          %481 = vst.msk [vmem:[#allocation6 + $0x78] sm:$0xff] %vm401, 0.0
          %482 = vst [vmem:[#allocation7] sm:$0xff] 0.0
          %483 = vst [vmem:[#allocation7 + $0x8] sm:$0xff] 0.0
          %484 = vst [vmem:[#allocation7 + $0x10] sm:$0xff] 0.0
          %485 = vst [vmem:[#allocation7 + $0x18] sm:$0xff] 0.0
          %486 = vst [vmem:[#allocation7 + $0x20] sm:$0xff] 0.0
          %487 = vst [vmem:[#allocation7 + $0x28] sm:$0xff] 0.0
          %488 = vst [vmem:[#allocation7 + $0x30] sm:$0xff] 0.0
          %489 = vst [vmem:[#allocation7 + $0x38] sm:$0xff] 0.0
          %490 = vst [vmem:[#allocation7 + $0x40] sm:$0xff] 0.0
          %491 = vst [vmem:[#allocation7 + $0x48] sm:$0xff] 0.0
          %492 = vst [vmem:[#allocation7 + $0x50] sm:$0xff] 0.0
          %493 = vst [vmem:[#allocation7 + $0x58] sm:$0xff] 0.0
          %494 = vst [vmem:[#allocation7 + $0x60] sm:$0xff] 0.0
          %495 = vst [vmem:[#allocation7 + $0x68] sm:$0xff] 0.0
          %496 = vst [vmem:[#allocation7 + $0x70] sm:$0xff] 0.0
          %497 = vst [vmem:[#allocation7 + $0x78] sm:$0xff] 0.0
        $region44: #{tpu_custom_call.1} parent=39 // pred_fallthru
          _
        %v498 = vld [vmem:[%s361] sm:$0xf]
        %v499 = vld [vmem:[%s361 + $0x4] sm:$0xf]
        %v500 = vld [vmem:[%s361 + $0x8] sm:$0xf]
        %v501 = vld [vmem:[%s361 + $0xc] sm:$0xf]
        %v502 = vld [vmem:[%s361 + $0x10] sm:$0xf]
        %v503 = vld [vmem:[%s361 + $0x14] sm:$0xf]
        %v504 = vld [vmem:[%s361 + $0x18] sm:$0xf]
        %v505 = vld [vmem:[%s361 + $0x1c] sm:$0xf]
        %v506 = vld [vmem:[%s361 + $0x20] sm:$0xf]
        %v507 = vld [vmem:[%s361 + $0x24] sm:$0xf]
        %v508 = vld [vmem:[%s361 + $0x28] sm:$0xf]
        %v509 = vld [vmem:[%s361 + $0x2c] sm:$0xf]
        %v510 = vld [vmem:[%s361 + $0x30] sm:$0xf]
        %v511 = vld [vmem:[%s361 + $0x34] sm:$0xf]
        %v512 = vld [vmem:[%s361 + $0x38] sm:$0xf]
        %v513 = vld [vmem:[%s361 + $0x3c] sm:$0xf]
        %v514 = vmul.bf16 %v498, 1043938873
        %v515 = vmul.bf16 %v499, 1043938873
        %v516 = vmul.bf16 %v500, 1043938873
        %v517 = vmul.bf16 %v501, 1043938873
        %v518 = vmul.bf16 %v502, 1043938873
        %v519 = vmul.bf16 %v503, 1043938873
        %v520 = vmul.bf16 %v504, 1043938873
        %v521 = vmul.bf16 %v505, 1043938873
        %v522 = vmul.bf16 %v506, 1043938873
        %v523 = vmul.bf16 %v507, 1043938873
        %v524 = vmul.bf16 %v508, 1043938873
        %v525 = vmul.bf16 %v509, 1043938873
        %v526 = vmul.bf16 %v510, 1043938873
        %v527 = vmul.bf16 %v511, 1043938873
        %v528 = vmul.bf16 %v512, 1043938873
        %v529 = vmul.bf16 %v513, 1043938873
        %s530 = scalar_lea.vmem %s361, 64
        %v531 = vld [vmem:[%s530] sm:$0xf]
        %v532 = vld [vmem:[%s530 + $0x4] sm:$0xf]
        %v533 = vld [vmem:[%s530 + $0x8] sm:$0xf]
        %v534 = vld [vmem:[%s530 + $0xc] sm:$0xf]
        %v535 = vld [vmem:[%s530 + $0x10] sm:$0xf]
        %v536 = vld [vmem:[%s530 + $0x14] sm:$0xf]
        %v537 = vld [vmem:[%s530 + $0x18] sm:$0xf]
        %v538 = vld [vmem:[%s530 + $0x1c] sm:$0xf]
        %v539 = vld [vmem:[%s530 + $0x20] sm:$0xf]
        %v540 = vld [vmem:[%s530 + $0x24] sm:$0xf]
        %v541 = vld [vmem:[%s530 + $0x28] sm:$0xf]
        %v542 = vld [vmem:[%s530 + $0x2c] sm:$0xf]
        %v543 = vld [vmem:[%s530 + $0x30] sm:$0xf]
        %v544 = vld [vmem:[%s530 + $0x34] sm:$0xf]
        %v545 = vld [vmem:[%s530 + $0x38] sm:$0xf]
        %v546 = vld [vmem:[%s530 + $0x3c] sm:$0xf]
        %v547 = vmul.bf16 %v531, 1043938873
        %v548 = vmul.bf16 %v532, 1043938873
        %v549 = vmul.bf16 %v533, 1043938873
        %v550 = vmul.bf16 %v534, 1043938873
        %v551 = vmul.bf16 %v535, 1043938873
        %v552 = vmul.bf16 %v536, 1043938873
        %v553 = vmul.bf16 %v537, 1043938873
        %v554 = vmul.bf16 %v538, 1043938873
        %v555 = vmul.bf16 %v539, 1043938873
        %v556 = vmul.bf16 %v540, 1043938873
        %v557 = vmul.bf16 %v541, 1043938873
        %v558 = vmul.bf16 %v542, 1043938873
        %v559 = vmul.bf16 %v543, 1043938873
        %v560 = vmul.bf16 %v544, 1043938873
        %v561 = vmul.bf16 %v545, 1043938873
        %v562 = vmul.bf16 %v546, 1043938873
        %v563 = vld [vmem:[%s377] sm:$0xf]
        %v564 = vld [vmem:[%s377 + $0x4] sm:$0xf]
        %v565 = vld [vmem:[%s377 + $0x8] sm:$0xf]
        %v566 = vld [vmem:[%s377 + $0xc] sm:$0xf]
        %v567 = vld [vmem:[%s377 + $0x10] sm:$0xf]
        %v568 = vld [vmem:[%s377 + $0x14] sm:$0xf]
        %v569 = vld [vmem:[%s377 + $0x18] sm:$0xf]
        %v570 = vld [vmem:[%s377 + $0x1c] sm:$0xf]
        %v571 = vld [vmem:[%s377 + $0x20] sm:$0xf]
        %v572 = vld [vmem:[%s377 + $0x24] sm:$0xf]
        %v573 = vld [vmem:[%s377 + $0x28] sm:$0xf]
        %v574 = vld [vmem:[%s377 + $0x2c] sm:$0xf]
        %v575 = vld [vmem:[%s377 + $0x30] sm:$0xf]
        %v576 = vld [vmem:[%s377 + $0x34] sm:$0xf]
        %v577 = vld [vmem:[%s377 + $0x38] sm:$0xf]
        %v578 = vld [vmem:[%s377 + $0x3c] sm:$0xf]
        %s579 = scalar_lea.vmem %s377, 64
        %v580 = vld [vmem:[%s579] sm:$0xf]
        %v581 = vld [vmem:[%s579 + $0x4] sm:$0xf]
        %v582 = vld [vmem:[%s579 + $0x8] sm:$0xf]
        %v583 = vld [vmem:[%s579 + $0xc] sm:$0xf]
        %v584 = vld [vmem:[%s579 + $0x10] sm:$0xf]
        %v585 = vld [vmem:[%s579 + $0x14] sm:$0xf]
        %v586 = vld [vmem:[%s579 + $0x18] sm:$0xf]
        %v587 = vld [vmem:[%s579 + $0x1c] sm:$0xf]
        %v588 = vld [vmem:[%s579 + $0x20] sm:$0xf]
        %v589 = vld [vmem:[%s579 + $0x24] sm:$0xf]
        %v590 = vld [vmem:[%s579 + $0x28] sm:$0xf]
        %v591 = vld [vmem:[%s579 + $0x2c] sm:$0xf]
        %v592 = vld [vmem:[%s579 + $0x30] sm:$0xf]
        %v593 = vld [vmem:[%s579 + $0x34] sm:$0xf]
        %v594 = vld [vmem:[%s579 + $0x38] sm:$0xf]
        %v595 = vld [vmem:[%s579 + $0x3c] sm:$0xf]
        %v596 = vld [vmem:[%s392] sm:$0xf]
        %v597 = vld [vmem:[%s392 + $0x4] sm:$0xf]
        %v598 = vld [vmem:[%s392 + $0x8] sm:$0xf]
        %v599 = vld [vmem:[%s392 + $0xc] sm:$0xf]
        %v600 = vld [vmem:[%s392 + $0x10] sm:$0xf]
        %v601 = vld [vmem:[%s392 + $0x14] sm:$0xf]
        %v602 = vld [vmem:[%s392 + $0x18] sm:$0xf]
        %v603 = vld [vmem:[%s392 + $0x1c] sm:$0xf]
        %v604 = vld [vmem:[%s392 + $0x20] sm:$0xf]
        %v605 = vld [vmem:[%s392 + $0x24] sm:$0xf]
        %v606 = vld [vmem:[%s392 + $0x28] sm:$0xf]
        %v607 = vld [vmem:[%s392 + $0x2c] sm:$0xf]
        %v608 = vld [vmem:[%s392 + $0x30] sm:$0xf]
        %v609 = vld [vmem:[%s392 + $0x34] sm:$0xf]
        %v610 = vld [vmem:[%s392 + $0x38] sm:$0xf]
        %v611 = vld [vmem:[%s392 + $0x3c] sm:$0xf]
        %v628 = vunpack.c.l.b16 %v514
        %v629 = vunpack.c.l.b16 %v515
        %v630 = vunpack.c.l.b16 %v516
        %v631 = vunpack.c.l.b16 %v517
        %v632 = vunpack.c.l.b16 %v518
        %v633 = vunpack.c.l.b16 %v519
        %v634 = vunpack.c.l.b16 %v520
        %v635 = vunpack.c.l.b16 %v521
        %v636 = vunpack.c.l.b16 %v522
        %v637 = vunpack.c.l.b16 %v523
        %v638 = vunpack.c.l.b16 %v524
        %v639 = vunpack.c.l.b16 %v525
        %v640 = vunpack.c.l.b16 %v526
        %v641 = vunpack.c.l.b16 %v527
        %v642 = vunpack.c.l.b16 %v528
        %v643 = vunpack.c.l.b16 %v529
        %v644 = vpack.c.b16 %v629, %v628
        %v645 = vpack.c.b16 %v631, %v630
        %v646 = vpack.c.b16 %v633, %v632
        %v647 = vpack.c.b16 %v635, %v634
        %v648 = vpack.c.b16 %v637, %v636
        %v649 = vpack.c.b16 %v639, %v638
        %v650 = vpack.c.b16 %v641, %v640
        %v651 = vpack.c.b16 %v643, %v642
        %v668 = vunpack.c.l.b16 %v563
        %v669 = vunpack.c.l.b16 %v564
        %v670 = vunpack.c.l.b16 %v565
        %v671 = vunpack.c.l.b16 %v566
        %v672 = vunpack.c.l.b16 %v567
        %v673 = vunpack.c.l.b16 %v568
        %v674 = vunpack.c.l.b16 %v569
        %v675 = vunpack.c.l.b16 %v570
        %v676 = vunpack.c.l.b16 %v571
        %v677 = vunpack.c.l.b16 %v572
        %v678 = vunpack.c.l.b16 %v573
        %v679 = vunpack.c.l.b16 %v574
        %v680 = vunpack.c.l.b16 %v575
        %v681 = vunpack.c.l.b16 %v576
        %v682 = vunpack.c.l.b16 %v577
        %v683 = vunpack.c.l.b16 %v578
        %v684 = vpack.c.b16 %v669, %v668
        %v685 = vpack.c.b16 %v671, %v670
        %v686 = vpack.c.b16 %v673, %v672
        %v687 = vpack.c.b16 %v675, %v674
        %v688 = vpack.c.b16 %v677, %v676
        %v689 = vpack.c.b16 %v679, %v678
        %v690 = vpack.c.b16 %v681, %v680
        %v691 = vpack.c.b16 %v683, %v682
        %vm692 = vcmask 523264
        %v694 = vsel %vm692, %v644, 0
        %v697 = vsel %vm692, %v645, 0
        %v700 = vsel %vm692, %v646, 0
        %v703 = vsel %vm692, %v647, 0
        %v706 = vsel %vm692, %v648, 0
        %v709 = vsel %vm692, %v649, 0
        %v712 = vsel %vm692, %v650, 0
        %v715 = vsel %vm692, %v651, 0
        %v718 = vsel %vm692, %v684, 0
        %v721 = vsel %vm692, %v685, 0
        %v724 = vsel %vm692, %v686, 0
        %v727 = vsel %vm692, %v687, 0
        %v730 = vsel %vm692, %v688, 0
        %v733 = vsel %vm692, %v689, 0
        %v736 = vsel %vm692, %v690, 0
        %v739 = vsel %vm692, %v691, 0
        %741 = vmatprep.subr.bf16.mxu0 0
        %742 = vmatpush1.bf16.xpose.msra.mxu0 %v718
        %743 = vmatprep.subr.bf16.mxu0 0
        %744 = vmatpush1.bf16.xpose.msra.mxu0 %v721
        %745 = vmatprep.subr.bf16.mxu0 0
        %746 = vmatpush1.bf16.xpose.msra.mxu0 %v724
        %747 = vmatprep.subr.bf16.mxu0 0
        %748 = vmatpush1.bf16.xpose.msra.mxu0 %v727
        %749 = vmatprep.subr.bf16.mxu0 0
        %750 = vmatpush1.bf16.xpose.msra.mxu0 %v730
        %751 = vmatprep.subr.bf16.mxu0 0
        %752 = vmatpush1.bf16.xpose.msra.mxu0 %v733
        %753 = vmatprep.subr.bf16.mxu0 0
        %754 = vmatpush1.bf16.xpose.msra.mxu0 %v736
        %755 = vmatprep.subr.bf16.mxu0 0
        %756 = vmatpush1.bf16.xpose.msra.mxu0 %v739
        %757 = vmatprep.subr.bf16.mxu0 0
        %758 = vmatpush1.bf16.xpose.msra.mxu0 0
        %759 = vmatprep.subr.bf16.mxu0 0
        %760 = vmatpush1.bf16.xpose.msra.mxu0 0
        %761 = vmatprep.subr.bf16.mxu0 0
        %762 = vmatpush1.bf16.xpose.msra.mxu0 0
        %763 = vmatprep.subr.bf16.mxu0 0
        %764 = vmatpush1.bf16.xpose.msra.mxu0 0
        %765 = vmatprep.subr.bf16.mxu0 0
        %766 = vmatpush1.bf16.xpose.msra.mxu0 0
        %767 = vmatprep.subr.bf16.mxu0 0
        %768 = vmatpush1.bf16.xpose.msra.mxu0 0
        %769 = vmatprep.subr.bf16.mxu0 0
        %770 = vmatpush1.bf16.xpose.msra.mxu0 0
        %771 = vmatprep.subr.bf16.mxu0 0
        %772 = vmatpush1.bf16.xpose.msra.mxu0 0
        %773 = vmatprep.mubr.bf16.mxu0 0
        %774 = vmatmul.mubr.bf16.gmra.mrb[0].mxu0 %v694
        %v775 = vpop.f32.mrb[0].mxu0
        %v776 = vadd.f32 0.0, %v775
        %v777 = vpop.f32.mrb[0].mxu0
        %v778 = vpop.f32.mrb[0].mxu0
        %v779 = vadd.f32 0.0, %v778
        %v780 = vpop.f32.mrb[0].mxu0
        %781 = vmatprep.mubr.bf16.mxu0 0
        %782 = vmatmul.mubr.bf16.gmra.mrb[0].mxu0 %v697
        %v783 = vpop.f32.mrb[0].mxu0
        %v784 = vadd.f32 0.0, %v783
        %v785 = vpop.f32.mrb[0].mxu0
        %v786 = vpop.f32.mrb[0].mxu0
        %v787 = vadd.f32 0.0, %v786
        %v788 = vpop.f32.mrb[0].mxu0
        %789 = vmatprep.mubr.bf16.mxu0 0
        %790 = vmatmul.mubr.bf16.gmra.mrb[0].mxu0 %v700
        %v791 = vpop.f32.mrb[0].mxu0
        %v792 = vadd.f32 0.0, %v791
        %v793 = vpop.f32.mrb[0].mxu0
        %v794 = vpop.f32.mrb[0].mxu0
        %v795 = vadd.f32 0.0, %v794
        %v796 = vpop.f32.mrb[0].mxu0
        %797 = vmatprep.mubr.bf16.mxu0 0
        %798 = vmatmul.mubr.bf16.gmra.mrb[0].mxu0 %v703
        %v799 = vpop.f32.mrb[0].mxu0
        %v800 = vadd.f32 0.0, %v799
        %v801 = vpop.f32.mrb[0].mxu0
        %v802 = vpop.f32.mrb[0].mxu0
        %v803 = vadd.f32 0.0, %v802
        %v804 = vpop.f32.mrb[0].mxu0
        %805 = vmatprep.mubr.bf16.mxu0 0
        %806 = vmatmul.mubr.bf16.gmra.mrb[0].mxu0 %v706
        %v807 = vpop.f32.mrb[0].mxu0
        %v808 = vadd.f32 0.0, %v807
        %v809 = vpop.f32.mrb[0].mxu0
        %v810 = vpop.f32.mrb[0].mxu0
        %v811 = vadd.f32 0.0, %v810
        %v812 = vpop.f32.mrb[0].mxu0
        %813 = vmatprep.mubr.bf16.mxu0 0
        %814 = vmatmul.mubr.bf16.gmra.mrb[0].mxu0 %v709
        %v815 = vpop.f32.mrb[0].mxu0
        %v816 = vadd.f32 0.0, %v815
        %v817 = vpop.f32.mrb[0].mxu0
        %v818 = vpop.f32.mrb[0].mxu0
        %v819 = vadd.f32 0.0, %v818
        %v820 = vpop.f32.mrb[0].mxu0
        %821 = vmatprep.mubr.bf16.mxu0 0
        %822 = vmatmul.mubr.bf16.gmra.mrb[0].mxu0 %v712
        %v823 = vpop.f32.mrb[0].mxu0
        %v824 = vadd.f32 0.0, %v823
        %v825 = vpop.f32.mrb[0].mxu0
        %v826 = vpop.f32.mrb[0].mxu0
        %v827 = vadd.f32 0.0, %v826
        %v828 = vpop.f32.mrb[0].mxu0
        %829 = vmatprep.mubr.bf16.mxu0 0
        %830 = vmatmul.mubr.bf16.gmra.mrb[0].mxu0 %v715
        %v831 = vpop.f32.mrb[0].mxu0
        %v832 = vadd.f32 0.0, %v831
        %v833 = vpop.f32.mrb[0].mxu0
        %v834 = vpop.f32.mrb[0].mxu0
        %v835 = vadd.f32 0.0, %v834
        %v836 = vpop.f32.mrb[0].mxu0
        %837 = vdwg.mxu0
        %v838 = vld [vmem:[#allocation2] sm:$0xff]
        %v839 = vld [vmem:[#allocation2 + $0x8] sm:$0xff]
        %v840 = vld [vmem:[#allocation2 + $0x10] sm:$0xff]
        %v841 = vld [vmem:[#allocation2 + $0x18] sm:$0xff]
        %v842 = vld [vmem:[#allocation2 + $0x20] sm:$0xff]
        %v843 = vld [vmem:[#allocation2 + $0x28] sm:$0xff]
        %v844 = vld [vmem:[#allocation2 + $0x30] sm:$0xff]
        %v845 = vld [vmem:[#allocation2 + $0x38] sm:$0xff]
        %v846 = vld [vmem:[#allocation2 + $0x40] sm:$0xff]
        %v847 = vld [vmem:[#allocation2 + $0x48] sm:$0xff]
        %v848 = vld [vmem:[#allocation2 + $0x50] sm:$0xff]
        %v849 = vld [vmem:[#allocation2 + $0x58] sm:$0xff]
        %v850 = vld [vmem:[#allocation2 + $0x60] sm:$0xff]
        %v851 = vld [vmem:[#allocation2 + $0x68] sm:$0xff]
        %v852 = vld [vmem:[#allocation2 + $0x70] sm:$0xff]
        %v853 = vld [vmem:[#allocation2 + $0x78] sm:$0xff]
        %854 = vmax.xlane.f32.xlu0 %v776
        %v855 = vpop.xlane.xlu0 %854
        %856 = vmax.xlane.f32.xlu0 %v779
        %v857 = vpop.xlane.xlu0 %856
        %858 = vmax.xlane.f32.xlu0 %v784
        %v859 = vpop.xlane.xlu0 %858
        %860 = vmax.xlane.f32.xlu0 %v787
        %v861 = vpop.xlane.xlu0 %860
        %862 = vmax.xlane.f32.xlu0 %v792
        %v863 = vpop.xlane.xlu0 %862
        %864 = vmax.xlane.f32.xlu0 %v795
        %v865 = vpop.xlane.xlu0 %864
        %866 = vmax.xlane.f32.xlu0 %v800
        %v867 = vpop.xlane.xlu0 %866
        %868 = vmax.xlane.f32.xlu0 %v803
        %v869 = vpop.xlane.xlu0 %868
        %870 = vmax.xlane.f32.xlu0 %v808
        %v871 = vpop.xlane.xlu0 %870
        %872 = vmax.xlane.f32.xlu0 %v811
        %v873 = vpop.xlane.xlu0 %872
        %874 = vmax.xlane.f32.xlu0 %v816
        %v875 = vpop.xlane.xlu0 %874
        %876 = vmax.xlane.f32.xlu0 %v819
        %v877 = vpop.xlane.xlu0 %876
        %878 = vmax.xlane.f32.xlu0 %v824
        %v879 = vpop.xlane.xlu0 %878
        %880 = vmax.xlane.f32.xlu0 %v827
        %v881 = vpop.xlane.xlu0 %880
        %882 = vmax.xlane.f32.xlu0 %v832
        %v883 = vpop.xlane.xlu0 %882
        %884 = vmax.xlane.f32.xlu0 %v835
        %v885 = vpop.xlane.xlu0 %884
        %v886 = vmax.f32 %v838, %v855
        %v887 = vmax.f32 %v839, %v857
        %v888 = vmax.f32 %v840, %v859
        %v889 = vmax.f32 %v841, %v861
        %v890 = vmax.f32 %v842, %v863
        %v891 = vmax.f32 %v843, %v865
        %v892 = vmax.f32 %v844, %v867
        %v893 = vmax.f32 %v845, %v869
        %v894 = vmax.f32 %v846, %v871
        %v895 = vmax.f32 %v847, %v873
        %v896 = vmax.f32 %v848, %v875
        %v897 = vmax.f32 %v849, %v877
        %v898 = vmax.f32 %v850, %v879
        %v899 = vmax.f32 %v851, %v881
        %v900 = vmax.f32 %v852, %v883
        %v901 = vmax.f32 %v853, %v885
        %v902 = vsub.f32 %v838, %v886
        %v903 = vsub.f32 %v839, %v887
        %v904 = vsub.f32 %v840, %v888
        %v905 = vsub.f32 %v841, %v889
        %v906 = vsub.f32 %v842, %v890
        %v907 = vsub.f32 %v843, %v891
        %v908 = vsub.f32 %v844, %v892
        %v909 = vsub.f32 %v845, %v893
        %v910 = vsub.f32 %v846, %v894
        %v911 = vsub.f32 %v847, %v895
        %v912 = vsub.f32 %v848, %v896
        %v913 = vsub.f32 %v849, %v897
        %v914 = vsub.f32 %v850, %v898
        %v915 = vsub.f32 %v851, %v899
        %v916 = vsub.f32 %v852, %v900
        %v917 = vsub.f32 %v853, %v901
        %v918 = vpow.pop %v902
        %v919 = vpow.pop %v903
        %v920 = vpow.pop %v904
        %v921 = vpow.pop %v905
        %v922 = vpow.pop %v906
        %v923 = vpow.pop %v907
        %v924 = vpow.pop %v908
        %v925 = vpow.pop %v909
        %v926 = vpow.pop %v910
        %v927 = vpow.pop %v911
        %v928 = vpow.pop %v912
        %v929 = vpow.pop %v913
        %v930 = vpow.pop %v914
        %v931 = vpow.pop %v915
        %v932 = vpow.pop %v916
        %v933 = vpow.pop %v917
        %935 = vset.pattern.permute.xlu0 0
        %936 = vperm.xlu0 %935, %v886
        %v937 = vpop.permute.xlu0 %936
        %940 = vset.pattern.permute.xlu0 0
        %941 = vperm.xlu0 %940, %v887
        %v942 = vpop.permute.xlu0 %941
        %945 = vset.pattern.permute.xlu0 0
        %946 = vperm.xlu0 %945, %v888
        %v947 = vpop.permute.xlu0 %946
        %950 = vset.pattern.permute.xlu0 0
        %951 = vperm.xlu0 %950, %v889
        %v952 = vpop.permute.xlu0 %951
        %955 = vset.pattern.permute.xlu0 0
        %956 = vperm.xlu0 %955, %v890
        %v957 = vpop.permute.xlu0 %956
        %960 = vset.pattern.permute.xlu0 0
        %961 = vperm.xlu0 %960, %v891
        %v962 = vpop.permute.xlu0 %961
        %965 = vset.pattern.permute.xlu0 0
        %966 = vperm.xlu0 %965, %v892
        %v967 = vpop.permute.xlu0 %966
        %970 = vset.pattern.permute.xlu0 0
        %971 = vperm.xlu0 %970, %v893
        %v972 = vpop.permute.xlu0 %971
        %975 = vset.pattern.permute.xlu0 0
        %976 = vperm.xlu0 %975, %v894
        %v977 = vpop.permute.xlu0 %976
        %980 = vset.pattern.permute.xlu0 0
        %981 = vperm.xlu0 %980, %v895
        %v982 = vpop.permute.xlu0 %981
        %985 = vset.pattern.permute.xlu0 0
        %986 = vperm.xlu0 %985, %v896
        %v987 = vpop.permute.xlu0 %986
        %990 = vset.pattern.permute.xlu0 0
        %991 = vperm.xlu0 %990, %v897
        %v992 = vpop.permute.xlu0 %991
        %995 = vset.pattern.permute.xlu0 0
        %996 = vperm.xlu0 %995, %v898
        %v997 = vpop.permute.xlu0 %996
        %1000 = vset.pattern.permute.xlu0 0
        %1001 = vperm.xlu0 %1000, %v899
        %v1002 = vpop.permute.xlu0 %1001
        %1005 = vset.pattern.permute.xlu0 0
        %1006 = vperm.xlu0 %1005, %v900
        %v1007 = vpop.permute.xlu0 %1006
        %1010 = vset.pattern.permute.xlu0 0
        %1011 = vperm.xlu0 %1010, %v901
        %v1012 = vpop.permute.xlu0 %1011
        %v1014 = vsub.f32 %v776, %v937
        %v1015 = vsub.f32 %v779, %v942
        %v1016 = vsub.f32 %v784, %v947
        %v1017 = vsub.f32 %v787, %v952
        %v1018 = vsub.f32 %v792, %v957
        %v1019 = vsub.f32 %v795, %v962
        %v1020 = vsub.f32 %v800, %v967
        %v1021 = vsub.f32 %v803, %v972
        %v1022 = vsub.f32 %v808, %v977
        %v1023 = vsub.f32 %v811, %v982
        %v1024 = vsub.f32 %v816, %v987
        %v1025 = vsub.f32 %v819, %v992
        %v1026 = vsub.f32 %v824, %v997
        %v1027 = vsub.f32 %v827, %v1002
        %v1028 = vsub.f32 %v832, %v1007
        %v1029 = vsub.f32 %v835, %v1012
        %v1030 = vpow.pop %v1014
        %v1031 = vpow.pop %v1015
        %v1032 = vpow.pop %v1016
        %v1033 = vpow.pop %v1017
        %v1034 = vpow.pop %v1018
        %v1035 = vpow.pop %v1019
        %v1036 = vpow.pop %v1020
        %v1037 = vpow.pop %v1021
        %v1038 = vpow.pop %v1022
        %v1039 = vpow.pop %v1023
        %v1040 = vpow.pop %v1024
        %v1041 = vpow.pop %v1025
        %v1042 = vpow.pop %v1026
        %v1043 = vpow.pop %v1027
        %v1044 = vpow.pop %v1028
        %v1045 = vpow.pop %v1029
        %v1046 = vld [vmem:[#allocation3] sm:$0xff]
        %v1047 = vld [vmem:[#allocation3 + $0x8] sm:$0xff]
        %v1048 = vld [vmem:[#allocation3 + $0x10] sm:$0xff]
        %v1049 = vld [vmem:[#allocation3 + $0x18] sm:$0xff]
        %v1050 = vld [vmem:[#allocation3 + $0x20] sm:$0xff]
        %v1051 = vld [vmem:[#allocation3 + $0x28] sm:$0xff]
        %v1052 = vld [vmem:[#allocation3 + $0x30] sm:$0xff]
        %v1053 = vld [vmem:[#allocation3 + $0x38] sm:$0xff]
        %v1054 = vld [vmem:[#allocation3 + $0x40] sm:$0xff]
        %v1055 = vld [vmem:[#allocation3 + $0x48] sm:$0xff]
        %v1056 = vld [vmem:[#allocation3 + $0x50] sm:$0xff]
        %v1057 = vld [vmem:[#allocation3 + $0x58] sm:$0xff]
        %v1058 = vld [vmem:[#allocation3 + $0x60] sm:$0xff]
        %v1059 = vld [vmem:[#allocation3 + $0x68] sm:$0xff]
        %v1060 = vld [vmem:[#allocation3 + $0x70] sm:$0xff]
        %v1061 = vld [vmem:[#allocation3 + $0x78] sm:$0xff]
        %v1062 = vmul.f32 %v918, %v1046
        %v1063 = vmul.f32 %v919, %v1047
        %v1064 = vmul.f32 %v920, %v1048
        %v1065 = vmul.f32 %v921, %v1049
        %v1066 = vmul.f32 %v922, %v1050
        %v1067 = vmul.f32 %v923, %v1051
        %v1068 = vmul.f32 %v924, %v1052
        %v1069 = vmul.f32 %v925, %v1053
        %v1070 = vmul.f32 %v926, %v1054
        %v1071 = vmul.f32 %v927, %v1055
        %v1072 = vmul.f32 %v928, %v1056
        %v1073 = vmul.f32 %v929, %v1057
        %v1074 = vmul.f32 %v930, %v1058
        %v1075 = vmul.f32 %v931, %v1059
        %v1076 = vmul.f32 %v932, %v1060
        %v1077 = vmul.f32 %v933, %v1061
        %1078 = vadd.xlane.f32.xlu0 %v1030
        %v1079 = vpop.xlane.xlu0 %1078
        %1080 = vadd.xlane.f32.xlu0 %v1031
        %v1081 = vpop.xlane.xlu0 %1080
        %1082 = vadd.xlane.f32.xlu0 %v1032
        %v1083 = vpop.xlane.xlu0 %1082
        %1084 = vadd.xlane.f32.xlu0 %v1033
        %v1085 = vpop.xlane.xlu0 %1084
        %1086 = vadd.xlane.f32.xlu0 %v1034
        %v1087 = vpop.xlane.xlu0 %1086
        %1088 = vadd.xlane.f32.xlu0 %v1035
        %v1089 = vpop.xlane.xlu0 %1088
        %1090 = vadd.xlane.f32.xlu0 %v1036
        %v1091 = vpop.xlane.xlu0 %1090
        %1092 = vadd.xlane.f32.xlu0 %v1037
        %v1093 = vpop.xlane.xlu0 %1092
        %1094 = vadd.xlane.f32.xlu0 %v1038
        %v1095 = vpop.xlane.xlu0 %1094
        %1096 = vadd.xlane.f32.xlu0 %v1039
        %v1097 = vpop.xlane.xlu0 %1096
        %1098 = vadd.xlane.f32.xlu0 %v1040
        %v1099 = vpop.xlane.xlu0 %1098
        %1100 = vadd.xlane.f32.xlu0 %v1041
        %v1101 = vpop.xlane.xlu0 %1100
        %1102 = vadd.xlane.f32.xlu0 %v1042
        %v1103 = vpop.xlane.xlu0 %1102
        %1104 = vadd.xlane.f32.xlu0 %v1043
        %v1105 = vpop.xlane.xlu0 %1104
        %1106 = vadd.xlane.f32.xlu0 %v1044
        %v1107 = vpop.xlane.xlu0 %1106
        %1108 = vadd.xlane.f32.xlu0 %v1045
        %v1109 = vpop.xlane.xlu0 %1108
        %v1110 = vadd.f32 %v1062, %v1079
        %v1111 = vadd.f32 %v1063, %v1081
        %v1112 = vadd.f32 %v1064, %v1083
        %v1113 = vadd.f32 %v1065, %v1085
        %v1114 = vadd.f32 %v1066, %v1087
        %v1115 = vadd.f32 %v1067, %v1089
        %v1116 = vadd.f32 %v1068, %v1091
        %v1117 = vadd.f32 %v1069, %v1093
        %v1118 = vadd.f32 %v1070, %v1095
        %v1119 = vadd.f32 %v1071, %v1097
        %v1120 = vadd.f32 %v1072, %v1099
        %v1121 = vadd.f32 %v1073, %v1101
        %v1122 = vadd.f32 %v1074, %v1103
        %v1123 = vadd.f32 %v1075, %v1105
        %v1124 = vadd.f32 %v1076, %v1107
        %v1125 = vadd.f32 %v1077, %v1109
        %vm1126 = vcmask 7168
        %1127 = vst.msk [vmem:[#allocation3] sm:$0xff] %vm1126, %v1110
        %1128 = vst.msk [vmem:[#allocation3 + $0x8] sm:$0xff] %vm1126, %v1111
        %1129 = vst.msk [vmem:[#allocation3 + $0x10] sm:$0xff] %vm1126, %v1112
        %1130 = vst.msk [vmem:[#allocation3 + $0x18] sm:$0xff] %vm1126, %v1113
        %1131 = vst.msk [vmem:[#allocation3 + $0x20] sm:$0xff] %vm1126, %v1114
        %1132 = vst.msk [vmem:[#allocation3 + $0x28] sm:$0xff] %vm1126, %v1115
        %1133 = vst.msk [vmem:[#allocation3 + $0x30] sm:$0xff] %vm1126, %v1116
        %1134 = vst.msk [vmem:[#allocation3 + $0x38] sm:$0xff] %vm1126, %v1117
        %1135 = vst.msk [vmem:[#allocation3 + $0x40] sm:$0xff] %vm1126, %v1118
        %1136 = vst.msk [vmem:[#allocation3 + $0x48] sm:$0xff] %vm1126, %v1119
        %1137 = vst.msk [vmem:[#allocation3 + $0x50] sm:$0xff] %vm1126, %v1120
        %1138 = vst.msk [vmem:[#allocation3 + $0x58] sm:$0xff] %vm1126, %v1121
        %1139 = vst.msk [vmem:[#allocation3 + $0x60] sm:$0xff] %vm1126, %v1122
        %1140 = vst.msk [vmem:[#allocation3 + $0x68] sm:$0xff] %vm1126, %v1123
        %1141 = vst.msk [vmem:[#allocation3 + $0x70] sm:$0xff] %vm1126, %v1124
        %1142 = vst.msk [vmem:[#allocation3 + $0x78] sm:$0xff] %vm1126, %v1125
        %v1143 = vld [vmem:[#allocation4] sm:$0xff]
        %v1144 = vld [vmem:[#allocation4 + $0x8] sm:$0xff]
        %v1145 = vld [vmem:[#allocation4 + $0x10] sm:$0xff]
        %v1146 = vld [vmem:[#allocation4 + $0x18] sm:$0xff]
        %v1147 = vld [vmem:[#allocation4 + $0x20] sm:$0xff]
        %v1148 = vld [vmem:[#allocation4 + $0x28] sm:$0xff]
        %v1149 = vld [vmem:[#allocation4 + $0x30] sm:$0xff]
        %v1150 = vld [vmem:[#allocation4 + $0x38] sm:$0xff]
        %v1151 = vld [vmem:[#allocation4 + $0x40] sm:$0xff]
        %v1152 = vld [vmem:[#allocation4 + $0x48] sm:$0xff]
        %v1153 = vld [vmem:[#allocation4 + $0x50] sm:$0xff]
        %v1154 = vld [vmem:[#allocation4 + $0x58] sm:$0xff]
        %v1155 = vld [vmem:[#allocation4 + $0x60] sm:$0xff]
        %v1156 = vld [vmem:[#allocation4 + $0x68] sm:$0xff]
        %v1157 = vld [vmem:[#allocation4 + $0x70] sm:$0xff]
        %v1158 = vld [vmem:[#allocation4 + $0x78] sm:$0xff]
        %1160 = vset.pattern.permute.xlu0 0
        %1161 = vperm.xlu0 %1160, %v918
        %v1162 = vpop.permute.xlu0 %1161
        %1165 = vset.pattern.permute.xlu0 0
        %1166 = vperm.xlu0 %1165, %v919
        %v1167 = vpop.permute.xlu0 %1166
        %1170 = vset.pattern.permute.xlu0 0
        %1171 = vperm.xlu0 %1170, %v920
        %v1172 = vpop.permute.xlu0 %1171
        %1175 = vset.pattern.permute.xlu0 0
        %1176 = vperm.xlu0 %1175, %v921
        %v1177 = vpop.permute.xlu0 %1176
        %1180 = vset.pattern.permute.xlu0 0
        %1181 = vperm.xlu0 %1180, %v922
        %v1182 = vpop.permute.xlu0 %1181
        %1185 = vset.pattern.permute.xlu0 0
        %1186 = vperm.xlu0 %1185, %v923
        %v1187 = vpop.permute.xlu0 %1186
        %1190 = vset.pattern.permute.xlu0 0
        %1191 = vperm.xlu0 %1190, %v924
        %v1192 = vpop.permute.xlu0 %1191
        %1195 = vset.pattern.permute.xlu0 0
        %1196 = vperm.xlu0 %1195, %v925
        %v1197 = vpop.permute.xlu0 %1196
        %1200 = vset.pattern.permute.xlu0 0
        %1201 = vperm.xlu0 %1200, %v926
        %v1202 = vpop.permute.xlu0 %1201
        %1205 = vset.pattern.permute.xlu0 0
        %1206 = vperm.xlu0 %1205, %v927
        %v1207 = vpop.permute.xlu0 %1206
        %1210 = vset.pattern.permute.xlu0 0
        %1211 = vperm.xlu0 %1210, %v928
        %v1212 = vpop.permute.xlu0 %1211
        %1215 = vset.pattern.permute.xlu0 0
        %1216 = vperm.xlu0 %1215, %v929
        %v1217 = vpop.permute.xlu0 %1216
        %1220 = vset.pattern.permute.xlu0 0
        %1221 = vperm.xlu0 %1220, %v930
        %v1222 = vpop.permute.xlu0 %1221
        %1225 = vset.pattern.permute.xlu0 0
        %1226 = vperm.xlu0 %1225, %v931
        %v1227 = vpop.permute.xlu0 %1226
        %1230 = vset.pattern.permute.xlu0 0
        %1231 = vperm.xlu0 %1230, %v932
        %v1232 = vpop.permute.xlu0 %1231
        %1235 = vset.pattern.permute.xlu0 0
        %1236 = vperm.xlu0 %1235, %v933
        %v1237 = vpop.permute.xlu0 %1236
        %v1239 = vmul.f32 %v1162, %v1143
        %v1240 = vmul.f32 %v1167, %v1144
        %v1241 = vmul.f32 %v1172, %v1145
        %v1242 = vmul.f32 %v1177, %v1146
        %v1243 = vmul.f32 %v1182, %v1147
        %v1244 = vmul.f32 %v1187, %v1148
        %v1245 = vmul.f32 %v1192, %v1149
        %v1246 = vmul.f32 %v1197, %v1150
        %v1247 = vmul.f32 %v1202, %v1151
        %v1248 = vmul.f32 %v1207, %v1152
        %v1249 = vmul.f32 %v1212, %v1153
        %v1250 = vmul.f32 %v1217, %v1154
        %v1251 = vmul.f32 %v1222, %v1155
        %v1252 = vmul.f32 %v1227, %v1156
        %v1253 = vmul.f32 %v1232, %v1157
        %v1254 = vmul.f32 %v1237, %v1158
        %v1255 = vpack.c.bf16 %v1031, %v1030
        %v1256 = vpack.c.bf16 %v1033, %v1032
        %v1257 = vpack.c.bf16 %v1035, %v1034
        %v1258 = vpack.c.bf16 %v1037, %v1036
        %v1259 = vpack.c.bf16 %v1039, %v1038
        %v1260 = vpack.c.bf16 %v1041, %v1040
        %v1261 = vpack.c.bf16 %v1043, %v1042
        %v1262 = vpack.c.bf16 %v1045, %v1044
        %v1279 = vunpack.c.l.b16 %v596
        %v1280 = vunpack.c.l.b16 %v597
        %v1281 = vunpack.c.l.b16 %v598
        %v1282 = vunpack.c.l.b16 %v599
        %v1283 = vunpack.c.l.b16 %v600
        %v1284 = vunpack.c.l.b16 %v601
        %v1285 = vunpack.c.l.b16 %v602
        %v1286 = vunpack.c.l.b16 %v603
        %v1287 = vunpack.c.l.b16 %v604
        %v1288 = vunpack.c.l.b16 %v605
        %v1289 = vunpack.c.l.b16 %v606
        %v1290 = vunpack.c.l.b16 %v607
        %v1291 = vunpack.c.l.b16 %v608
        %v1292 = vunpack.c.l.b16 %v609
        %v1293 = vunpack.c.l.b16 %v610
        %v1294 = vunpack.c.l.b16 %v611
        %v1295 = vpack.c.b16 %v1280, %v1279
        %v1296 = vpack.c.b16 %v1282, %v1281
        %v1297 = vpack.c.b16 %v1284, %v1283
        %v1298 = vpack.c.b16 %v1286, %v1285
        %v1299 = vpack.c.b16 %v1288, %v1287
        %v1300 = vpack.c.b16 %v1290, %v1289
        %v1301 = vpack.c.b16 %v1292, %v1291
        %v1302 = vpack.c.b16 %v1294, %v1293
        %1311 = vmatprep.subr.bf16.mxu0 0
        %1312 = vmatpush1.bf16.msra.mxu0 %v1295
        %1313 = vmatprep.subr.bf16.mxu0 0
        %1314 = vmatpush1.bf16.msra.mxu0 %v1296
        %1315 = vmatprep.subr.bf16.mxu0 0
        %1316 = vmatpush1.bf16.msra.mxu0 %v1297
        %1317 = vmatprep.subr.bf16.mxu0 0
        %1318 = vmatpush1.bf16.msra.mxu0 %v1298
        %1319 = vmatprep.subr.bf16.mxu0 0
        %1320 = vmatpush1.bf16.msra.mxu0 %v1299
        %1321 = vmatprep.subr.bf16.mxu0 0
        %1322 = vmatpush1.bf16.msra.mxu0 %v1300
        %1323 = vmatprep.subr.bf16.mxu0 0
        %1324 = vmatpush1.bf16.msra.mxu0 %v1301
        %1325 = vmatprep.subr.bf16.mxu0 0
        %1326 = vmatpush1.bf16.msra.mxu0 %v1302
        %1327 = vmatprep.subr.bf16.mxu0 0
        %1328 = vmatpush1.bf16.msra.mxu0 0
        %1329 = vmatprep.subr.bf16.mxu0 0
        %1330 = vmatpush1.bf16.msra.mxu0 0
        %1331 = vmatprep.subr.bf16.mxu0 0
        %1332 = vmatpush1.bf16.msra.mxu0 0
        %1333 = vmatprep.subr.bf16.mxu0 0
        %1334 = vmatpush1.bf16.msra.mxu0 0
        %1335 = vmatprep.subr.bf16.mxu0 0
        %1336 = vmatpush1.bf16.msra.mxu0 0
        %1337 = vmatprep.subr.bf16.mxu0 0
        %1338 = vmatpush1.bf16.msra.mxu0 0
        %1339 = vmatprep.subr.bf16.mxu0 0
        %1340 = vmatpush1.bf16.msra.mxu0 0
        %1341 = vmatprep.subr.bf16.mxu0 0
        %1342 = vmatpush1.bf16.msra.mxu0 0
        %1343 = vmatprep.mubr.bf16.mxu0 0
        %1344 = vmatmul.mubr.bf16.gmra.mrb[0].mxu0 %v1255
        %v1345 = vpop.f32.mrb[0].mxu0
        %v1346 = vadd.f32 0.0, %v1345
        %v1347 = vpop.f32.mrb[0].mxu0
        %v1348 = vpop.f32.mrb[0].mxu0
        %v1349 = vadd.f32 0.0, %v1348
        %v1350 = vpop.f32.mrb[0].mxu0
        %1351 = vmatprep.mubr.bf16.mxu0 0
        %1352 = vmatmul.mubr.bf16.gmra.mrb[0].mxu0 %v1256
        %v1353 = vpop.f32.mrb[0].mxu0
        %v1354 = vadd.f32 0.0, %v1353
        %v1355 = vpop.f32.mrb[0].mxu0
        %v1356 = vpop.f32.mrb[0].mxu0
        %v1357 = vadd.f32 0.0, %v1356
        %v1358 = vpop.f32.mrb[0].mxu0
        %1359 = vmatprep.mubr.bf16.mxu0 0
        %1360 = vmatmul.mubr.bf16.gmra.mrb[0].mxu0 %v1257
        %v1361 = vpop.f32.mrb[0].mxu0
        %v1362 = vadd.f32 0.0, %v1361
        %v1363 = vpop.f32.mrb[0].mxu0
        %v1364 = vpop.f32.mrb[0].mxu0
        %v1365 = vadd.f32 0.0, %v1364
        %v1366 = vpop.f32.mrb[0].mxu0
        %1367 = vmatprep.mubr.bf16.mxu0 0
        %1368 = vmatmul.mubr.bf16.gmra.mrb[0].mxu0 %v1258
        %v1369 = vpop.f32.mrb[0].mxu0
        %v1370 = vadd.f32 0.0, %v1369
        %v1371 = vpop.f32.mrb[0].mxu0
        %v1372 = vpop.f32.mrb[0].mxu0
        %v1373 = vadd.f32 0.0, %v1372
        %v1374 = vpop.f32.mrb[0].mxu0
        %1375 = vmatprep.mubr.bf16.mxu0 0
        %1376 = vmatmul.mubr.bf16.gmra.mrb[0].mxu0 %v1259
        %v1377 = vpop.f32.mrb[0].mxu0
        %v1378 = vadd.f32 0.0, %v1377
        %v1379 = vpop.f32.mrb[0].mxu0
        %v1380 = vpop.f32.mrb[0].mxu0
        %v1381 = vadd.f32 0.0, %v1380
        %v1382 = vpop.f32.mrb[0].mxu0
        %1383 = vmatprep.mubr.bf16.mxu0 0
        %1384 = vmatmul.mubr.bf16.gmra.mrb[0].mxu0 %v1260
        %v1385 = vpop.f32.mrb[0].mxu0
        %v1386 = vadd.f32 0.0, %v1385
        %v1387 = vpop.f32.mrb[0].mxu0
        %v1388 = vpop.f32.mrb[0].mxu0
        %v1389 = vadd.f32 0.0, %v1388
        %v1390 = vpop.f32.mrb[0].mxu0
        %1391 = vmatprep.mubr.bf16.mxu0 0
        %1392 = vmatmul.mubr.bf16.gmra.mrb[0].mxu0 %v1261
        %v1393 = vpop.f32.mrb[0].mxu0
        %v1394 = vadd.f32 0.0, %v1393
        %v1395 = vpop.f32.mrb[0].mxu0
        %v1396 = vpop.f32.mrb[0].mxu0
        %v1397 = vadd.f32 0.0, %v1396
        %v1398 = vpop.f32.mrb[0].mxu0
        %1399 = vmatprep.mubr.bf16.mxu0 0
        %1400 = vmatmul.mubr.bf16.gmra.mrb[0].mxu0 %v1262
        %v1401 = vpop.f32.mrb[0].mxu0
        %v1402 = vadd.f32 0.0, %v1401
        %v1403 = vpop.f32.mrb[0].mxu0
        %v1404 = vpop.f32.mrb[0].mxu0
        %v1405 = vadd.f32 0.0, %v1404
        %v1406 = vpop.f32.mrb[0].mxu0
        %1407 = vdwg.mxu0
        %v1408 = vadd.f32 %v1239, %v1346
        %v1409 = vadd.f32 %v1240, %v1349
        %v1410 = vadd.f32 %v1241, %v1354
        %v1411 = vadd.f32 %v1242, %v1357
        %v1412 = vadd.f32 %v1243, %v1362
        %v1413 = vadd.f32 %v1244, %v1365
        %v1414 = vadd.f32 %v1245, %v1370
        %v1415 = vadd.f32 %v1246, %v1373
        %v1416 = vadd.f32 %v1247, %v1378
        %v1417 = vadd.f32 %v1248, %v1381
        %v1418 = vadd.f32 %v1249, %v1386
        %v1419 = vadd.f32 %v1250, %v1389
        %v1420 = vadd.f32 %v1251, %v1394
        %v1421 = vadd.f32 %v1252, %v1397
        %v1422 = vadd.f32 %v1253, %v1402
        %v1423 = vadd.f32 %v1254, %v1405
        %1424 = vst [vmem:[#allocation4] sm:$0xff] %v1408
        %1425 = vst [vmem:[#allocation4 + $0x8] sm:$0xff] %v1409
        %1426 = vst [vmem:[#allocation4 + $0x10] sm:$0xff] %v1410
        %1427 = vst [vmem:[#allocation4 + $0x18] sm:$0xff] %v1411
        %1428 = vst [vmem:[#allocation4 + $0x20] sm:$0xff] %v1412
        %1429 = vst [vmem:[#allocation4 + $0x28] sm:$0xff] %v1413
        %1430 = vst [vmem:[#allocation4 + $0x30] sm:$0xff] %v1414
        %1431 = vst [vmem:[#allocation4 + $0x38] sm:$0xff] %v1415
        %1432 = vst [vmem:[#allocation4 + $0x40] sm:$0xff] %v1416
        %1433 = vst [vmem:[#allocation4 + $0x48] sm:$0xff] %v1417
        %1434 = vst [vmem:[#allocation4 + $0x50] sm:$0xff] %v1418
        %1435 = vst [vmem:[#allocation4 + $0x58] sm:$0xff] %v1419
        %1436 = vst [vmem:[#allocation4 + $0x60] sm:$0xff] %v1420
        %1437 = vst [vmem:[#allocation4 + $0x68] sm:$0xff] %v1421
        %1438 = vst [vmem:[#allocation4 + $0x70] sm:$0xff] %v1422
        %1439 = vst [vmem:[#allocation4 + $0x78] sm:$0xff] %v1423
        %1440 = vst.msk [vmem:[#allocation2] sm:$0xff] %vm1126, %v886
        %1441 = vst.msk [vmem:[#allocation2 + $0x8] sm:$0xff] %vm1126, %v887
        %1442 = vst.msk [vmem:[#allocation2 + $0x10] sm:$0xff] %vm1126, %v888
        %1443 = vst.msk [vmem:[#allocation2 + $0x18] sm:$0xff] %vm1126, %v889
        %1444 = vst.msk [vmem:[#allocation2 + $0x20] sm:$0xff] %vm1126, %v890
        %1445 = vst.msk [vmem:[#allocation2 + $0x28] sm:$0xff] %vm1126, %v891
        %1446 = vst.msk [vmem:[#allocation2 + $0x30] sm:$0xff] %vm1126, %v892
        %1447 = vst.msk [vmem:[#allocation2 + $0x38] sm:$0xff] %vm1126, %v893
        %1448 = vst.msk [vmem:[#allocation2 + $0x40] sm:$0xff] %vm1126, %v894
        %1449 = vst.msk [vmem:[#allocation2 + $0x48] sm:$0xff] %vm1126, %v895
        %1450 = vst.msk [vmem:[#allocation2 + $0x50] sm:$0xff] %vm1126, %v896
        %1451 = vst.msk [vmem:[#allocation2 + $0x58] sm:$0xff] %vm1126, %v897
        %1452 = vst.msk [vmem:[#allocation2 + $0x60] sm:$0xff] %vm1126, %v898
        %1453 = vst.msk [vmem:[#allocation2 + $0x68] sm:$0xff] %vm1126, %v899
        %1454 = vst.msk [vmem:[#allocation2 + $0x70] sm:$0xff] %vm1126, %v900
        %1455 = vst.msk [vmem:[#allocation2 + $0x78] sm:$0xff] %vm1126, %v901
        %v1472 = vunpack.c.l.b16 %v547
        %v1473 = vunpack.c.l.b16 %v548
        %v1474 = vunpack.c.l.b16 %v549
        %v1475 = vunpack.c.l.b16 %v550
        %v1476 = vunpack.c.l.b16 %v551
        %v1477 = vunpack.c.l.b16 %v552
        %v1478 = vunpack.c.l.b16 %v553
        %v1479 = vunpack.c.l.b16 %v554
        %v1480 = vunpack.c.l.b16 %v555
        %v1481 = vunpack.c.l.b16 %v556
        %v1482 = vunpack.c.l.b16 %v557
        %v1483 = vunpack.c.l.b16 %v558
        %v1484 = vunpack.c.l.b16 %v559
        %v1485 = vunpack.c.l.b16 %v560
        %v1486 = vunpack.c.l.b16 %v561
        %v1487 = vunpack.c.l.b16 %v562
        %v1488 = vpack.c.b16 %v1473, %v1472
        %v1489 = vpack.c.b16 %v1475, %v1474
        %v1490 = vpack.c.b16 %v1477, %v1476
        %v1491 = vpack.c.b16 %v1479, %v1478
        %v1492 = vpack.c.b16 %v1481, %v1480
        %v1493 = vpack.c.b16 %v1483, %v1482
        %v1494 = vpack.c.b16 %v1485, %v1484
        %v1495 = vpack.c.b16 %v1487, %v1486
        %v1512 = vunpack.c.l.b16 %v580
        %v1513 = vunpack.c.l.b16 %v581
        %v1514 = vunpack.c.l.b16 %v582
        %v1515 = vunpack.c.l.b16 %v583
        %v1516 = vunpack.c.l.b16 %v584
        %v1517 = vunpack.c.l.b16 %v585
        %v1518 = vunpack.c.l.b16 %v586
        %v1519 = vunpack.c.l.b16 %v587
        %v1520 = vunpack.c.l.b16 %v588
        %v1521 = vunpack.c.l.b16 %v589
        %v1522 = vunpack.c.l.b16 %v590
        %v1523 = vunpack.c.l.b16 %v591
        %v1524 = vunpack.c.l.b16 %v592
        %v1525 = vunpack.c.l.b16 %v593
        %v1526 = vunpack.c.l.b16 %v594
        %v1527 = vunpack.c.l.b16 %v595
        %v1528 = vpack.c.b16 %v1513, %v1512
        %v1529 = vpack.c.b16 %v1515, %v1514
        %v1530 = vpack.c.b16 %v1517, %v1516
        %v1531 = vpack.c.b16 %v1519, %v1518
        %v1532 = vpack.c.b16 %v1521, %v1520
        %v1533 = vpack.c.b16 %v1523, %v1522
        %v1534 = vpack.c.b16 %v1525, %v1524
        %v1535 = vpack.c.b16 %v1527, %v1526
        %v1537 = vsel %vm692, %v1488, 0
        %v1540 = vsel %vm692, %v1489, 0
        %v1543 = vsel %vm692, %v1490, 0
        %v1546 = vsel %vm692, %v1491, 0
        %v1549 = vsel %vm692, %v1492, 0
        %v1552 = vsel %vm692, %v1493, 0
        %v1555 = vsel %vm692, %v1494, 0
        %v1558 = vsel %vm692, %v1495, 0
        %v1561 = vsel %vm692, %v1528, 0
        %v1564 = vsel %vm692, %v1529, 0
        %v1567 = vsel %vm692, %v1530, 0
        %v1570 = vsel %vm692, %v1531, 0
        %v1573 = vsel %vm692, %v1532, 0
        %v1576 = vsel %vm692, %v1533, 0
        %v1579 = vsel %vm692, %v1534, 0
        %v1582 = vsel %vm692, %v1535, 0
        %1584 = vmatprep.subr.bf16.mxu0 0
        %1585 = vmatpush1.bf16.xpose.msra.mxu0 %v1561
        %1586 = vmatprep.subr.bf16.mxu0 0
        %1587 = vmatpush1.bf16.xpose.msra.mxu0 %v1564
        %1588 = vmatprep.subr.bf16.mxu0 0
        %1589 = vmatpush1.bf16.xpose.msra.mxu0 %v1567
        %1590 = vmatprep.subr.bf16.mxu0 0
        %1591 = vmatpush1.bf16.xpose.msra.mxu0 %v1570
        %1592 = vmatprep.subr.bf16.mxu0 0
        %1593 = vmatpush1.bf16.xpose.msra.mxu0 %v1573
        %1594 = vmatprep.subr.bf16.mxu0 0
        %1595 = vmatpush1.bf16.xpose.msra.mxu0 %v1576
        %1596 = vmatprep.subr.bf16.mxu0 0
        %1597 = vmatpush1.bf16.xpose.msra.mxu0 %v1579
        %1598 = vmatprep.subr.bf16.mxu0 0
        %1599 = vmatpush1.bf16.xpose.msra.mxu0 %v1582
        %1600 = vmatprep.subr.bf16.mxu0 0
        %1601 = vmatpush1.bf16.xpose.msra.mxu0 0
        %1602 = vmatprep.subr.bf16.mxu0 0
        %1603 = vmatpush1.bf16.xpose.msra.mxu0 0
        %1604 = vmatprep.subr.bf16.mxu0 0
        %1605 = vmatpush1.bf16.xpose.msra.mxu0 0
        %1606 = vmatprep.subr.bf16.mxu0 0
        %1607 = vmatpush1.bf16.xpose.msra.mxu0 0
        %1608 = vmatprep.subr.bf16.mxu0 0
        %1609 = vmatpush1.bf16.xpose.msra.mxu0 0
        %1610 = vmatprep.subr.bf16.mxu0 0
        %1611 = vmatpush1.bf16.xpose.msra.mxu0 0
        %1612 = vmatprep.subr.bf16.mxu0 0
        %1613 = vmatpush1.bf16.xpose.msra.mxu0 0
        %1614 = vmatprep.subr.bf16.mxu0 0
        %1615 = vmatpush1.bf16.xpose.msra.mxu0 0
        %1616 = vmatprep.mubr.bf16.mxu0 0
        %1617 = vmatmul.mubr.bf16.gmra.mrb[0].mxu0 %v1537
        %v1618 = vpop.f32.mrb[0].mxu0
        %v1619 = vadd.f32 0.0, %v1618
        %v1620 = vpop.f32.mrb[0].mxu0
        %v1621 = vpop.f32.mrb[0].mxu0
        %v1622 = vadd.f32 0.0, %v1621
        %v1623 = vpop.f32.mrb[0].mxu0
        %1624 = vmatprep.mubr.bf16.mxu0 0
        %1625 = vmatmul.mubr.bf16.gmra.mrb[0].mxu0 %v1540
        %v1626 = vpop.f32.mrb[0].mxu0
        %v1627 = vadd.f32 0.0, %v1626
        %v1628 = vpop.f32.mrb[0].mxu0
        %v1629 = vpop.f32.mrb[0].mxu0
        %v1630 = vadd.f32 0.0, %v1629
        %v1631 = vpop.f32.mrb[0].mxu0
        %1632 = vmatprep.mubr.bf16.mxu0 0
        %1633 = vmatmul.mubr.bf16.gmra.mrb[0].mxu0 %v1543
        %v1634 = vpop.f32.mrb[0].mxu0
        %v1635 = vadd.f32 0.0, %v1634
        %v1636 = vpop.f32.mrb[0].mxu0
        %v1637 = vpop.f32.mrb[0].mxu0
        %v1638 = vadd.f32 0.0, %v1637
        %v1639 = vpop.f32.mrb[0].mxu0
        %1640 = vmatprep.mubr.bf16.mxu0 0
        %1641 = vmatmul.mubr.bf16.gmra.mrb[0].mxu0 %v1546
        %v1642 = vpop.f32.mrb[0].mxu0
        %v1643 = vadd.f32 0.0, %v1642
        %v1644 = vpop.f32.mrb[0].mxu0
        %v1645 = vpop.f32.mrb[0].mxu0
        %v1646 = vadd.f32 0.0, %v1645
        %v1647 = vpop.f32.mrb[0].mxu0
        %1648 = vmatprep.mubr.bf16.mxu0 0
        %1649 = vmatmul.mubr.bf16.gmra.mrb[0].mxu0 %v1549
        %v1650 = vpop.f32.mrb[0].mxu0
        %v1651 = vadd.f32 0.0, %v1650
        %v1652 = vpop.f32.mrb[0].mxu0
        %v1653 = vpop.f32.mrb[0].mxu0
        %v1654 = vadd.f32 0.0, %v1653
        %v1655 = vpop.f32.mrb[0].mxu0
        %1656 = vmatprep.mubr.bf16.mxu0 0
        %1657 = vmatmul.mubr.bf16.gmra.mrb[0].mxu0 %v1552
        %v1658 = vpop.f32.mrb[0].mxu0
        %v1659 = vadd.f32 0.0, %v1658
        %v1660 = vpop.f32.mrb[0].mxu0
        %v1661 = vpop.f32.mrb[0].mxu0
        %v1662 = vadd.f32 0.0, %v1661
        %v1663 = vpop.f32.mrb[0].mxu0
        %1664 = vmatprep.mubr.bf16.mxu0 0
        %1665 = vmatmul.mubr.bf16.gmra.mrb[0].mxu0 %v1555
        %v1666 = vpop.f32.mrb[0].mxu0
        %v1667 = vadd.f32 0.0, %v1666
        %v1668 = vpop.f32.mrb[0].mxu0
        %v1669 = vpop.f32.mrb[0].mxu0
        %v1670 = vadd.f32 0.0, %v1669
        %v1671 = vpop.f32.mrb[0].mxu0
        %1672 = vmatprep.mubr.bf16.mxu0 0
        %1673 = vmatmul.mubr.bf16.gmra.mrb[0].mxu0 %v1558
        %v1674 = vpop.f32.mrb[0].mxu0
        %v1675 = vadd.f32 0.0, %v1674
        %v1676 = vpop.f32.mrb[0].mxu0
        %v1677 = vpop.f32.mrb[0].mxu0
        %v1678 = vadd.f32 0.0, %v1677
        %v1679 = vpop.f32.mrb[0].mxu0
        %1680 = vdwg.mxu0
        %v1681 = vld [vmem:[#allocation5] sm:$0xff]
        %v1682 = vld [vmem:[#allocation5 + $0x8] sm:$0xff]
        %v1683 = vld [vmem:[#allocation5 + $0x10] sm:$0xff]
        %v1684 = vld [vmem:[#allocation5 + $0x18] sm:$0xff]
        %v1685 = vld [vmem:[#allocation5 + $0x20] sm:$0xff]
        %v1686 = vld [vmem:[#allocation5 + $0x28] sm:$0xff]
        %v1687 = vld [vmem:[#allocation5 + $0x30] sm:$0xff]
        %v1688 = vld [vmem:[#allocation5 + $0x38] sm:$0xff]
        %v1689 = vld [vmem:[#allocation5 + $0x40] sm:$0xff]
        %v1690 = vld [vmem:[#allocation5 + $0x48] sm:$0xff]
        %v1691 = vld [vmem:[#allocation5 + $0x50] sm:$0xff]
        %v1692 = vld [vmem:[#allocation5 + $0x58] sm:$0xff]
        %v1693 = vld [vmem:[#allocation5 + $0x60] sm:$0xff]
        %v1694 = vld [vmem:[#allocation5 + $0x68] sm:$0xff]
        %v1695 = vld [vmem:[#allocation5 + $0x70] sm:$0xff]
        %v1696 = vld [vmem:[#allocation5 + $0x78] sm:$0xff]
        %1697 = vmax.xlane.f32.xlu0 %v1619
        %v1698 = vpop.xlane.xlu0 %1697
        %1699 = vmax.xlane.f32.xlu0 %v1622
        %v1700 = vpop.xlane.xlu0 %1699
        %1701 = vmax.xlane.f32.xlu0 %v1627
        %v1702 = vpop.xlane.xlu0 %1701
        %1703 = vmax.xlane.f32.xlu0 %v1630
        %v1704 = vpop.xlane.xlu0 %1703
        %1705 = vmax.xlane.f32.xlu0 %v1635
        %v1706 = vpop.xlane.xlu0 %1705
        %1707 = vmax.xlane.f32.xlu0 %v1638
        %v1708 = vpop.xlane.xlu0 %1707
        %1709 = vmax.xlane.f32.xlu0 %v1643
        %v1710 = vpop.xlane.xlu0 %1709
        %1711 = vmax.xlane.f32.xlu0 %v1646
        %v1712 = vpop.xlane.xlu0 %1711
        %1713 = vmax.xlane.f32.xlu0 %v1651
        %v1714 = vpop.xlane.xlu0 %1713
        %1715 = vmax.xlane.f32.xlu0 %v1654
        %v1716 = vpop.xlane.xlu0 %1715
        %1717 = vmax.xlane.f32.xlu0 %v1659
        %v1718 = vpop.xlane.xlu0 %1717
        %1719 = vmax.xlane.f32.xlu0 %v1662
        %v1720 = vpop.xlane.xlu0 %1719
        %1721 = vmax.xlane.f32.xlu0 %v1667
        %v1722 = vpop.xlane.xlu0 %1721
        %1723 = vmax.xlane.f32.xlu0 %v1670
        %v1724 = vpop.xlane.xlu0 %1723
        %1725 = vmax.xlane.f32.xlu0 %v1675
        %v1726 = vpop.xlane.xlu0 %1725
        %1727 = vmax.xlane.f32.xlu0 %v1678
        %v1728 = vpop.xlane.xlu0 %1727
        %v1729 = vmax.f32 %v1681, %v1698
        %v1730 = vmax.f32 %v1682, %v1700
        %v1731 = vmax.f32 %v1683, %v1702
        %v1732 = vmax.f32 %v1684, %v1704
        %v1733 = vmax.f32 %v1685, %v1706
        %v1734 = vmax.f32 %v1686, %v1708
        %v1735 = vmax.f32 %v1687, %v1710
        %v1736 = vmax.f32 %v1688, %v1712
        %v1737 = vmax.f32 %v1689, %v1714
        %v1738 = vmax.f32 %v1690, %v1716
        %v1739 = vmax.f32 %v1691, %v1718
        %v1740 = vmax.f32 %v1692, %v1720
        %v1741 = vmax.f32 %v1693, %v1722
        %v1742 = vmax.f32 %v1694, %v1724
        %v1743 = vmax.f32 %v1695, %v1726
        %v1744 = vmax.f32 %v1696, %v1728
        %v1745 = vsub.f32 %v1681, %v1729
        %v1746 = vsub.f32 %v1682, %v1730
        %v1747 = vsub.f32 %v1683, %v1731
        %v1748 = vsub.f32 %v1684, %v1732
        %v1749 = vsub.f32 %v1685, %v1733
        %v1750 = vsub.f32 %v1686, %v1734
        %v1751 = vsub.f32 %v1687, %v1735
        %v1752 = vsub.f32 %v1688, %v1736
        %v1753 = vsub.f32 %v1689, %v1737
        %v1754 = vsub.f32 %v1690, %v1738
        %v1755 = vsub.f32 %v1691, %v1739
        %v1756 = vsub.f32 %v1692, %v1740
        %v1757 = vsub.f32 %v1693, %v1741
        %v1758 = vsub.f32 %v1694, %v1742
        %v1759 = vsub.f32 %v1695, %v1743
        %v1760 = vsub.f32 %v1696, %v1744
        %v1761 = vpow.pop %v1745
        %v1762 = vpow.pop %v1746
        %v1763 = vpow.pop %v1747
        %v1764 = vpow.pop %v1748
        %v1765 = vpow.pop %v1749
        %v1766 = vpow.pop %v1750
        %v1767 = vpow.pop %v1751
        %v1768 = vpow.pop %v1752
        %v1769 = vpow.pop %v1753
        %v1770 = vpow.pop %v1754
        %v1771 = vpow.pop %v1755
        %v1772 = vpow.pop %v1756
        %v1773 = vpow.pop %v1757
        %v1774 = vpow.pop %v1758
        %v1775 = vpow.pop %v1759
        %v1776 = vpow.pop %v1760
        %1778 = vset.pattern.permute.xlu0 0
        %1779 = vperm.xlu0 %1778, %v1729
        %v1780 = vpop.permute.xlu0 %1779
        %1783 = vset.pattern.permute.xlu0 0
        %1784 = vperm.xlu0 %1783, %v1730
        %v1785 = vpop.permute.xlu0 %1784
        %1788 = vset.pattern.permute.xlu0 0
        %1789 = vperm.xlu0 %1788, %v1731
        %v1790 = vpop.permute.xlu0 %1789
        %1793 = vset.pattern.permute.xlu0 0
        %1794 = vperm.xlu0 %1793, %v1732
        %v1795 = vpop.permute.xlu0 %1794
        %1798 = vset.pattern.permute.xlu0 0
        %1799 = vperm.xlu0 %1798, %v1733
        %v1800 = vpop.permute.xlu0 %1799
        %1803 = vset.pattern.permute.xlu0 0
        %1804 = vperm.xlu0 %1803, %v1734
        %v1805 = vpop.permute.xlu0 %1804
        %1808 = vset.pattern.permute.xlu0 0
        %1809 = vperm.xlu0 %1808, %v1735
        %v1810 = vpop.permute.xlu0 %1809
        %1813 = vset.pattern.permute.xlu0 0
        %1814 = vperm.xlu0 %1813, %v1736
        %v1815 = vpop.permute.xlu0 %1814
        %1818 = vset.pattern.permute.xlu0 0
        %1819 = vperm.xlu0 %1818, %v1737
        %v1820 = vpop.permute.xlu0 %1819
        %1823 = vset.pattern.permute.xlu0 0
        %1824 = vperm.xlu0 %1823, %v1738
        %v1825 = vpop.permute.xlu0 %1824
        %1828 = vset.pattern.permute.xlu0 0
        %1829 = vperm.xlu0 %1828, %v1739
        %v1830 = vpop.permute.xlu0 %1829
        %1833 = vset.pattern.permute.xlu0 0
        %1834 = vperm.xlu0 %1833, %v1740
        %v1835 = vpop.permute.xlu0 %1834
        %1838 = vset.pattern.permute.xlu0 0
        %1839 = vperm.xlu0 %1838, %v1741
        %v1840 = vpop.permute.xlu0 %1839
        %1843 = vset.pattern.permute.xlu0 0
        %1844 = vperm.xlu0 %1843, %v1742
        %v1845 = vpop.permute.xlu0 %1844
        %1848 = vset.pattern.permute.xlu0 0
        %1849 = vperm.xlu0 %1848, %v1743
        %v1850 = vpop.permute.xlu0 %1849
        %1853 = vset.pattern.permute.xlu0 0
        %1854 = vperm.xlu0 %1853, %v1744
        %v1855 = vpop.permute.xlu0 %1854
        %v1857 = vsub.f32 %v1619, %v1780
        %v1858 = vsub.f32 %v1622, %v1785
        %v1859 = vsub.f32 %v1627, %v1790
        %v1860 = vsub.f32 %v1630, %v1795
        %v1861 = vsub.f32 %v1635, %v1800
        %v1862 = vsub.f32 %v1638, %v1805
        %v1863 = vsub.f32 %v1643, %v1810
        %v1864 = vsub.f32 %v1646, %v1815
        %v1865 = vsub.f32 %v1651, %v1820
        %v1866 = vsub.f32 %v1654, %v1825
        %v1867 = vsub.f32 %v1659, %v1830
        %v1868 = vsub.f32 %v1662, %v1835
        %v1869 = vsub.f32 %v1667, %v1840
        %v1870 = vsub.f32 %v1670, %v1845
        %v1871 = vsub.f32 %v1675, %v1850
        %v1872 = vsub.f32 %v1678, %v1855
        %v1873 = vpow.pop %v1857
        %v1874 = vpow.pop %v1858
        %v1875 = vpow.pop %v1859
        %v1876 = vpow.pop %v1860
        %v1877 = vpow.pop %v1861
        %v1878 = vpow.pop %v1862
        %v1879 = vpow.pop %v1863
        %v1880 = vpow.pop %v1864
        %v1881 = vpow.pop %v1865
        %v1882 = vpow.pop %v1866
        %v1883 = vpow.pop %v1867
        %v1884 = vpow.pop %v1868
        %v1885 = vpow.pop %v1869
        %v1886 = vpow.pop %v1870
        %v1887 = vpow.pop %v1871
        %v1888 = vpow.pop %v1872
        %v1889 = vld [vmem:[#allocation6] sm:$0xff]
        %v1890 = vld [vmem:[#allocation6 + $0x8] sm:$0xff]
        %v1891 = vld [vmem:[#allocation6 + $0x10] sm:$0xff]
        %v1892 = vld [vmem:[#allocation6 + $0x18] sm:$0xff]
        %v1893 = vld [vmem:[#allocation6 + $0x20] sm:$0xff]
        %v1894 = vld [vmem:[#allocation6 + $0x28] sm:$0xff]
        %v1895 = vld [vmem:[#allocation6 + $0x30] sm:$0xff]
        %v1896 = vld [vmem:[#allocation6 + $0x38] sm:$0xff]
        %v1897 = vld [vmem:[#allocation6 + $0x40] sm:$0xff]
        %v1898 = vld [vmem:[#allocation6 + $0x48] sm:$0xff]
        %v1899 = vld [vmem:[#allocation6 + $0x50] sm:$0xff]
        %v1900 = vld [vmem:[#allocation6 + $0x58] sm:$0xff]
        %v1901 = vld [vmem:[#allocation6 + $0x60] sm:$0xff]
        %v1902 = vld [vmem:[#allocation6 + $0x68] sm:$0xff]
        %v1903 = vld [vmem:[#allocation6 + $0x70] sm:$0xff]
        %v1904 = vld [vmem:[#allocation6 + $0x78] sm:$0xff]
        %v1905 = vmul.f32 %v1761, %v1889
        %v1906 = vmul.f32 %v1762, %v1890
        %v1907 = vmul.f32 %v1763, %v1891
        %v1908 = vmul.f32 %v1764, %v1892
        %v1909 = vmul.f32 %v1765, %v1893
        %v1910 = vmul.f32 %v1766, %v1894
        %v1911 = vmul.f32 %v1767, %v1895
        %v1912 = vmul.f32 %v1768, %v1896
        %v1913 = vmul.f32 %v1769, %v1897
        %v1914 = vmul.f32 %v1770, %v1898
        %v1915 = vmul.f32 %v1771, %v1899
        %v1916 = vmul.f32 %v1772, %v1900
        %v1917 = vmul.f32 %v1773, %v1901
        %v1918 = vmul.f32 %v1774, %v1902
        %v1919 = vmul.f32 %v1775, %v1903
        %v1920 = vmul.f32 %v1776, %v1904
        %1921 = vadd.xlane.f32.xlu0 %v1873
        %v1922 = vpop.xlane.xlu0 %1921
        %1923 = vadd.xlane.f32.xlu0 %v1874
        %v1924 = vpop.xlane.xlu0 %1923
        %1925 = vadd.xlane.f32.xlu0 %v1875
        %v1926 = vpop.xlane.xlu0 %1925
        %1927 = vadd.xlane.f32.xlu0 %v1876
        %v1928 = vpop.xlane.xlu0 %1927
        %1929 = vadd.xlane.f32.xlu0 %v1877
        %v1930 = vpop.xlane.xlu0 %1929
        %1931 = vadd.xlane.f32.xlu0 %v1878
        %v1932 = vpop.xlane.xlu0 %1931
        %1933 = vadd.xlane.f32.xlu0 %v1879
        %v1934 = vpop.xlane.xlu0 %1933
        %1935 = vadd.xlane.f32.xlu0 %v1880
        %v1936 = vpop.xlane.xlu0 %1935
        %1937 = vadd.xlane.f32.xlu0 %v1881
        %v1938 = vpop.xlane.xlu0 %1937
        %1939 = vadd.xlane.f32.xlu0 %v1882
        %v1940 = vpop.xlane.xlu0 %1939
        %1941 = vadd.xlane.f32.xlu0 %v1883
        %v1942 = vpop.xlane.xlu0 %1941
        %1943 = vadd.xlane.f32.xlu0 %v1884
        %v1944 = vpop.xlane.xlu0 %1943
        %1945 = vadd.xlane.f32.xlu0 %v1885
        %v1946 = vpop.xlane.xlu0 %1945
        %1947 = vadd.xlane.f32.xlu0 %v1886
        %v1948 = vpop.xlane.xlu0 %1947
        %1949 = vadd.xlane.f32.xlu0 %v1887
        %v1950 = vpop.xlane.xlu0 %1949
        %1951 = vadd.xlane.f32.xlu0 %v1888
        %v1952 = vpop.xlane.xlu0 %1951
        %v1953 = vadd.f32 %v1905, %v1922
        %v1954 = vadd.f32 %v1906, %v1924
        %v1955 = vadd.f32 %v1907, %v1926
        %v1956 = vadd.f32 %v1908, %v1928
        %v1957 = vadd.f32 %v1909, %v1930
        %v1958 = vadd.f32 %v1910, %v1932
        %v1959 = vadd.f32 %v1911, %v1934
        %v1960 = vadd.f32 %v1912, %v1936
        %v1961 = vadd.f32 %v1913, %v1938
        %v1962 = vadd.f32 %v1914, %v1940
        %v1963 = vadd.f32 %v1915, %v1942
        %v1964 = vadd.f32 %v1916, %v1944
        %v1965 = vadd.f32 %v1917, %v1946
        %v1966 = vadd.f32 %v1918, %v1948
        %v1967 = vadd.f32 %v1919, %v1950
        %v1968 = vadd.f32 %v1920, %v1952
        %1969 = vst.msk [vmem:[#allocation6] sm:$0xff] %vm1126, %v1953
        %1970 = vst.msk [vmem:[#allocation6 + $0x8] sm:$0xff] %vm1126, %v1954
        %1971 = vst.msk [vmem:[#allocation6 + $0x10] sm:$0xff] %vm1126, %v1955
        %1972 = vst.msk [vmem:[#allocation6 + $0x18] sm:$0xff] %vm1126, %v1956
        %1973 = vst.msk [vmem:[#allocation6 + $0x20] sm:$0xff] %vm1126, %v1957
        %1974 = vst.msk [vmem:[#allocation6 + $0x28] sm:$0xff] %vm1126, %v1958
        %1975 = vst.msk [vmem:[#allocation6 + $0x30] sm:$0xff] %vm1126, %v1959
        %1976 = vst.msk [vmem:[#allocation6 + $0x38] sm:$0xff] %vm1126, %v1960
        %1977 = vst.msk [vmem:[#allocation6 + $0x40] sm:$0xff] %vm1126, %v1961
        %1978 = vst.msk [vmem:[#allocation6 + $0x48] sm:$0xff] %vm1126, %v1962
        %1979 = vst.msk [vmem:[#allocation6 + $0x50] sm:$0xff] %vm1126, %v1963
        %1980 = vst.msk [vmem:[#allocation6 + $0x58] sm:$0xff] %vm1126, %v1964
        %1981 = vst.msk [vmem:[#allocation6 + $0x60] sm:$0xff] %vm1126, %v1965
        %1982 = vst.msk [vmem:[#allocation6 + $0x68] sm:$0xff] %vm1126, %v1966
        %1983 = vst.msk [vmem:[#allocation6 + $0x70] sm:$0xff] %vm1126, %v1967
        %1984 = vst.msk [vmem:[#allocation6 + $0x78] sm:$0xff] %vm1126, %v1968
        %v1985 = vld [vmem:[#allocation7] sm:$0xff]
        %v1986 = vld [vmem:[#allocation7 + $0x8] sm:$0xff]
        %v1987 = vld [vmem:[#allocation7 + $0x10] sm:$0xff]
        %v1988 = vld [vmem:[#allocation7 + $0x18] sm:$0xff]
        %v1989 = vld [vmem:[#allocation7 + $0x20] sm:$0xff]
        %v1990 = vld [vmem:[#allocation7 + $0x28] sm:$0xff]
        %v1991 = vld [vmem:[#allocation7 + $0x30] sm:$0xff]
        %v1992 = vld [vmem:[#allocation7 + $0x38] sm:$0xff]
        %v1993 = vld [vmem:[#allocation7 + $0x40] sm:$0xff]
        %v1994 = vld [vmem:[#allocation7 + $0x48] sm:$0xff]
        %v1995 = vld [vmem:[#allocation7 + $0x50] sm:$0xff]
        %v1996 = vld [vmem:[#allocation7 + $0x58] sm:$0xff]
        %v1997 = vld [vmem:[#allocation7 + $0x60] sm:$0xff]
        %v1998 = vld [vmem:[#allocation7 + $0x68] sm:$0xff]
        %v1999 = vld [vmem:[#allocation7 + $0x70] sm:$0xff]
        %v2000 = vld [vmem:[#allocation7 + $0x78] sm:$0xff]
        %2002 = vset.pattern.permute.xlu0 0
        %2003 = vperm.xlu0 %2002, %v1761
        %v2004 = vpop.permute.xlu0 %2003
        %2007 = vset.pattern.permute.xlu0 0
        %2008 = vperm.xlu0 %2007, %v1762
        %v2009 = vpop.permute.xlu0 %2008
        %2012 = vset.pattern.permute.xlu0 0
        %2013 = vperm.xlu0 %2012, %v1763
        %v2014 = vpop.permute.xlu0 %2013
        %2017 = vset.pattern.permute.xlu0 0
        %2018 = vperm.xlu0 %2017, %v1764
        %v2019 = vpop.permute.xlu0 %2018
        %2022 = vset.pattern.permute.xlu0 0
        %2023 = vperm.xlu0 %2022, %v1765
        %v2024 = vpop.permute.xlu0 %2023
        %2027 = vset.pattern.permute.xlu0 0
        %2028 = vperm.xlu0 %2027, %v1766
        %v2029 = vpop.permute.xlu0 %2028
        %2032 = vset.pattern.permute.xlu0 0
        %2033 = vperm.xlu0 %2032, %v1767
        %v2034 = vpop.permute.xlu0 %2033
        %2037 = vset.pattern.permute.xlu0 0
        %2038 = vperm.xlu0 %2037, %v1768
        %v2039 = vpop.permute.xlu0 %2038
        %2042 = vset.pattern.permute.xlu0 0
        %2043 = vperm.xlu0 %2042, %v1769
        %v2044 = vpop.permute.xlu0 %2043
        %2047 = vset.pattern.permute.xlu0 0
        %2048 = vperm.xlu0 %2047, %v1770
        %v2049 = vpop.permute.xlu0 %2048
        %2052 = vset.pattern.permute.xlu0 0
        %2053 = vperm.xlu0 %2052, %v1771
        %v2054 = vpop.permute.xlu0 %2053
        %2057 = vset.pattern.permute.xlu0 0
        %2058 = vperm.xlu0 %2057, %v1772
        %v2059 = vpop.permute.xlu0 %2058
        %2062 = vset.pattern.permute.xlu0 0
        %2063 = vperm.xlu0 %2062, %v1773
        %v2064 = vpop.permute.xlu0 %2063
        %2067 = vset.pattern.permute.xlu0 0
        %2068 = vperm.xlu0 %2067, %v1774
        %v2069 = vpop.permute.xlu0 %2068
        %2072 = vset.pattern.permute.xlu0 0
        %2073 = vperm.xlu0 %2072, %v1775
        %v2074 = vpop.permute.xlu0 %2073
        %2077 = vset.pattern.permute.xlu0 0
        %2078 = vperm.xlu0 %2077, %v1776
        %v2079 = vpop.permute.xlu0 %2078
        %v2081 = vmul.f32 %v2004, %v1985
        %v2082 = vmul.f32 %v2009, %v1986
        %v2083 = vmul.f32 %v2014, %v1987
        %v2084 = vmul.f32 %v2019, %v1988
        %v2085 = vmul.f32 %v2024, %v1989
        %v2086 = vmul.f32 %v2029, %v1990
        %v2087 = vmul.f32 %v2034, %v1991
        %v2088 = vmul.f32 %v2039, %v1992
        %v2089 = vmul.f32 %v2044, %v1993
        %v2090 = vmul.f32 %v2049, %v1994
        %v2091 = vmul.f32 %v2054, %v1995
        %v2092 = vmul.f32 %v2059, %v1996
        %v2093 = vmul.f32 %v2064, %v1997
        %v2094 = vmul.f32 %v2069, %v1998
        %v2095 = vmul.f32 %v2074, %v1999
        %v2096 = vmul.f32 %v2079, %v2000
        %v2097 = vpack.c.bf16 %v1874, %v1873
        %v2098 = vpack.c.bf16 %v1876, %v1875
        %v2099 = vpack.c.bf16 %v1878, %v1877
        %v2100 = vpack.c.bf16 %v1880, %v1879
        %v2101 = vpack.c.bf16 %v1882, %v1881
        %v2102 = vpack.c.bf16 %v1884, %v1883
        %v2103 = vpack.c.bf16 %v1886, %v1885
        %v2104 = vpack.c.bf16 %v1888, %v1887
        %2105 = vmatprep.subr.bf16.mxu0 0
        %2106 = vmatpush1.bf16.msra.mxu0 %v1295
        %2107 = vmatprep.subr.bf16.mxu0 0
        %2108 = vmatpush1.bf16.msra.mxu0 %v1296
        %2109 = vmatprep.subr.bf16.mxu0 0
        %2110 = vmatpush1.bf16.msra.mxu0 %v1297
        %2111 = vmatprep.subr.bf16.mxu0 0
        %2112 = vmatpush1.bf16.msra.mxu0 %v1298
        %2113 = vmatprep.subr.bf16.mxu0 0
        %2114 = vmatpush1.bf16.msra.mxu0 %v1299
        %2115 = vmatprep.subr.bf16.mxu0 0
        %2116 = vmatpush1.bf16.msra.mxu0 %v1300
        %2117 = vmatprep.subr.bf16.mxu0 0
        %2118 = vmatpush1.bf16.msra.mxu0 %v1301
        %2119 = vmatprep.subr.bf16.mxu0 0
        %2120 = vmatpush1.bf16.msra.mxu0 %v1302
        %2121 = vmatprep.subr.bf16.mxu0 0
        %2122 = vmatpush1.bf16.msra.mxu0 0
        %2123 = vmatprep.subr.bf16.mxu0 0
        %2124 = vmatpush1.bf16.msra.mxu0 0
        %2125 = vmatprep.subr.bf16.mxu0 0
        %2126 = vmatpush1.bf16.msra.mxu0 0
        %2127 = vmatprep.subr.bf16.mxu0 0
        %2128 = vmatpush1.bf16.msra.mxu0 0
        %2129 = vmatprep.subr.bf16.mxu0 0
        %2130 = vmatpush1.bf16.msra.mxu0 0
        %2131 = vmatprep.subr.bf16.mxu0 0
        %2132 = vmatpush1.bf16.msra.mxu0 0
        %2133 = vmatprep.subr.bf16.mxu0 0
        %2134 = vmatpush1.bf16.msra.mxu0 0
        %2135 = vmatprep.subr.bf16.mxu0 0
        %2136 = vmatpush1.bf16.msra.mxu0 0
        %2137 = vmatprep.mubr.bf16.mxu0 0
        %2138 = vmatmul.mubr.bf16.gmra.mrb[0].mxu0 %v2097
        %v2139 = vpop.f32.mrb[0].mxu0
        %v2140 = vadd.f32 0.0, %v2139
        %v2141 = vpop.f32.mrb[0].mxu0
        %v2142 = vpop.f32.mrb[0].mxu0
        %v2143 = vadd.f32 0.0, %v2142
        %v2144 = vpop.f32.mrb[0].mxu0
        %2145 = vmatprep.mubr.bf16.mxu0 0
        %2146 = vmatmul.mubr.bf16.gmra.mrb[0].mxu0 %v2098
        %v2147 = vpop.f32.mrb[0].mxu0
        %v2148 = vadd.f32 0.0, %v2147
        %v2149 = vpop.f32.mrb[0].mxu0
        %v2150 = vpop.f32.mrb[0].mxu0
        %v2151 = vadd.f32 0.0, %v2150
        %v2152 = vpop.f32.mrb[0].mxu0
        %2153 = vmatprep.mubr.bf16.mxu0 0
        %2154 = vmatmul.mubr.bf16.gmra.mrb[0].mxu0 %v2099
        %v2155 = vpop.f32.mrb[0].mxu0
        %v2156 = vadd.f32 0.0, %v2155
        %v2157 = vpop.f32.mrb[0].mxu0
        %v2158 = vpop.f32.mrb[0].mxu0
        %v2159 = vadd.f32 0.0, %v2158
        %v2160 = vpop.f32.mrb[0].mxu0
        %2161 = vmatprep.mubr.bf16.mxu0 0
        %2162 = vmatmul.mubr.bf16.gmra.mrb[0].mxu0 %v2100
        %v2163 = vpop.f32.mrb[0].mxu0
        %v2164 = vadd.f32 0.0, %v2163
        %v2165 = vpop.f32.mrb[0].mxu0
        %v2166 = vpop.f32.mrb[0].mxu0
        %v2167 = vadd.f32 0.0, %v2166
        %v2168 = vpop.f32.mrb[0].mxu0
        %2169 = vmatprep.mubr.bf16.mxu0 0
        %2170 = vmatmul.mubr.bf16.gmra.mrb[0].mxu0 %v2101
        %v2171 = vpop.f32.mrb[0].mxu0
        %v2172 = vadd.f32 0.0, %v2171
        %v2173 = vpop.f32.mrb[0].mxu0
        %v2174 = vpop.f32.mrb[0].mxu0
        %v2175 = vadd.f32 0.0, %v2174
        %v2176 = vpop.f32.mrb[0].mxu0
        %2177 = vmatprep.mubr.bf16.mxu0 0
        %2178 = vmatmul.mubr.bf16.gmra.mrb[0].mxu0 %v2102
        %v2179 = vpop.f32.mrb[0].mxu0
        %v2180 = vadd.f32 0.0, %v2179
        %v2181 = vpop.f32.mrb[0].mxu0
        %v2182 = vpop.f32.mrb[0].mxu0
        %v2183 = vadd.f32 0.0, %v2182
        %v2184 = vpop.f32.mrb[0].mxu0
        %2185 = vmatprep.mubr.bf16.mxu0 0
        %2186 = vmatmul.mubr.bf16.gmra.mrb[0].mxu0 %v2103
        %v2187 = vpop.f32.mrb[0].mxu0
        %v2188 = vadd.f32 0.0, %v2187
        %v2189 = vpop.f32.mrb[0].mxu0
        %v2190 = vpop.f32.mrb[0].mxu0
        %v2191 = vadd.f32 0.0, %v2190
        %v2192 = vpop.f32.mrb[0].mxu0
        %2193 = vmatprep.mubr.bf16.mxu0 0
        %2194 = vmatmul.mubr.bf16.gmra.mrb[0].mxu0 %v2104
        %v2195 = vpop.f32.mrb[0].mxu0
        %v2196 = vadd.f32 0.0, %v2195
        %v2197 = vpop.f32.mrb[0].mxu0
        %v2198 = vpop.f32.mrb[0].mxu0
        %v2199 = vadd.f32 0.0, %v2198
        %v2200 = vpop.f32.mrb[0].mxu0
        %2201 = vdwg.mxu0
        %v2202 = vadd.f32 %v2081, %v2140
        %v2203 = vadd.f32 %v2082, %v2143
        %v2204 = vadd.f32 %v2083, %v2148
        %v2205 = vadd.f32 %v2084, %v2151
        %v2206 = vadd.f32 %v2085, %v2156
        %v2207 = vadd.f32 %v2086, %v2159
        %v2208 = vadd.f32 %v2087, %v2164
        %v2209 = vadd.f32 %v2088, %v2167
        %v2210 = vadd.f32 %v2089, %v2172
        %v2211 = vadd.f32 %v2090, %v2175
        %v2212 = vadd.f32 %v2091, %v2180
        %v2213 = vadd.f32 %v2092, %v2183
        %v2214 = vadd.f32 %v2093, %v2188
        %v2215 = vadd.f32 %v2094, %v2191
        %v2216 = vadd.f32 %v2095, %v2196
        %v2217 = vadd.f32 %v2096, %v2199
        %2218 = vst [vmem:[#allocation7] sm:$0xff] %v2202
        %2219 = vst [vmem:[#allocation7 + $0x8] sm:$0xff] %v2203
        %2220 = vst [vmem:[#allocation7 + $0x10] sm:$0xff] %v2204
        %2221 = vst [vmem:[#allocation7 + $0x18] sm:$0xff] %v2205
        %2222 = vst [vmem:[#allocation7 + $0x20] sm:$0xff] %v2206
        %2223 = vst [vmem:[#allocation7 + $0x28] sm:$0xff] %v2207
        %2224 = vst [vmem:[#allocation7 + $0x30] sm:$0xff] %v2208
        %2225 = vst [vmem:[#allocation7 + $0x38] sm:$0xff] %v2209
        %2226 = vst [vmem:[#allocation7 + $0x40] sm:$0xff] %v2210
        %2227 = vst [vmem:[#allocation7 + $0x48] sm:$0xff] %v2211
        %2228 = vst [vmem:[#allocation7 + $0x50] sm:$0xff] %v2212
        %2229 = vst [vmem:[#allocation7 + $0x58] sm:$0xff] %v2213
        %2230 = vst [vmem:[#allocation7 + $0x60] sm:$0xff] %v2214
        %2231 = vst [vmem:[#allocation7 + $0x68] sm:$0xff] %v2215
        %2232 = vst [vmem:[#allocation7 + $0x70] sm:$0xff] %v2216
        %2233 = vst [vmem:[#allocation7 + $0x78] sm:$0xff] %v2217
        %2234 = vst.msk [vmem:[#allocation5] sm:$0xff] %vm1126, %v1729
        %2235 = vst.msk [vmem:[#allocation5 + $0x8] sm:$0xff] %vm1126, %v1730
        %2236 = vst.msk [vmem:[#allocation5 + $0x10] sm:$0xff] %vm1126, %v1731
        %2237 = vst.msk [vmem:[#allocation5 + $0x18] sm:$0xff] %vm1126, %v1732
        %2238 = vst.msk [vmem:[#allocation5 + $0x20] sm:$0xff] %vm1126, %v1733
        %2239 = vst.msk [vmem:[#allocation5 + $0x28] sm:$0xff] %vm1126, %v1734
        %2240 = vst.msk [vmem:[#allocation5 + $0x30] sm:$0xff] %vm1126, %v1735
        %2241 = vst.msk [vmem:[#allocation5 + $0x38] sm:$0xff] %vm1126, %v1736
        %2242 = vst.msk [vmem:[#allocation5 + $0x40] sm:$0xff] %vm1126, %v1737
        %2243 = vst.msk [vmem:[#allocation5 + $0x48] sm:$0xff] %vm1126, %v1738
        %2244 = vst.msk [vmem:[#allocation5 + $0x50] sm:$0xff] %vm1126, %v1739
        %2245 = vst.msk [vmem:[#allocation5 + $0x58] sm:$0xff] %vm1126, %v1740
        %2246 = vst.msk [vmem:[#allocation5 + $0x60] sm:$0xff] %vm1126, %v1741
        %2247 = vst.msk [vmem:[#allocation5 + $0x68] sm:$0xff] %vm1126, %v1742
        %2248 = vst.msk [vmem:[#allocation5 + $0x70] sm:$0xff] %vm1126, %v1743
        %2249 = vst.msk [vmem:[#allocation5 + $0x78] sm:$0xff] %vm1126, %v1744
        // Predicated region
        $region45: #{tpu_custom_call.1} parent=39 // pred_check
          %p2250 = pneg %p397
        $region46: #{tpu_custom_call.1} parent=39 // pred_check_branch
          %2252 = sbr.rel (%p2250) target = $region48
        $region47: #{tpu_custom_call.1} parent=39 // pred_region
          %v2253 = vld [vmem:[#allocation3] sm:$0xff]
          %v2254 = vld [vmem:[#allocation3 + $0x8] sm:$0xff]
          %v2255 = vld [vmem:[#allocation3 + $0x10] sm:$0xff]
          %v2256 = vld [vmem:[#allocation3 + $0x18] sm:$0xff]
          %v2257 = vld [vmem:[#allocation3 + $0x20] sm:$0xff]
          %v2258 = vld [vmem:[#allocation3 + $0x28] sm:$0xff]
          %v2259 = vld [vmem:[#allocation3 + $0x30] sm:$0xff]
          %v2260 = vld [vmem:[#allocation3 + $0x38] sm:$0xff]
          %v2261 = vld [vmem:[#allocation3 + $0x40] sm:$0xff]
          %v2262 = vld [vmem:[#allocation3 + $0x48] sm:$0xff]
          %v2263 = vld [vmem:[#allocation3 + $0x50] sm:$0xff]
          %v2264 = vld [vmem:[#allocation3 + $0x58] sm:$0xff]
          %v2265 = vld [vmem:[#allocation3 + $0x60] sm:$0xff]
          %v2266 = vld [vmem:[#allocation3 + $0x68] sm:$0xff]
          %v2267 = vld [vmem:[#allocation3 + $0x70] sm:$0xff]
          %v2268 = vld [vmem:[#allocation3 + $0x78] sm:$0xff]
          %v2269 = vrcp.pop %v2253
          %v2270 = vrcp.pop %v2254
          %v2271 = vrcp.pop %v2255
          %v2272 = vrcp.pop %v2256
          %v2273 = vrcp.pop %v2257
          %v2274 = vrcp.pop %v2258
          %v2275 = vrcp.pop %v2259
          %v2276 = vrcp.pop %v2260
          %v2277 = vrcp.pop %v2261
          %v2278 = vrcp.pop %v2262
          %v2279 = vrcp.pop %v2263
          %v2280 = vrcp.pop %v2264
          %v2281 = vrcp.pop %v2265
          %v2282 = vrcp.pop %v2266
          %v2283 = vrcp.pop %v2267
          %v2284 = vrcp.pop %v2268
          %v2285 = vmul.f32 %v2253, %v2269
          %v2286 = vmul.f32 %v2254, %v2270
          %v2287 = vmul.f32 %v2255, %v2271
          %v2288 = vmul.f32 %v2256, %v2272
          %v2289 = vmul.f32 %v2257, %v2273
          %v2290 = vmul.f32 %v2258, %v2274
          %v2291 = vmul.f32 %v2259, %v2275
          %v2292 = vmul.f32 %v2260, %v2276
          %v2293 = vmul.f32 %v2261, %v2277
          %v2294 = vmul.f32 %v2262, %v2278
          %v2295 = vmul.f32 %v2263, %v2279
          %v2296 = vmul.f32 %v2264, %v2280
          %v2297 = vmul.f32 %v2265, %v2281
          %v2298 = vmul.f32 %v2266, %v2282
          %v2299 = vmul.f32 %v2267, %v2283
          %v2300 = vmul.f32 %v2268, %v2284
          %v2301 = vsub.f32 2.0, %v2285
          %v2302 = vsub.f32 2.0, %v2286
          %v2303 = vsub.f32 2.0, %v2287
          %v2304 = vsub.f32 2.0, %v2288
          %v2305 = vsub.f32 2.0, %v2289
          %v2306 = vsub.f32 2.0, %v2290
          %v2307 = vsub.f32 2.0, %v2291
          %v2308 = vsub.f32 2.0, %v2292
          %v2309 = vsub.f32 2.0, %v2293
          %v2310 = vsub.f32 2.0, %v2294
          %v2311 = vsub.f32 2.0, %v2295
          %v2312 = vsub.f32 2.0, %v2296
          %v2313 = vsub.f32 2.0, %v2297
          %v2314 = vsub.f32 2.0, %v2298
          %v2315 = vsub.f32 2.0, %v2299
          %v2316 = vsub.f32 2.0, %v2300
          %v2317 = vmul.f32 %v2269, %v2301
          %v2318 = vmul.f32 %v2270, %v2302
          %v2319 = vmul.f32 %v2271, %v2303
          %v2320 = vmul.f32 %v2272, %v2304
          %v2321 = vmul.f32 %v2273, %v2305
          %v2322 = vmul.f32 %v2274, %v2306
          %v2323 = vmul.f32 %v2275, %v2307
          %v2324 = vmul.f32 %v2276, %v2308
          %v2325 = vmul.f32 %v2277, %v2309
          %v2326 = vmul.f32 %v2278, %v2310
          %v2327 = vmul.f32 %v2279, %v2311
          %v2328 = vmul.f32 %v2280, %v2312
          %v2329 = vmul.f32 %v2281, %v2313
          %v2330 = vmul.f32 %v2282, %v2314
          %v2331 = vmul.f32 %v2283, %v2315
          %v2332 = vmul.f32 %v2284, %v2316
          %v2333 = vld [vmem:[#allocation6] sm:$0xff]
          %v2334 = vld [vmem:[#allocation6 + $0x8] sm:$0xff]
          %v2335 = vld [vmem:[#allocation6 + $0x10] sm:$0xff]
          %v2336 = vld [vmem:[#allocation6 + $0x18] sm:$0xff]
          %v2337 = vld [vmem:[#allocation6 + $0x20] sm:$0xff]
          %v2338 = vld [vmem:[#allocation6 + $0x28] sm:$0xff]
          %v2339 = vld [vmem:[#allocation6 + $0x30] sm:$0xff]
          %v2340 = vld [vmem:[#allocation6 + $0x38] sm:$0xff]
          %v2341 = vld [vmem:[#allocation6 + $0x40] sm:$0xff]
          %v2342 = vld [vmem:[#allocation6 + $0x48] sm:$0xff]
          %v2343 = vld [vmem:[#allocation6 + $0x50] sm:$0xff]
          %v2344 = vld [vmem:[#allocation6 + $0x58] sm:$0xff]
          %v2345 = vld [vmem:[#allocation6 + $0x60] sm:$0xff]
          %v2346 = vld [vmem:[#allocation6 + $0x68] sm:$0xff]
          %v2347 = vld [vmem:[#allocation6 + $0x70] sm:$0xff]
          %v2348 = vld [vmem:[#allocation6 + $0x78] sm:$0xff]
          %v2349 = vrcp.pop %v2333
          %v2350 = vrcp.pop %v2334
          %v2351 = vrcp.pop %v2335
          %v2352 = vrcp.pop %v2336
          %v2353 = vrcp.pop %v2337
          %v2354 = vrcp.pop %v2338
          %v2355 = vrcp.pop %v2339
          %v2356 = vrcp.pop %v2340
          %v2357 = vrcp.pop %v2341
          %v2358 = vrcp.pop %v2342
          %v2359 = vrcp.pop %v2343
          %v2360 = vrcp.pop %v2344
          %v2361 = vrcp.pop %v2345
          %v2362 = vrcp.pop %v2346
          %v2363 = vrcp.pop %v2347
          %v2364 = vrcp.pop %v2348
          %v2365 = vmul.f32 %v2333, %v2349
          %v2366 = vmul.f32 %v2334, %v2350
          %v2367 = vmul.f32 %v2335, %v2351
          %v2368 = vmul.f32 %v2336, %v2352
          %v2369 = vmul.f32 %v2337, %v2353
          %v2370 = vmul.f32 %v2338, %v2354
          %v2371 = vmul.f32 %v2339, %v2355
          %v2372 = vmul.f32 %v2340, %v2356
          %v2373 = vmul.f32 %v2341, %v2357
          %v2374 = vmul.f32 %v2342, %v2358
          %v2375 = vmul.f32 %v2343, %v2359
          %v2376 = vmul.f32 %v2344, %v2360
          %v2377 = vmul.f32 %v2345, %v2361
          %v2378 = vmul.f32 %v2346, %v2362
          %v2379 = vmul.f32 %v2347, %v2363
          %v2380 = vmul.f32 %v2348, %v2364
          %v2381 = vsub.f32 2.0, %v2365
          %v2382 = vsub.f32 2.0, %v2366
          %v2383 = vsub.f32 2.0, %v2367
          %v2384 = vsub.f32 2.0, %v2368
          %v2385 = vsub.f32 2.0, %v2369
          %v2386 = vsub.f32 2.0, %v2370
          %v2387 = vsub.f32 2.0, %v2371
          %v2388 = vsub.f32 2.0, %v2372
          %v2389 = vsub.f32 2.0, %v2373
          %v2390 = vsub.f32 2.0, %v2374
          %v2391 = vsub.f32 2.0, %v2375
          %v2392 = vsub.f32 2.0, %v2376
          %v2393 = vsub.f32 2.0, %v2377
          %v2394 = vsub.f32 2.0, %v2378
          %v2395 = vsub.f32 2.0, %v2379
          %v2396 = vsub.f32 2.0, %v2380
          %v2397 = vmul.f32 %v2349, %v2381
          %v2398 = vmul.f32 %v2350, %v2382
          %v2399 = vmul.f32 %v2351, %v2383
          %v2400 = vmul.f32 %v2352, %v2384
          %v2401 = vmul.f32 %v2353, %v2385
          %v2402 = vmul.f32 %v2354, %v2386
          %v2403 = vmul.f32 %v2355, %v2387
          %v2404 = vmul.f32 %v2356, %v2388
          %v2405 = vmul.f32 %v2357, %v2389
          %v2406 = vmul.f32 %v2358, %v2390
          %v2407 = vmul.f32 %v2359, %v2391
          %v2408 = vmul.f32 %v2360, %v2392
          %v2409 = vmul.f32 %v2361, %v2393
          %v2410 = vmul.f32 %v2362, %v2394
          %v2411 = vmul.f32 %v2363, %v2395
          %v2412 = vmul.f32 %v2364, %v2396
          %v2413 = vld [vmem:[#allocation4] sm:$0xff]
          %v2414 = vld [vmem:[#allocation4 + $0x8] sm:$0xff]
          %v2415 = vld [vmem:[#allocation4 + $0x10] sm:$0xff]
          %v2416 = vld [vmem:[#allocation4 + $0x18] sm:$0xff]
          %v2417 = vld [vmem:[#allocation4 + $0x20] sm:$0xff]
          %v2418 = vld [vmem:[#allocation4 + $0x28] sm:$0xff]
          %v2419 = vld [vmem:[#allocation4 + $0x30] sm:$0xff]
          %v2420 = vld [vmem:[#allocation4 + $0x38] sm:$0xff]
          %v2421 = vld [vmem:[#allocation4 + $0x40] sm:$0xff]
          %v2422 = vld [vmem:[#allocation4 + $0x48] sm:$0xff]
          %v2423 = vld [vmem:[#allocation4 + $0x50] sm:$0xff]
          %v2424 = vld [vmem:[#allocation4 + $0x58] sm:$0xff]
          %v2425 = vld [vmem:[#allocation4 + $0x60] sm:$0xff]
          %v2426 = vld [vmem:[#allocation4 + $0x68] sm:$0xff]
          %v2427 = vld [vmem:[#allocation4 + $0x70] sm:$0xff]
          %v2428 = vld [vmem:[#allocation4 + $0x78] sm:$0xff]
          %2430 = vset.pattern.permute.xlu0 0
          %2431 = vperm.xlu0 %2430, %v2317
          %v2432 = vpop.permute.xlu0 %2431
          %2435 = vset.pattern.permute.xlu0 0
          %2436 = vperm.xlu0 %2435, %v2318
          %v2437 = vpop.permute.xlu0 %2436
          %2440 = vset.pattern.permute.xlu0 0
          %2441 = vperm.xlu0 %2440, %v2319
          %v2442 = vpop.permute.xlu0 %2441
          %2445 = vset.pattern.permute.xlu0 0
          %2446 = vperm.xlu0 %2445, %v2320
          %v2447 = vpop.permute.xlu0 %2446
          %2450 = vset.pattern.permute.xlu0 0
          %2451 = vperm.xlu0 %2450, %v2321
          %v2452 = vpop.permute.xlu0 %2451
          %2455 = vset.pattern.permute.xlu0 0
          %2456 = vperm.xlu0 %2455, %v2322
          %v2457 = vpop.permute.xlu0 %2456
          %2460 = vset.pattern.permute.xlu0 0
          %2461 = vperm.xlu0 %2460, %v2323
          %v2462 = vpop.permute.xlu0 %2461
          %2465 = vset.pattern.permute.xlu0 0
          %2466 = vperm.xlu0 %2465, %v2324
          %v2467 = vpop.permute.xlu0 %2466
          %2470 = vset.pattern.permute.xlu0 0
          %2471 = vperm.xlu0 %2470, %v2325
          %v2472 = vpop.permute.xlu0 %2471
          %2475 = vset.pattern.permute.xlu0 0
          %2476 = vperm.xlu0 %2475, %v2326
          %v2477 = vpop.permute.xlu0 %2476
          %2480 = vset.pattern.permute.xlu0 0
          %2481 = vperm.xlu0 %2480, %v2327
          %v2482 = vpop.permute.xlu0 %2481
          %2485 = vset.pattern.permute.xlu0 0
          %2486 = vperm.xlu0 %2485, %v2328
          %v2487 = vpop.permute.xlu0 %2486
          %2490 = vset.pattern.permute.xlu0 0
          %2491 = vperm.xlu0 %2490, %v2329
          %v2492 = vpop.permute.xlu0 %2491
          %2495 = vset.pattern.permute.xlu0 0
          %2496 = vperm.xlu0 %2495, %v2330
          %v2497 = vpop.permute.xlu0 %2496
          %2500 = vset.pattern.permute.xlu0 0
          %2501 = vperm.xlu0 %2500, %v2331
          %v2502 = vpop.permute.xlu0 %2501
          %2505 = vset.pattern.permute.xlu0 0
          %2506 = vperm.xlu0 %2505, %v2332
          %v2507 = vpop.permute.xlu0 %2506
          %v2509 = vmul.f32 %v2413, %v2432
          %v2510 = vmul.f32 %v2414, %v2437
          %v2511 = vmul.f32 %v2415, %v2442
          %v2512 = vmul.f32 %v2416, %v2447
          %v2513 = vmul.f32 %v2417, %v2452
          %v2514 = vmul.f32 %v2418, %v2457
          %v2515 = vmul.f32 %v2419, %v2462
          %v2516 = vmul.f32 %v2420, %v2467
          %v2517 = vmul.f32 %v2421, %v2472
          %v2518 = vmul.f32 %v2422, %v2477
          %v2519 = vmul.f32 %v2423, %v2482
          %v2520 = vmul.f32 %v2424, %v2487
          %v2521 = vmul.f32 %v2425, %v2492
          %v2522 = vmul.f32 %v2426, %v2497
          %v2523 = vmul.f32 %v2427, %v2502
          %v2524 = vmul.f32 %v2428, %v2507
          %v2525 = vld [vmem:[#allocation7] sm:$0xff]
          %v2526 = vld [vmem:[#allocation7 + $0x8] sm:$0xff]
          %v2527 = vld [vmem:[#allocation7 + $0x10] sm:$0xff]
          %v2528 = vld [vmem:[#allocation7 + $0x18] sm:$0xff]
          %v2529 = vld [vmem:[#allocation7 + $0x20] sm:$0xff]
          %v2530 = vld [vmem:[#allocation7 + $0x28] sm:$0xff]
          %v2531 = vld [vmem:[#allocation7 + $0x30] sm:$0xff]
          %v2532 = vld [vmem:[#allocation7 + $0x38] sm:$0xff]
          %v2533 = vld [vmem:[#allocation7 + $0x40] sm:$0xff]
          %v2534 = vld [vmem:[#allocation7 + $0x48] sm:$0xff]
          %v2535 = vld [vmem:[#allocation7 + $0x50] sm:$0xff]
          %v2536 = vld [vmem:[#allocation7 + $0x58] sm:$0xff]
          %v2537 = vld [vmem:[#allocation7 + $0x60] sm:$0xff]
          %v2538 = vld [vmem:[#allocation7 + $0x68] sm:$0xff]
          %v2539 = vld [vmem:[#allocation7 + $0x70] sm:$0xff]
          %v2540 = vld [vmem:[#allocation7 + $0x78] sm:$0xff]
          %2542 = vset.pattern.permute.xlu0 0
          %2543 = vperm.xlu0 %2542, %v2397
          %v2544 = vpop.permute.xlu0 %2543
          %2547 = vset.pattern.permute.xlu0 0
          %2548 = vperm.xlu0 %2547, %v2398
          %v2549 = vpop.permute.xlu0 %2548
          %2552 = vset.pattern.permute.xlu0 0
          %2553 = vperm.xlu0 %2552, %v2399
          %v2554 = vpop.permute.xlu0 %2553
          %2557 = vset.pattern.permute.xlu0 0
          %2558 = vperm.xlu0 %2557, %v2400
          %v2559 = vpop.permute.xlu0 %2558
          %2562 = vset.pattern.permute.xlu0 0
          %2563 = vperm.xlu0 %2562, %v2401
          %v2564 = vpop.permute.xlu0 %2563
          %2567 = vset.pattern.permute.xlu0 0
          %2568 = vperm.xlu0 %2567, %v2402
          %v2569 = vpop.permute.xlu0 %2568
          %2572 = vset.pattern.permute.xlu0 0
          %2573 = vperm.xlu0 %2572, %v2403
          %v2574 = vpop.permute.xlu0 %2573
          %2577 = vset.pattern.permute.xlu0 0
          %2578 = vperm.xlu0 %2577, %v2404
          %v2579 = vpop.permute.xlu0 %2578
          %2582 = vset.pattern.permute.xlu0 0
          %2583 = vperm.xlu0 %2582, %v2405
          %v2584 = vpop.permute.xlu0 %2583
          %2587 = vset.pattern.permute.xlu0 0
          %2588 = vperm.xlu0 %2587, %v2406
          %v2589 = vpop.permute.xlu0 %2588
          %2592 = vset.pattern.permute.xlu0 0
          %2593 = vperm.xlu0 %2592, %v2407
          %v2594 = vpop.permute.xlu0 %2593
          %2597 = vset.pattern.permute.xlu0 0
          %2598 = vperm.xlu0 %2597, %v2408
          %v2599 = vpop.permute.xlu0 %2598
          %2602 = vset.pattern.permute.xlu0 0
          %2603 = vperm.xlu0 %2602, %v2409
          %v2604 = vpop.permute.xlu0 %2603
          %2607 = vset.pattern.permute.xlu0 0
          %2608 = vperm.xlu0 %2607, %v2410
          %v2609 = vpop.permute.xlu0 %2608
          %2612 = vset.pattern.permute.xlu0 0
          %2613 = vperm.xlu0 %2612, %v2411
          %v2614 = vpop.permute.xlu0 %2613
          %2617 = vset.pattern.permute.xlu0 0
          %2618 = vperm.xlu0 %2617, %v2412
          %v2619 = vpop.permute.xlu0 %2618
          %v2621 = vmul.f32 %v2525, %v2544
          %v2622 = vmul.f32 %v2526, %v2549
          %v2623 = vmul.f32 %v2527, %v2554
          %v2624 = vmul.f32 %v2528, %v2559
          %v2625 = vmul.f32 %v2529, %v2564
          %v2626 = vmul.f32 %v2530, %v2569
          %v2627 = vmul.f32 %v2531, %v2574
          %v2628 = vmul.f32 %v2532, %v2579
          %v2629 = vmul.f32 %v2533, %v2584
          %v2630 = vmul.f32 %v2534, %v2589
          %v2631 = vmul.f32 %v2535, %v2594
          %v2632 = vmul.f32 %v2536, %v2599
          %v2633 = vmul.f32 %v2537, %v2604
          %v2634 = vmul.f32 %v2538, %v2609
          %v2635 = vmul.f32 %v2539, %v2614
          %v2636 = vmul.f32 %v2540, %v2619
          %s2637 = sld [smem:[#allocation8]]
          %p2639 = scmp.ne.f32.partialorder %s2637, %s2637
          %s2640 = sshrl.u32 %s2637, 16
          %s2641 = sand.u32 %s2640, 1
          %s2642 = sadd.s32 32767, %s2641
          %s2643 = sadd.s32 %s2637, %s2642
          %s2644 = sand.u32 %s2643, 4294901760
          %s2645 = scalar_select %p2639, 2143289344, %s2644
          %s2647 = sshrl.u32 %s2645, 16
          %v2648 = vpack.c.bf16 %v2510, %v2509
          %v2649 = vpack.c.bf16 %v2512, %v2511
          %v2650 = vpack.c.bf16 %v2514, %v2513
          %v2651 = vpack.c.bf16 %v2516, %v2515
          %v2652 = vpack.c.bf16 %v2518, %v2517
          %v2653 = vpack.c.bf16 %v2520, %v2519
          %v2654 = vpack.c.bf16 %v2522, %v2521
          %v2655 = vpack.c.bf16 %v2524, %v2523
          %v2656 = vpack.c.bf16 %v2622, %v2621
          %v2657 = vpack.c.bf16 %v2624, %v2623
          %v2658 = vpack.c.bf16 %v2626, %v2625
          %v2659 = vpack.c.bf16 %v2628, %v2627
          %v2660 = vpack.c.bf16 %v2630, %v2629
          %v2661 = vpack.c.bf16 %v2632, %v2631
          %v2662 = vpack.c.bf16 %v2634, %v2633
          %v2663 = vpack.c.bf16 %v2636, %v2635
          %s2664 = sshll.u32 %s2647, 16
          %s2665 = sor.u32 %s2647, %s2664
          %v2666 = vstv %s2665
          %v2668 = vmul.bf16 %v2666, %v2656
          %v2669 = vmul.bf16 %v2666, %v2657
          %v2670 = vmul.bf16 %v2666, %v2658
          %v2671 = vmul.bf16 %v2666, %v2659
          %v2672 = vmul.bf16 %v2666, %v2660
          %v2673 = vmul.bf16 %v2666, %v2661
          %v2674 = vmul.bf16 %v2666, %v2662
          %v2675 = vmul.bf16 %v2666, %v2663
          %v2676 = vsub.bf16 %v2648, %v2668
          %v2677 = vsub.bf16 %v2649, %v2669
          %v2678 = vsub.bf16 %v2650, %v2670
          %v2679 = vsub.bf16 %v2651, %v2671
          %v2680 = vsub.bf16 %v2652, %v2672
          %v2681 = vsub.bf16 %v2653, %v2673
          %v2682 = vsub.bf16 %v2654, %v2674
          %v2683 = vsub.bf16 %v2655, %v2675
          %v2684 = vunpack.c.l.bf16 %v2676
          %v2685 = vunpack.c.h.bf16 %v2676
          %v2686 = vunpack.c.l.bf16 %v2677
          %v2687 = vunpack.c.h.bf16 %v2677
          %v2688 = vunpack.c.l.bf16 %v2678
          %v2689 = vunpack.c.h.bf16 %v2678
          %v2690 = vunpack.c.l.bf16 %v2679
          %v2691 = vunpack.c.h.bf16 %v2679
          %v2692 = vunpack.c.l.bf16 %v2680
          %v2693 = vunpack.c.h.bf16 %v2680
          %v2694 = vunpack.c.l.bf16 %v2681
          %v2695 = vunpack.c.h.bf16 %v2681
          %v2696 = vunpack.c.l.bf16 %v2682
          %v2697 = vunpack.c.h.bf16 %v2682
          %v2698 = vunpack.c.l.bf16 %v2683
          %v2699 = vunpack.c.h.bf16 %v2683
          %v2700 = vmul.f32 %v2684, %v2684
          %v2701 = vmul.f32 %v2685, %v2685
          %v2702 = vmul.f32 %v2686, %v2686
          %v2703 = vmul.f32 %v2687, %v2687
          %v2704 = vmul.f32 %v2688, %v2688
          %v2705 = vmul.f32 %v2689, %v2689
          %v2706 = vmul.f32 %v2690, %v2690
          %v2707 = vmul.f32 %v2691, %v2691
          %v2708 = vmul.f32 %v2692, %v2692
          %v2709 = vmul.f32 %v2693, %v2693
          %v2710 = vmul.f32 %v2694, %v2694
          %v2711 = vmul.f32 %v2695, %v2695
          %v2712 = vmul.f32 %v2696, %v2696
          %v2713 = vmul.f32 %v2697, %v2697
          %v2714 = vmul.f32 %v2698, %v2698
          %v2715 = vmul.f32 %v2699, %v2699
          %2716 = vadd.xlane.f32.xlu0 %v2700
          %v2717 = vpop.xlane.xlu0 %2716
          %2718 = vadd.xlane.f32.xlu0 %v2701
          %v2719 = vpop.xlane.xlu0 %2718
          %2720 = vadd.xlane.f32.xlu0 %v2702
          %v2721 = vpop.xlane.xlu0 %2720
          %2722 = vadd.xlane.f32.xlu0 %v2703
          %v2723 = vpop.xlane.xlu0 %2722
          %2724 = vadd.xlane.f32.xlu0 %v2704
          %v2725 = vpop.xlane.xlu0 %2724
          %2726 = vadd.xlane.f32.xlu0 %v2705
          %v2727 = vpop.xlane.xlu0 %2726
          %2728 = vadd.xlane.f32.xlu0 %v2706
          %v2729 = vpop.xlane.xlu0 %2728
          %2730 = vadd.xlane.f32.xlu0 %v2707
          %v2731 = vpop.xlane.xlu0 %2730
          %2732 = vadd.xlane.f32.xlu0 %v2708
          %v2733 = vpop.xlane.xlu0 %2732
          %2734 = vadd.xlane.f32.xlu0 %v2709
          %v2735 = vpop.xlane.xlu0 %2734
          %2736 = vadd.xlane.f32.xlu0 %v2710
          %v2737 = vpop.xlane.xlu0 %2736
          %2738 = vadd.xlane.f32.xlu0 %v2711
          %v2739 = vpop.xlane.xlu0 %2738
          %2740 = vadd.xlane.f32.xlu0 %v2712
          %v2741 = vpop.xlane.xlu0 %2740
          %2742 = vadd.xlane.f32.xlu0 %v2713
          %v2743 = vpop.xlane.xlu0 %2742
          %2744 = vadd.xlane.f32.xlu0 %v2714
          %v2745 = vpop.xlane.xlu0 %2744
          %2746 = vadd.xlane.f32.xlu0 %v2715
          %v2747 = vpop.xlane.xlu0 %2746
          %v2748 = vrcp.pop 128.0
          %v2749 = vmul.f32 %v2717, %v2748
          %v2750 = vmul.f32 %v2719, %v2748
          %v2751 = vmul.f32 %v2721, %v2748
          %v2752 = vmul.f32 %v2723, %v2748
          %v2753 = vmul.f32 %v2725, %v2748
          %v2754 = vmul.f32 %v2727, %v2748
          %v2755 = vmul.f32 %v2729, %v2748
          %v2756 = vmul.f32 %v2731, %v2748
          %v2757 = vmul.f32 %v2733, %v2748
          %v2758 = vmul.f32 %v2735, %v2748
          %v2759 = vmul.f32 %v2737, %v2748
          %v2760 = vmul.f32 %v2739, %v2748
          %v2761 = vmul.f32 %v2741, %v2748
          %v2762 = vmul.f32 %v2743, %v2748
          %v2763 = vmul.f32 %v2745, %v2748
          %v2764 = vmul.f32 %v2747, %v2748
          %v2765 = vadd.f32 %v2749, 1e-05
          %v2766 = vadd.f32 %v2750, 1e-05
          %v2767 = vadd.f32 %v2751, 1e-05
          %v2768 = vadd.f32 %v2752, 1e-05
          %v2769 = vadd.f32 %v2753, 1e-05
          %v2770 = vadd.f32 %v2754, 1e-05
          %v2771 = vadd.f32 %v2755, 1e-05
          %v2772 = vadd.f32 %v2756, 1e-05
          %v2773 = vadd.f32 %v2757, 1e-05
          %v2774 = vadd.f32 %v2758, 1e-05
          %v2775 = vadd.f32 %v2759, 1e-05
          %v2776 = vadd.f32 %v2760, 1e-05
          %v2777 = vadd.f32 %v2761, 1e-05
          %v2778 = vadd.f32 %v2762, 1e-05
          %v2779 = vadd.f32 %v2763, 1e-05
          %v2780 = vadd.f32 %v2764, 1e-05
          %v2781 = vrsqrt.pop %v2765
          %v2782 = vrsqrt.pop %v2766
          %v2783 = vrsqrt.pop %v2767
          %v2784 = vrsqrt.pop %v2768
          %v2785 = vrsqrt.pop %v2769
          %v2786 = vrsqrt.pop %v2770
          %v2787 = vrsqrt.pop %v2771
          %v2788 = vrsqrt.pop %v2772
          %v2789 = vrsqrt.pop %v2773
          %v2790 = vrsqrt.pop %v2774
          %v2791 = vrsqrt.pop %v2775
          %v2792 = vrsqrt.pop %v2776
          %v2793 = vrsqrt.pop %v2777
          %v2794 = vrsqrt.pop %v2778
          %v2795 = vrsqrt.pop %v2779
          %v2796 = vrsqrt.pop %v2780
          %v2797 = vmul.f32 %v2684, %v2781
          %v2798 = vmul.f32 %v2685, %v2782
          %v2799 = vmul.f32 %v2686, %v2783
          %v2800 = vmul.f32 %v2687, %v2784
          %v2801 = vmul.f32 %v2688, %v2785
          %v2802 = vmul.f32 %v2689, %v2786
          %v2803 = vmul.f32 %v2690, %v2787
          %v2804 = vmul.f32 %v2691, %v2788
          %v2805 = vmul.f32 %v2692, %v2789
          %v2806 = vmul.f32 %v2693, %v2790
          %v2807 = vmul.f32 %v2694, %v2791
          %v2808 = vmul.f32 %v2695, %v2792
          %v2809 = vmul.f32 %v2696, %v2793
          %v2810 = vmul.f32 %v2697, %v2794
          %v2811 = vmul.f32 %v2698, %v2795
          %v2812 = vmul.f32 %v2699, %v2796
          %v2813 = vld [vmem:[%s4] sm:$0x1]
          %v2814 = vpack.c.bf16 %v2798, %v2797
          %v2815 = vpack.c.bf16 %v2800, %v2799
          %v2816 = vpack.c.bf16 %v2802, %v2801
          %v2817 = vpack.c.bf16 %v2804, %v2803
          %v2818 = vpack.c.bf16 %v2806, %v2805
          %v2819 = vpack.c.bf16 %v2808, %v2807
          %v2820 = vpack.c.bf16 %v2810, %v2809
          %v2821 = vpack.c.bf16 %v2812, %v2811
          %v2822 = vunpack.c.l.bf16 %v2814
          %v2823 = vunpack.c.h.bf16 %v2814
          %v2824 = vunpack.c.l.bf16 %v2815
          %v2825 = vunpack.c.h.bf16 %v2815
          %v2826 = vunpack.c.l.bf16 %v2816
          %v2827 = vunpack.c.h.bf16 %v2816
          %v2828 = vunpack.c.l.bf16 %v2817
          %v2829 = vunpack.c.h.bf16 %v2817
          %v2830 = vunpack.c.l.bf16 %v2818
          %v2831 = vunpack.c.h.bf16 %v2818
          %v2832 = vunpack.c.l.bf16 %v2819
          %v2833 = vunpack.c.h.bf16 %v2819
          %v2834 = vunpack.c.l.bf16 %v2820
          %v2835 = vunpack.c.h.bf16 %v2820
          %v2836 = vunpack.c.l.bf16 %v2821
          %v2837 = vunpack.c.h.bf16 %v2821
          %v2839 = vlaneseq
          %v2840 = vshrl.u32 %v2839, 7
          %v2841 = vsub.s32 0, %v2840
          %v2842 = vrot.slane %v2813, %v2841
          %v2844 = vmul.f32 %v2842, %v2822
          %v2845 = vmul.f32 %v2842, %v2823
          %v2846 = vmul.f32 %v2842, %v2824
          %v2847 = vmul.f32 %v2842, %v2825
          %v2848 = vmul.f32 %v2842, %v2826
          %v2849 = vmul.f32 %v2842, %v2827
          %v2850 = vmul.f32 %v2842, %v2828
          %v2851 = vmul.f32 %v2842, %v2829
          %v2852 = vmul.f32 %v2842, %v2830
          %v2853 = vmul.f32 %v2842, %v2831
          %v2854 = vmul.f32 %v2842, %v2832
          %v2855 = vmul.f32 %v2842, %v2833
          %v2856 = vmul.f32 %v2842, %v2834
          %v2857 = vmul.f32 %v2842, %v2835
          %v2858 = vmul.f32 %v2842, %v2836
          %v2859 = vmul.f32 %v2842, %v2837
          %2860 = vst [vmem:[%s347] sm:$0xff] %v2844
          %2861 = vst [vmem:[%s347 + $0x8] sm:$0xff] %v2845
          %2862 = vst [vmem:[%s347 + $0x10] sm:$0xff] %v2846
          %2863 = vst [vmem:[%s347 + $0x18] sm:$0xff] %v2847
          %2864 = vst [vmem:[%s347 + $0x20] sm:$0xff] %v2848
          %2865 = vst [vmem:[%s347 + $0x28] sm:$0xff] %v2849
          %2866 = vst [vmem:[%s347 + $0x30] sm:$0xff] %v2850
          %2867 = vst [vmem:[%s347 + $0x38] sm:$0xff] %v2851
          %2868 = vst [vmem:[%s347 + $0x40] sm:$0xff] %v2852
          %2869 = vst [vmem:[%s347 + $0x48] sm:$0xff] %v2853
          %2870 = vst [vmem:[%s347 + $0x50] sm:$0xff] %v2854
          %2871 = vst [vmem:[%s347 + $0x58] sm:$0xff] %v2855
          %2872 = vst [vmem:[%s347 + $0x60] sm:$0xff] %v2856
          %2873 = vst [vmem:[%s347 + $0x68] sm:$0xff] %v2857
          %2874 = vst [vmem:[%s347 + $0x70] sm:$0xff] %v2858
          %2875 = vst [vmem:[%s347 + $0x78] sm:$0xff] %v2859
        $region48: #{tpu_custom_call.1} parent=39 // pred_fallthru
          _
        %s2876 = sand.u32 %s190, 1
        %s2877 = scalar_lea.sflag [#allocation10], %s2876
        %s2878 = sand.u32 %s190, 1
        %s2879 = smul.addr %s2878, 128
        %s2880 = scalar_lea.vmem [#allocation9], %s2879
        // Predicated region
        $region49: #{tpu_custom_call.1} parent=39 // pred_check
          %p2881 = pneg %p200
        $region50: #{tpu_custom_call.1} parent=39 // pred_check_branch
          %2883 = sbr.rel (%p2881) target = $region52
        $region51: #{tpu_custom_call.1} parent=39 // pred_region
          %s2884 = smul.u32 16, %s28
          %s2886 = ssub.s32 2048, 2048
          %2887 = vsyncadd %s2877, %s2886
          %s2888 = smul.addr %s27, 16
          %s2889 = sadd.s32 %s2884, %s2888
          %s2890 = smul.addr %s26, 32
          %s2891 = sadd.s32 %s2889, %s2890
          %s2892 = smul.addr %s2891, 128
          %s2893 = scalar_lea.hbm %s5, %s2892
          %s2894 = sshll.u32 %s2880, 4
          %s2895 = int_to_ptr.vmem [resolvable:$true] %s2894
          %2900 = dma.vmem_to_hbm [thread:$0]  %s2895, 2048, %s2893, %s2877, 128, 128, 8
        $region52: #{tpu_custom_call.1} parent=39 // pred_fallthru
          _
      $region40: #{tpu_custom_call.1} parent=5 // pred_fallthru
        _
      %p2901 = scmp.le.s32.totalorder 2, %s15
      // Predicated region
      $region53: #{tpu_custom_call.1} parent=5 // pred_check
        %p2902 = pneg %p2901
      $region54: #{tpu_custom_call.1} parent=5 // pred_check_branch
        %2904 = sbr.rel (%p2902) target = $region56
      $region55: #{tpu_custom_call.1} parent=5 // pred_region
        %s2905 = ssub.s32 %s15, 2
        // Predicated region
        $region57: #{tpu_custom_call.1} parent=55 // pred_check
          %p2906 = pneg %p206
        $region58: #{tpu_custom_call.1} parent=55 // pred_check_branch
          %2908 = sbr.rel (%p2906) target = $region60
        $region59: #{tpu_custom_call.1} parent=55 // pred_region
          %s2909 = sand.u32 %s191, 1
          %s2910 = scalar_lea.sflag [#allocation10], %s2909
          %s2911 = sand.u32 %s191, 1
          %s2912 = smul.addr %s2911, 128
          %s2913 = scalar_lea.vmem [#allocation9], %s2912
          %2914 = dma.done %s2910, 2048
        $region60: #{tpu_custom_call.1} parent=55 // pred_fallthru
          _
      $region56: #{tpu_custom_call.1} parent=5 // pred_fallthru
        _
    $region6: #{tpu_custom_call.1} parent=1 // loop_footer
      %s19 = sadd.s32 1, %s15
    $region7: #{tpu_custom_call.1} parent=1 // loop_footer_branch
      %14 = sbr.rel target = $region3
    $region8: #{tpu_custom_call.1} parent=1 // loop_exit
      _
    %2915 = vsyncpa [#allocation10], 1
    %s2916 = scalar_lea.sflag [#allocation10], 1
    %2917 = vsyncpa %s2916, 1

</llo_original>
